<compile_context>
chip_gen: v7x
topology: tpu7x:2x2x1
jax: 0.10.0
libtpu: 0.0.40
codegen_flags: <defaults>
</compile_context>

<pallas_src>
import jax
import jax.numpy as jnp
from jax.experimental import pallas as pl
from jax.experimental.pallas import tpu as pltpu

KH, KW = 5, 5
PAD = 2
LANE = 128
SUBLANE = 8


def _round_up(x, m):
    return (x + m - 1) // m * m


def _make_kernel(H, W, W_out, C_blk, Hp, Wp):
    """Builds the per-(batch, channel-block) kernel body."""

    def kernel(x_ref, w_ref, o_ref, xpad_ref):
        # x_ref:    (1, H, W, C_blk)      unpadded input block (one batch, one channel block)
        # w_ref:    (KH*KW, C_blk)        depthwise filter taps, channels on lanes
        # o_ref:    (1, H, W_out, C_blk)  lane/sublane-dense output block
        # xpad_ref: (Hp, Wp, C_blk)       VMEM scratch: ReLU'd + zero-padded input

        # Zero the scratch (this provides the conv's zero padding), then write the ReLU'd
        # interior once.  relu(0) == 0, so padding commutes with the ReLU.
        xpad_ref[...] = jnp.zeros((Hp, Wp, C_blk), jnp.float32)
        xpad_ref[PAD:PAD + H, PAD:PAD + W, :] = jnp.maximum(
            x_ref[0].astype(jnp.float32), 0.0)

        # 25-tap depthwise MAC, statically unrolled.  Each tap is a static-offset window
        # load from the VMEM scratch ref; the f32 accumulator stays in registers.
        acc = jnp.zeros((H, W_out, C_blk), jnp.float32)
        for kh in range(KH):
            for kw in range(KW):
                win = xpad_ref[kh:kh + H, kw:kw + W_out, :]          # (H, W_out, C_blk)
                wt = w_ref[kh * KW + kw, :].reshape(1, 1, C_blk)     # broadcast over H, W
                acc = acc + win * wt
        o_ref[0] = acc.astype(o_ref.dtype)

    return kernel


def relu_depthwise_conv(x_nchw, weight):
    """x_nchw: (N, C, H, W) float32.  weight: (C, 1, KH, KW) float32 (PyTorch layout)."""
    N, C, H, W = x_nchw.shape
    assert weight.shape == (C, 1, KH, KW)

    C_pad = _round_up(C, LANE)                      # lane-dense channel axis
    C_blk = next(b for b in (512, 384, 256, 128) if C_pad % b == 0)
    n_cblk = C_pad // C_blk
    W_out = _round_up(W, SUBLANE)                   # sublane-dense output stores
    Hp = H + 2 * PAD
    Wp = W_out + 2 * PAD                            # windows kw : kw + W_out stay in bounds

    # Boundary glue (module is NCHW): relayout to NHWC and zero-pad the channel axis.
    x_nhwc = jnp.transpose(x_nchw, (0, 2, 3, 1))
    x_nhwc = jnp.pad(x_nhwc, ((0, 0), (0, 0), (0, 0), (0, C_pad - C)))
    # weight (C, 1, KH, KW) -> (KH*KW, C_pad); padded channels get zero weights.
    w_taps = jnp.transpose(weight.reshape(C, KH * KW), (1, 0))
    w_taps = jnp.pad(w_taps, ((0, 0), (0, C_pad - C)))

    kernel = _make_kernel(H, W, W_out, C_blk, Hp, Wp)

    out_pad = pl.pallas_call(
        kernel,
        out_shape=jax.ShapeDtypeStruct((N, H, W_out, C_pad), x_nchw.dtype),
        grid_spec=pltpu.PrefetchScalarGridSpec(
            num_scalar_prefetch=0,
            grid=(N, n_cblk),
            in_specs=[
                pl.BlockSpec((1, H, W, C_blk), lambda n, c: (n, 0, 0, c)),
                pl.BlockSpec((KH * KW, C_blk), lambda n, c: (0, c)),
            ],
            out_specs=pl.BlockSpec((1, H, W_out, C_blk), lambda n, c: (n, 0, 0, c)),
            scratch_shapes=[pltpu.VMEM((Hp, Wp, C_blk), jnp.float32)],
        ),
        compiler_params=pltpu.CompilerParams(
            dimension_semantics=("parallel", "parallel")),
    )(x_nhwc, w_taps)

    # Slice off the W / channel padding and return to the module's NCHW layout.
    out_nhwc = out_pad[:, :, :W, :C]
    return jnp.transpose(out_nhwc, (0, 3, 1, 2))


if __name__ == "__main__":
    # Shapes implied by the module: x170 = randn([1, 1104, 7, 7]); depthwise 5x5 conv.
    N, C, H, W = 1, 1104, 7, 7
    key = jax.random.PRNGKey(0)
    kx, kw = jax.random.split(key)
    x = jax.random.normal(kx, (N, C, H, W), dtype=jnp.float32)
    # Conv2d(1104, 1104, k=5, groups=1104, bias=False) weight shape: (1104, 1, 5, 5)
    weight = jax.random.normal(kw, (C, 1, KH, KW), dtype=jnp.float32) * 0.05

    out = jax.block_until_ready(relu_depthwise_conv(x, weight))

    # Reference check against XLA's grouped conv of relu(x).
    ref = jax.lax.conv_general_dilated(
        jnp.maximum(x, 0.0), weight,
        window_strides=(1, 1), padding=((PAD, PAD), (PAD, PAD)),
        dimension_numbers=("NCHW", "OIHW", "NCHW"),
        feature_group_count=C)
    assert out.shape == (N, C, H, W)
    assert jnp.allclose(out, ref, atol=1e-4, rtol=1e-4), "mismatch vs reference conv"

    print("KERNEL_OK")
</pallas_src>

<mosaic_0001>
module attributes {stable_mosaic.version = 11 : i64} {
  func.func @kernel(%arg0: i32, %arg1: i32, %arg2: memref<1x7x7x384xf32, #tpu.memory_space<vmem>>, %arg3: memref<25x384xf32, #tpu.memory_space<vmem>>, %arg4: memref<1x7x8x384xf32, #tpu.memory_space<vmem>>, %arg5: memref<11x12x384xf32, #tpu.memory_space<vmem>>) attributes {dimension_semantics = [#tpu.dimension_semantics<parallel>, #tpu.dimension_semantics<parallel>], iteration_bounds = array<i64: 1, 3>, scalar_prefetch = 0 : i64, scratch_operands = 1 : i64, tpu.core_type = #tpu.core_type<tc>, window_params = [{transform_indices = @transform_0, window_bounds = array<i64: 1, 7, 7, 384>}, {transform_indices = @transform_1, window_bounds = array<i64: 25, 384>}, {transform_indices = @transform_2, window_bounds = array<i64: 1, 7, 8, 384>}]} {
    %cst = arith.constant 0.000000e+00 : f32
    %0 = vector.broadcast %cst : f32 to vector<11x12x384xf32>
    %c0 = arith.constant 0 : index
    %c0_0 = arith.constant 0 : index
    %c0_1 = arith.constant 0 : index
    %1 = vector.load %arg5[%c0, %c0_0, %c0_1] : memref<11x12x384xf32, #tpu.memory_space<vmem>>, vector<11x12x384xf32>
    tpu.vector_store %arg5[%c0, %c0_0, %c0_1], %0 {strides = array<i32>} : memref<11x12x384xf32, #tpu.memory_space<vmem>>, vector<11x12x384xf32>,
    %c0_2 = arith.constant 0 : index
    %c0_3 = arith.constant 0 : index
    %c0_4 = arith.constant 0 : index
    %c0_5 = arith.constant 0 : index
    %2 = vector.load %arg2[%c0_2, %c0_3, %c0_4, %c0_5] : memref<1x7x7x384xf32, #tpu.memory_space<vmem>>, vector<1x7x7x384xf32>
    %3 = vector.shape_cast %2 : vector<1x7x7x384xf32> to vector<7x7x384xf32>
    %cst_6 = arith.constant 0.000000e+00 : f32
    %4 = vector.broadcast %cst_6 : f32 to vector<7x7x384xf32>
    %5 = arith.maximumf %3, %4 : vector<7x7x384xf32>
    %c2 = arith.constant 2 : index
    %c2_7 = arith.constant 2 : index
    %c0_8 = arith.constant 0 : index
    %6 = vector.load %arg5[%c2, %c2_7, %c0_8] : memref<11x12x384xf32, #tpu.memory_space<vmem>>, vector<7x7x384xf32>
    tpu.vector_store %arg5[%c2, %c2_7, %c0_8], %5 {strides = array<i32>} : memref<11x12x384xf32, #tpu.memory_space<vmem>>, vector<7x7x384xf32>,
    %cst_9 = arith.constant 0.000000e+00 : f32
    %7 = vector.broadcast %cst_9 : f32 to vector<7x8x384xf32>
    %c0_10 = arith.constant 0 : index
    %c0_11 = arith.constant 0 : index
    %c0_12 = arith.constant 0 : index
    %8 = vector.load %arg5[%c0_10, %c0_11, %c0_12] : memref<11x12x384xf32, #tpu.memory_space<vmem>>, vector<7x8x384xf32>
    %c0_13 = arith.constant 0 : index
    %c0_14 = arith.constant 0 : index
    %9 = vector.load %arg3[%c0_13, %c0_14] : memref<25x384xf32, #tpu.memory_space<vmem>>, vector<1x384xf32>
    %10 = vector.shape_cast %9 : vector<1x384xf32> to vector<384xf32>
    %11 = vector.shape_cast %10 : vector<384xf32> to vector<1x1x384xf32>
    %12 = vector.broadcast %11 : vector<1x1x384xf32> to vector<7x8x384xf32>
    %13 = arith.mulf %8, %12 : vector<7x8x384xf32>
    %14 = arith.addf %7, %13 : vector<7x8x384xf32>
    %c0_15 = arith.constant 0 : index
    %c1 = arith.constant 1 : index
    %c0_16 = arith.constant 0 : index
    %15 = vector.load %arg5[%c0_15, %c1, %c0_16] : memref<11x12x384xf32, #tpu.memory_space<vmem>>, vector<7x8x384xf32>
    %c1_17 = arith.constant 1 : index
    %c0_18 = arith.constant 0 : index
    %16 = vector.load %arg3[%c1_17, %c0_18] : memref<25x384xf32, #tpu.memory_space<vmem>>, vector<1x384xf32>
    %17 = vector.shape_cast %16 : vector<1x384xf32> to vector<384xf32>
    %18 = vector.shape_cast %17 : vector<384xf32> to vector<1x1x384xf32>
    %19 = vector.broadcast %18 : vector<1x1x384xf32> to vector<7x8x384xf32>
    %20 = arith.mulf %15, %19 : vector<7x8x384xf32>
    %21 = arith.addf %14, %20 : vector<7x8x384xf32>
    %c0_19 = arith.constant 0 : index
    %c2_20 = arith.constant 2 : index
    %c0_21 = arith.constant 0 : index
    %22 = vector.load %arg5[%c0_19, %c2_20, %c0_21] : memref<11x12x384xf32, #tpu.memory_space<vmem>>, vector<7x8x384xf32>
    %c2_22 = arith.constant 2 : index
    %c0_23 = arith.constant 0 : index
    %23 = vector.load %arg3[%c2_22, %c0_23] : memref<25x384xf32, #tpu.memory_space<vmem>>, vector<1x384xf32>
    %24 = vector.shape_cast %23 : vector<1x384xf32> to vector<384xf32>
    %25 = vector.shape_cast %24 : vector<384xf32> to vector<1x1x384xf32>
    %26 = vector.broadcast %25 : vector<1x1x384xf32> to vector<7x8x384xf32>
    %27 = arith.mulf %22, %26 : vector<7x8x384xf32>
    %28 = arith.addf %21, %27 : vector<7x8x384xf32>
    %c0_24 = arith.constant 0 : index
    %c3 = arith.constant 3 : index
    %c0_25 = arith.constant 0 : index
    %29 = vector.load %arg5[%c0_24, %c3, %c0_25] : memref<11x12x384xf32, #tpu.memory_space<vmem>>, vector<7x8x384xf32>
    %c3_26 = arith.constant 3 : index
    %c0_27 = arith.constant 0 : index
    %30 = vector.load %arg3[%c3_26, %c0_27] : memref<25x384xf32, #tpu.memory_space<vmem>>, vector<1x384xf32>
    %31 = vector.shape_cast %30 : vector<1x384xf32> to vector<384xf32>
    %32 = vector.shape_cast %31 : vector<384xf32> to vector<1x1x384xf32>
    %33 = vector.broadcast %32 : vector<1x1x384xf32> to vector<7x8x384xf32>
    %34 = arith.mulf %29, %33 : vector<7x8x384xf32>
    %35 = arith.addf %28, %34 : vector<7x8x384xf32>
    %c0_28 = arith.constant 0 : index
    %c4 = arith.constant 4 : index
    %c0_29 = arith.constant 0 : index
    %36 = vector.load %arg5[%c0_28, %c4, %c0_29] : memref<11x12x384xf32, #tpu.memory_space<vmem>>, vector<7x8x384xf32>
    %c4_30 = arith.constant 4 : index
    %c0_31 = arith.constant 0 : index
    %37 = vector.load %arg3[%c4_30, %c0_31] : memref<25x384xf32, #tpu.memory_space<vmem>>, vector<1x384xf32>
    %38 = vector.shape_cast %37 : vector<1x384xf32> to vector<384xf32>
    %39 = vector.shape_cast %38 : vector<384xf32> to vector<1x1x384xf32>
    %40 = vector.broadcast %39 : vector<1x1x384xf32> to vector<7x8x384xf32>
    %41 = arith.mulf %36, %40 : vector<7x8x384xf32>
    %42 = arith.addf %35, %41 : vector<7x8x384xf32>
    %c1_32 = arith.constant 1 : index
    %c0_33 = arith.constant 0 : index
    %c0_34 = arith.constant 0 : index
    %43 = vector.load %arg5[%c1_32, %c0_33, %c0_34] : memref<11x12x384xf32, #tpu.memory_space<vmem>>, vector<7x8x384xf32>
    %c5 = arith.constant 5 : index
    %c0_35 = arith.constant 0 : index
    %44 = vector.load %arg3[%c5, %c0_35] : memref<25x384xf32, #tpu.memory_space<vmem>>, vector<1x384xf32>
    %45 = vector.shape_cast %44 : vector<1x384xf32> to vector<384xf32>
    %46 = vector.shape_cast %45 : vector<384xf32> to vector<1x1x384xf32>
    %47 = vector.broadcast %46 : vector<1x1x384xf32> to vector<7x8x384xf32>
    %48 = arith.mulf %43, %47 : vector<7x8x384xf32>
    %49 = arith.addf %42, %48 : vector<7x8x384xf32>
    %c1_36 = arith.constant 1 : index
    %c1_37 = arith.constant 1 : index
    %c0_38 = arith.constant 0 : index
    %50 = vector.load %arg5[%c1_36, %c1_37, %c0_38] : memref<11x12x384xf32, #tpu.memory_space<vmem>>, vector<7x8x384xf32>
    %c6 = arith.constant 6 : index
    %c0_39 = arith.constant 0 : index
    %51 = vector.load %arg3[%c6, %c0_39] : memref<25x384xf32, #tpu.memory_space<vmem>>, vector<1x384xf32>
    %52 = vector.shape_cast %51 : vector<1x384xf32> to vector<384xf32>
    %53 = vector.shape_cast %52 : vector<384xf32> to vector<1x1x384xf32>
    %54 = vector.broadcast %53 : vector<1x1x384xf32> to vector<7x8x384xf32>
    %55 = arith.mulf %50, %54 : vector<7x8x384xf32>
    %56 = arith.addf %49, %55 : vector<7x8x384xf32>
    %c1_40 = arith.constant 1 : index
    %c2_41 = arith.constant 2 : index
    %c0_42 = arith.constant 0 : index
    %57 = vector.load %arg5[%c1_40, %c2_41, %c0_42] : memref<11x12x384xf32, #tpu.memory_space<vmem>>, vector<7x8x384xf32>
    %c7 = arith.constant 7 : index
    %c0_43 = arith.constant 0 : index
    %58 = vector.load %arg3[%c7, %c0_43] : memref<25x384xf32, #tpu.memory_space<vmem>>, vector<1x384xf32>
    %59 = vector.shape_cast %58 : vector<1x384xf32> to vector<384xf32>
    %60 = vector.shape_cast %59 : vector<384xf32> to vector<1x1x384xf32>
    %61 = vector.broadcast %60 : vector<1x1x384xf32> to vector<7x8x384xf32>
    %62 = arith.mulf %57, %61 : vector<7x8x384xf32>
    %63 = arith.addf %56, %62 : vector<7x8x384xf32>
    %c1_44 = arith.constant 1 : index
    %c3_45 = arith.constant 3 : index
    %c0_46 = arith.constant 0 : index
    %64 = vector.load %arg5[%c1_44, %c3_45, %c0_46] : memref<11x12x384xf32, #tpu.memory_space<vmem>>, vector<7x8x384xf32>
    %c8 = arith.constant 8 : index
    %c0_47 = arith.constant 0 : index
    %65 = vector.load %arg3[%c8, %c0_47] : memref<25x384xf32, #tpu.memory_space<vmem>>, vector<1x384xf32>
    %66 = vector.shape_cast %65 : vector<1x384xf32> to vector<384xf32>
    %67 = vector.shape_cast %66 : vector<384xf32> to vector<1x1x384xf32>
    %68 = vector.broadcast %67 : vector<1x1x384xf32> to vector<7x8x384xf32>
    %69 = arith.mulf %64, %68 : vector<7x8x384xf32>
    %70 = arith.addf %63, %69 : vector<7x8x384xf32>
    %c1_48 = arith.constant 1 : index
    %c4_49 = arith.constant 4 : index
    %c0_50 = arith.constant 0 : index
    %71 = vector.load %arg5[%c1_48, %c4_49, %c0_50] : memref<11x12x384xf32, #tpu.memory_space<vmem>>, vector<7x8x384xf32>
    %c9 = arith.constant 9 : index
    %c0_51 = arith.constant 0 : index
    %72 = vector.load %arg3[%c9, %c0_51] : memref<25x384xf32, #tpu.memory_space<vmem>>, vector<1x384xf32>
    %73 = vector.shape_cast %72 : vector<1x384xf32> to vector<384xf32>
    %74 = vector.shape_cast %73 : vector<384xf32> to vector<1x1x384xf32>
    %75 = vector.broadcast %74 : vector<1x1x384xf32> to vector<7x8x384xf32>
    %76 = arith.mulf %71, %75 : vector<7x8x384xf32>
    %77 = arith.addf %70, %76 : vector<7x8x384xf32>
    %c2_52 = arith.constant 2 : index
    %c0_53 = arith.constant 0 : index
    %c0_54 = arith.constant 0 : index
    %78 = vector.load %arg5[%c2_52, %c0_53, %c0_54] : memref<11x12x384xf32, #tpu.memory_space<vmem>>, vector<7x8x384xf32>
    %c10 = arith.constant 10 : index
    %c0_55 = arith.constant 0 : index
    %79 = vector.load %arg3[%c10, %c0_55] : memref<25x384xf32, #tpu.memory_space<vmem>>, vector<1x384xf32>
    %80 = vector.shape_cast %79 : vector<1x384xf32> to vector<384xf32>
    %81 = vector.shape_cast %80 : vector<384xf32> to vector<1x1x384xf32>
    %82 = vector.broadcast %81 : vector<1x1x384xf32> to vector<7x8x384xf32>
    %83 = arith.mulf %78, %82 : vector<7x8x384xf32>
    %84 = arith.addf %77, %83 : vector<7x8x384xf32>
    %c2_56 = arith.constant 2 : index
    %c1_57 = arith.constant 1 : index
    %c0_58 = arith.constant 0 : index
    %85 = vector.load %arg5[%c2_56, %c1_57, %c0_58] : memref<11x12x384xf32, #tpu.memory_space<vmem>>, vector<7x8x384xf32>
    %c11 = arith.constant 11 : index
    %c0_59 = arith.constant 0 : index
    %86 = vector.load %arg3[%c11, %c0_59] : memref<25x384xf32, #tpu.memory_space<vmem>>, vector<1x384xf32>
    %87 = vector.shape_cast %86 : vector<1x384xf32> to vector<384xf32>
    %88 = vector.shape_cast %87 : vector<384xf32> to vector<1x1x384xf32>
    %89 = vector.broadcast %88 : vector<1x1x384xf32> to vector<7x8x384xf32>
    %90 = arith.mulf %85, %89 : vector<7x8x384xf32>
    %91 = arith.addf %84, %90 : vector<7x8x384xf32>
    %c2_60 = arith.constant 2 : index
    %c2_61 = arith.constant 2 : index
    %c0_62 = arith.constant 0 : index
    %92 = vector.load %arg5[%c2_60, %c2_61, %c0_62] : memref<11x12x384xf32, #tpu.memory_space<vmem>>, vector<7x8x384xf32>
    %c12 = arith.constant 12 : index
    %c0_63 = arith.constant 0 : index
    %93 = vector.load %arg3[%c12, %c0_63] : memref<25x384xf32, #tpu.memory_space<vmem>>, vector<1x384xf32>
    %94 = vector.shape_cast %93 : vector<1x384xf32> to vector<384xf32>
    %95 = vector.shape_cast %94 : vector<384xf32> to vector<1x1x384xf32>
    %96 = vector.broadcast %95 : vector<1x1x384xf32> to vector<7x8x384xf32>
    %97 = arith.mulf %92, %96 : vector<7x8x384xf32>
    %98 = arith.addf %91, %97 : vector<7x8x384xf32>
    %c2_64 = arith.constant 2 : index
    %c3_65 = arith.constant 3 : index
    %c0_66 = arith.constant 0 : index
    %99 = vector.load %arg5[%c2_64, %c3_65, %c0_66] : memref<11x12x384xf32, #tpu.memory_space<vmem>>, vector<7x8x384xf32>
    %c13 = arith.constant 13 : index
    %c0_67 = arith.constant 0 : index
    %100 = vector.load %arg3[%c13, %c0_67] : memref<25x384xf32, #tpu.memory_space<vmem>>, vector<1x384xf32>
    %101 = vector.shape_cast %100 : vector<1x384xf32> to vector<384xf32>
    %102 = vector.shape_cast %101 : vector<384xf32> to vector<1x1x384xf32>
    %103 = vector.broadcast %102 : vector<1x1x384xf32> to vector<7x8x384xf32>
    %104 = arith.mulf %99, %103 : vector<7x8x384xf32>
    %105 = arith.addf %98, %104 : vector<7x8x384xf32>
    %c2_68 = arith.constant 2 : index
    %c4_69 = arith.constant 4 : index
    %c0_70 = arith.constant 0 : index
    %106 = vector.load %arg5[%c2_68, %c4_69, %c0_70] : memref<11x12x384xf32, #tpu.memory_space<vmem>>, vector<7x8x384xf32>
    %c14 = arith.constant 14 : index
    %c0_71 = arith.constant 0 : index
    %107 = vector.load %arg3[%c14, %c0_71] : memref<25x384xf32, #tpu.memory_space<vmem>>, vector<1x384xf32>
    %108 = vector.shape_cast %107 : vector<1x384xf32> to vector<384xf32>
    %109 = vector.shape_cast %108 : vector<384xf32> to vector<1x1x384xf32>
    %110 = vector.broadcast %109 : vector<1x1x384xf32> to vector<7x8x384xf32>
    %111 = arith.mulf %106, %110 : vector<7x8x384xf32>
    %112 = arith.addf %105, %111 : vector<7x8x384xf32>
    %c3_72 = arith.constant 3 : index
    %c0_73 = arith.constant 0 : index
    %c0_74 = arith.constant 0 : index
    %113 = vector.load %arg5[%c3_72, %c0_73, %c0_74] : memref<11x12x384xf32, #tpu.memory_space<vmem>>, vector<7x8x384xf32>
    %c15 = arith.constant 15 : index
    %c0_75 = arith.constant 0 : index
    %114 = vector.load %arg3[%c15, %c0_75] : memref<25x384xf32, #tpu.memory_space<vmem>>, vector<1x384xf32>
    %115 = vector.shape_cast %114 : vector<1x384xf32> to vector<384xf32>
    %116 = vector.shape_cast %115 : vector<384xf32> to vector<1x1x384xf32>
    %117 = vector.broadcast %116 : vector<1x1x384xf32> to vector<7x8x384xf32>
    %118 = arith.mulf %113, %117 : vector<7x8x384xf32>
    %119 = arith.addf %112, %118 : vector<7x8x384xf32>
    %c3_76 = arith.constant 3 : index
    %c1_77 = arith.constant 1 : index
    %c0_78 = arith.constant 0 : index
    %120 = vector.load %arg5[%c3_76, %c1_77, %c0_78] : memref<11x12x384xf32, #tpu.memory_space<vmem>>, vector<7x8x384xf32>
    %c16 = arith.constant 16 : index
    %c0_79 = arith.constant 0 : index
    %121 = vector.load %arg3[%c16, %c0_79] : memref<25x384xf32, #tpu.memory_space<vmem>>, vector<1x384xf32>
    %122 = vector.shape_cast %121 : vector<1x384xf32> to vector<384xf32>
    %123 = vector.shape_cast %122 : vector<384xf32> to vector<1x1x384xf32>
    %124 = vector.broadcast %123 : vector<1x1x384xf32> to vector<7x8x384xf32>
    %125 = arith.mulf %120, %124 : vector<7x8x384xf32>
    %126 = arith.addf %119, %125 : vector<7x8x384xf32>
    %c3_80 = arith.constant 3 : index
    %c2_81 = arith.constant 2 : index
    %c0_82 = arith.constant 0 : index
    %127 = vector.load %arg5[%c3_80, %c2_81, %c0_82] : memref<11x12x384xf32, #tpu.memory_space<vmem>>, vector<7x8x384xf32>
    %c17 = arith.constant 17 : index
    %c0_83 = arith.constant 0 : index
    %128 = vector.load %arg3[%c17, %c0_83] : memref<25x384xf32, #tpu.memory_space<vmem>>, vector<1x384xf32>
    %129 = vector.shape_cast %128 : vector<1x384xf32> to vector<384xf32>
    %130 = vector.shape_cast %129 : vector<384xf32> to vector<1x1x384xf32>
    %131 = vector.broadcast %130 : vector<1x1x384xf32> to vector<7x8x384xf32>
    %132 = arith.mulf %127, %131 : vector<7x8x384xf32>
    %133 = arith.addf %126, %132 : vector<7x8x384xf32>
    %c3_84 = arith.constant 3 : index
    %c3_85 = arith.constant 3 : index
    %c0_86 = arith.constant 0 : index
    %134 = vector.load %arg5[%c3_84, %c3_85, %c0_86] : memref<11x12x384xf32, #tpu.memory_space<vmem>>, vector<7x8x384xf32>
    %c18 = arith.constant 18 : index
    %c0_87 = arith.constant 0 : index
    %135 = vector.load %arg3[%c18, %c0_87] : memref<25x384xf32, #tpu.memory_space<vmem>>, vector<1x384xf32>
    %136 = vector.shape_cast %135 : vector<1x384xf32> to vector<384xf32>
    %137 = vector.shape_cast %136 : vector<384xf32> to vector<1x1x384xf32>
    %138 = vector.broadcast %137 : vector<1x1x384xf32> to vector<7x8x384xf32>
    %139 = arith.mulf %134, %138 : vector<7x8x384xf32>
    %140 = arith.addf %133, %139 : vector<7x8x384xf32>
    %c3_88 = arith.constant 3 : index
    %c4_89 = arith.constant 4 : index
    %c0_90 = arith.constant 0 : index
    %141 = vector.load %arg5[%c3_88, %c4_89, %c0_90] : memref<11x12x384xf32, #tpu.memory_space<vmem>>, vector<7x8x384xf32>
    %c19 = arith.constant 19 : index
    %c0_91 = arith.constant 0 : index
    %142 = vector.load %arg3[%c19, %c0_91] : memref<25x384xf32, #tpu.memory_space<vmem>>, vector<1x384xf32>
    %143 = vector.shape_cast %142 : vector<1x384xf32> to vector<384xf32>
    %144 = vector.shape_cast %143 : vector<384xf32> to vector<1x1x384xf32>
    %145 = vector.broadcast %144 : vector<1x1x384xf32> to vector<7x8x384xf32>
    %146 = arith.mulf %141, %145 : vector<7x8x384xf32>
    %147 = arith.addf %140, %146 : vector<7x8x384xf32>
    %c4_92 = arith.constant 4 : index
    %c0_93 = arith.constant 0 : index
    %c0_94 = arith.constant 0 : index
    %148 = vector.load %arg5[%c4_92, %c0_93, %c0_94] : memref<11x12x384xf32, #tpu.memory_space<vmem>>, vector<7x8x384xf32>
    %c20 = arith.constant 20 : index
    %c0_95 = arith.constant 0 : index
    %149 = vector.load %arg3[%c20, %c0_95] : memref<25x384xf32, #tpu.memory_space<vmem>>, vector<1x384xf32>
    %150 = vector.shape_cast %149 : vector<1x384xf32> to vector<384xf32>
    %151 = vector.shape_cast %150 : vector<384xf32> to vector<1x1x384xf32>
    %152 = vector.broadcast %151 : vector<1x1x384xf32> to vector<7x8x384xf32>
    %153 = arith.mulf %148, %152 : vector<7x8x384xf32>
    %154 = arith.addf %147, %153 : vector<7x8x384xf32>
    %c4_96 = arith.constant 4 : index
    %c1_97 = arith.constant 1 : index
    %c0_98 = arith.constant 0 : index
    %155 = vector.load %arg5[%c4_96, %c1_97, %c0_98] : memref<11x12x384xf32, #tpu.memory_space<vmem>>, vector<7x8x384xf32>
    %c21 = arith.constant 21 : index
    %c0_99 = arith.constant 0 : index
    %156 = vector.load %arg3[%c21, %c0_99] : memref<25x384xf32, #tpu.memory_space<vmem>>, vector<1x384xf32>
    %157 = vector.shape_cast %156 : vector<1x384xf32> to vector<384xf32>
    %158 = vector.shape_cast %157 : vector<384xf32> to vector<1x1x384xf32>
    %159 = vector.broadcast %158 : vector<1x1x384xf32> to vector<7x8x384xf32>
    %160 = arith.mulf %155, %159 : vector<7x8x384xf32>
    %161 = arith.addf %154, %160 : vector<7x8x384xf32>
    %c4_100 = arith.constant 4 : index
    %c2_101 = arith.constant 2 : index
    %c0_102 = arith.constant 0 : index
    %162 = vector.load %arg5[%c4_100, %c2_101, %c0_102] : memref<11x12x384xf32, #tpu.memory_space<vmem>>, vector<7x8x384xf32>
    %c22 = arith.constant 22 : index
    %c0_103 = arith.constant 0 : index
    %163 = vector.load %arg3[%c22, %c0_103] : memref<25x384xf32, #tpu.memory_space<vmem>>, vector<1x384xf32>
    %164 = vector.shape_cast %163 : vector<1x384xf32> to vector<384xf32>
    %165 = vector.shape_cast %164 : vector<384xf32> to vector<1x1x384xf32>
    %166 = vector.broadcast %165 : vector<1x1x384xf32> to vector<7x8x384xf32>
    %167 = arith.mulf %162, %166 : vector<7x8x384xf32>
    %168 = arith.addf %161, %167 : vector<7x8x384xf32>
    %c4_104 = arith.constant 4 : index
    %c3_105 = arith.constant 3 : index
    %c0_106 = arith.constant 0 : index
    %169 = vector.load %arg5[%c4_104, %c3_105, %c0_106] : memref<11x12x384xf32, #tpu.memory_space<vmem>>, vector<7x8x384xf32>
    %c23 = arith.constant 23 : index
    %c0_107 = arith.constant 0 : index
    %170 = vector.load %arg3[%c23, %c0_107] : memref<25x384xf32, #tpu.memory_space<vmem>>, vector<1x384xf32>
    %171 = vector.shape_cast %170 : vector<1x384xf32> to vector<384xf32>
    %172 = vector.shape_cast %171 : vector<384xf32> to vector<1x1x384xf32>
    %173 = vector.broadcast %172 : vector<1x1x384xf32> to vector<7x8x384xf32>
    %174 = arith.mulf %169, %173 : vector<7x8x384xf32>
    %175 = arith.addf %168, %174 : vector<7x8x384xf32>
    %c4_108 = arith.constant 4 : index
    %c4_109 = arith.constant 4 : index
    %c0_110 = arith.constant 0 : index
    %176 = vector.load %arg5[%c4_108, %c4_109, %c0_110] : memref<11x12x384xf32, #tpu.memory_space<vmem>>, vector<7x8x384xf32>
    %c24 = arith.constant 24 : index
    %c0_111 = arith.constant 0 : index
    %177 = vector.load %arg3[%c24, %c0_111] : memref<25x384xf32, #tpu.memory_space<vmem>>, vector<1x384xf32>
    %178 = vector.shape_cast %177 : vector<1x384xf32> to vector<384xf32>
    %179 = vector.shape_cast %178 : vector<384xf32> to vector<1x1x384xf32>
    %180 = vector.broadcast %179 : vector<1x1x384xf32> to vector<7x8x384xf32>
    %181 = arith.mulf %176, %180 : vector<7x8x384xf32>
    %182 = arith.addf %175, %181 : vector<7x8x384xf32>
    %c0_112 = arith.constant 0 : index
    %c0_113 = arith.constant 0 : index
    %c0_114 = arith.constant 0 : index
    %c0_115 = arith.constant 0 : index
    %183 = vector.load %arg4[%c0_112, %c0_113, %c0_114, %c0_115] : memref<1x7x8x384xf32, #tpu.memory_space<vmem>>, vector<1x7x8x384xf32>
    %184 = vector.shape_cast %183 : vector<1x7x8x384xf32> to vector<7x8x384xf32>
    %185 = vector.shape_cast %182 : vector<7x8x384xf32> to vector<1x7x8x384xf32>
    tpu.vector_store %arg4[%c0_112, %c0_113, %c0_114, %c0_115], %185 {strides = array<i32>} : memref<1x7x8x384xf32, #tpu.memory_space<vmem>>, vector<1x7x8x384xf32>,
    return
  }
  func.func @transform_0(%arg0: i32, %arg1: i32) -> (i32, i32, i32, i32) {
    %c0_i32 = arith.constant 0 : i32
    %c0_i32_0 = arith.constant 0 : i32
    %c0_i32_1 = arith.constant 0 : i32
    return %arg0, %c0_i32, %c0_i32_0, %arg1 : i32, i32, i32, i32
  }
  func.func @transform_1(%arg0: i32, %arg1: i32) -> (i32, i32) {
    %c0_i32 = arith.constant 0 : i32
    %c0_i32_0 = arith.constant 0 : i32
    return %c0_i32, %arg1 : i32, i32
  }
  func.func @transform_2(%arg0: i32, %arg1: i32) -> (i32, i32, i32, i32) {
    %c0_i32 = arith.constant 0 : i32
    %c0_i32_0 = arith.constant 0 : i32
    %c0_i32_1 = arith.constant 0 : i32
    return %arg0, %c0_i32, %c0_i32_0, %arg1 : i32, i32, i32, i32
  }
}

</mosaic_0001>

<llo_original>
// kernel: tpu_custom_call.1
$region0: #{tpu_custom_call.1}
  #allocation0 [shape = 'u32[]', space=smem, size = 0x4, offset = 0x4, fixed_abs, tag = 'smem constant byte address 0x4 - core index']
  #allocation1 [shape = 'u32[144,128]{1,0:T(1,128)}', space=vmem, size = 0x12000, scoped, tag = 'internal scratch']
  #allocation2 [shape = 'f32[11,12,384]{2,1,0:T(8,128)}', space=vmem, size = 0x42000, scoped, tag = 'scratch operand']
  %s0 = inlined_call_operand.vmem [shape: f32[1,7,7,1152], index: 0, kind: input, shape index: {}]
  %s1 = inlined_call_operand.vmem [shape: f32[25,1152], index: 1, kind: input, shape index: {}]
  %s2 = inlined_call_operand.hbm [shape: f32[1,7,8,1152], index: 2, kind: output, shape index: {}]
  %s3 = sld [smem:[#allocation0]]
  $region87: #{tpu_custom_call.1} parent=0
    _
  %s5 = ssub.s32 1, %s3
  %s6 = scalar_select 0, %s5, %s3
  $region1: #{tpu_custom_call.1} parent=0
    #allocation3 [shape = 'u8[172032]{0}', space=vmem, size = 0x2a000, scoped, tag = 'input window, operand 0']
    #allocation4 [shape = 'u8[98304]{0}', space=vmem, size = 0x18000, scoped, tag = 'input window, operand 1']
    #allocation5 [shape = 'u8[172032]{0}', space=vmem, size = 0x2a000, scoped, tag = 'output window, operand 0']
    #allocation6 [shape = 's32[2]{0}', space=sflag, size = 0x8, scoped, tag = 'scoped memory for tpu_custom_call.1']
    %7 = vsyncpa [#allocation6], 0
    %s8 = scalar_lea.sflag [#allocation6], 1
    %9 = vsyncpa %s8, 0
    loop: start=0, step=1, limit=5
    $region2: #{tpu_custom_call.1} parent=1 // loop_pre_header
      _
    $region3: #{tpu_custom_call.1} parent=1 // loop_header
      %s11 = sphi 0, %s15
      %p12 = scmp.ge.s32.totalorder %s11, 5
      %s18 = sphi 0, %s30
      %s19 = sphi 0, %s26
      %s20 = sphi 0, %s18
      %s21 = sphi 0, %s19
      %s22 = sphi 0, %s20
      %s23 = sphi 0, %s21
      %s35 = sphi 0, %s37
      %s38 = sphi 0, %s35
      %s39 = sphi 0, %s38
      %s55 = sphi 0, %s39
      %s61 = sphi 0, %s63
      %s64 = sphi 0, %s61
      %s65 = sphi 0, %s64
      %s81 = sphi 0, %s65
      %s89 = sphi 0, %s91
      %s92 = sphi 0, %s89
      %s93 = sphi 0, %s92
      %s109 = sphi 0, %s93
    $region4: #{tpu_custom_call.1} parent=1 // loop_header_branch
      %14 = sbr.rel (%p12) target = $region8
    $region5: #{tpu_custom_call.1} parent=1 // loop_body
      %s16 = ssub.s32 %s11, 1
      %s17 = ssub.s32 %s11, 2
      %s24 = sadd.s32 1, %s19
      %p25 = scmp.ge.s32.totalorder %s24, 3
      %s26 = scalar_select %p25, 0, %s24
      %s27 = sadd.s32 1, %s18
      %s28 = scalar_select %p25, %s27, %s18
      %p29 = scmp.ge.s32.totalorder %s28, 1
      %s30 = scalar_select %p29, 0, %s28
      %s31 = ssub.s32 %s18, %s30
      %s32 = ssub.s32 %s19, %s26
      %s33 = sor.u32 %s31, %s32
      %p34 = scmp.eq.s32.totalorder %s33, 0
      %s36 = sadd.s32 %s35, 1
      %s37 = scalar_select %p34, %s35, %s36
      %p40 = pneg %p34
      %p41 = scmp.eq.s32.totalorder %s11, 2
      %p42 = por %p40, %p41
      %p43 = scmp.ne.s32.totalorder %s35, %s38
      %p44 = scmp.eq.s32.totalorder %s11, 0
      %p45 = por %p43, %p44
      %p46 = scmp.ne.s32.totalorder %s35, %s38
      %p47 = scmp.eq.s32.totalorder %s16, 2
      %p48 = por %p46, %p47
      %p49 = scmp.ne.s32.totalorder %s38, %s39
      %p50 = scmp.eq.s32.totalorder %s16, 0
      %p51 = por %p49, %p50
      %p52 = scmp.ne.s32.totalorder %s38, %s39
      %p53 = scmp.eq.s32.totalorder %s17, 2
      %p54 = por %p52, %p53
      %p56 = scmp.ne.s32.totalorder %s39, %s55
      %p57 = scmp.eq.s32.totalorder %s17, 0
      %p58 = por %p56, %p57
      %s59 = ssub.s32 %s19, %s26
      %p60 = scmp.eq.s32.totalorder %s59, 0
      %s62 = sadd.s32 %s61, 1
      %s63 = scalar_select %p60, %s61, %s62
      %p66 = pneg %p60
      %p67 = scmp.eq.s32.totalorder %s11, 2
      %p68 = por %p66, %p67
      %p69 = scmp.ne.s32.totalorder %s61, %s64
      %p70 = scmp.eq.s32.totalorder %s11, 0
      %p71 = por %p69, %p70
      %p72 = scmp.ne.s32.totalorder %s61, %s64
      %p73 = scmp.eq.s32.totalorder %s16, 2
      %p74 = por %p72, %p73
      %p75 = scmp.ne.s32.totalorder %s64, %s65
      %p76 = scmp.eq.s32.totalorder %s16, 0
      %p77 = por %p75, %p76
      %p78 = scmp.ne.s32.totalorder %s64, %s65
      %p79 = scmp.eq.s32.totalorder %s17, 2
      %p80 = por %p78, %p79
      %p82 = scmp.ne.s32.totalorder %s65, %s81
      %p83 = scmp.eq.s32.totalorder %s17, 0
      %p84 = por %p82, %p83
      %s85 = ssub.s32 %s18, %s30
      %s86 = ssub.s32 %s19, %s26
      %s87 = sor.u32 %s85, %s86
      %p88 = scmp.eq.s32.totalorder %s87, 0
      %s90 = sadd.s32 %s89, 1
      %s91 = scalar_select %p88, %s89, %s90
      %p94 = pneg %p88
      %p95 = scmp.eq.s32.totalorder %s11, 2
      %p96 = por %p94, %p95
      %p97 = scmp.ne.s32.totalorder %s89, %s92
      %p98 = scmp.eq.s32.totalorder %s11, 0
      %p99 = por %p97, %p98
      %p100 = scmp.ne.s32.totalorder %s89, %s92
      %p101 = scmp.eq.s32.totalorder %s16, 2
      %p102 = por %p100, %p101
      %p103 = scmp.ne.s32.totalorder %s92, %s93
      %p104 = scmp.eq.s32.totalorder %s16, 0
      %p105 = por %p103, %p104
      %p106 = scmp.ne.s32.totalorder %s92, %s93
      %p107 = scmp.eq.s32.totalorder %s17, 2
      %p108 = por %p106, %p107
      %p110 = scmp.ne.s32.totalorder %s93, %s109
      %p111 = scmp.eq.s32.totalorder %s17, 0
      %p112 = por %p110, %p111
      %p113 = scmp.le.s32.totalorder 1, %s11
      %p114 = scmp.lt.s32.totalorder %s11, 4
      %p115 = pnand %p113, %p114
      %p116 = pneg %p115
      // Predicated region
      $region9: #{tpu_custom_call.1} parent=5 // pred_check
        _
      $region10: #{tpu_custom_call.1} parent=5 // pred_check_branch
        %118 = sbr.rel (%p115) target = $region12
      $region11: #{tpu_custom_call.1} parent=5 // pred_region
        %s119 = ssub.s32 %s11, 1
      $region12: #{tpu_custom_call.1} parent=5 // pred_fallthru
        _
      %p120 = scmp.lt.s32.totalorder %s11, 3
      // Predicated region
      $region13: #{tpu_custom_call.1} parent=5 // pred_check
        %p121 = pneg %p120
      $region14: #{tpu_custom_call.1} parent=5 // pred_check_branch
        %123 = sbr.rel (%p121) target = $region16
      $region15: #{tpu_custom_call.1} parent=5 // pred_region
        // Predicated region
        $region17: #{tpu_custom_call.1} parent=15 // pred_check
          %p124 = pneg %p45
        $region18: #{tpu_custom_call.1} parent=15 // pred_check_branch
          %126 = sbr.rel (%p124) target = $region20
        $region19: #{tpu_custom_call.1} parent=15 // pred_region
          %s127 = sand.u32 %s35, 1
          %s128 = sand.u32 %s35, 1
          %s129 = smul.addr %s128, 168
          %s130 = scalar_lea.vmem [#allocation3], %s129
          %s131 = smul.u32 3, %s19
          %s132 = smul.addr %s18, 63
          %s133 = sadd.s32 %s131, %s132
          %s134 = smul.addr %s133, 8
          %s135 = scalar_lea.vmem %s0, %s134
          // Predicated region
          $region21: #{tpu_custom_call.1} parent=19 // pred_check
            _
          $region22: #{tpu_custom_call.1} parent=19 // pred_check_branch
            %137 = sbr.rel (0) target = $region24
          $region23: #{tpu_custom_call.1} parent=19 // pred_region
            // Predicated region
            $region25: #{tpu_custom_call.1} parent=23 // pred_check
              _
            $region26: #{tpu_custom_call.1} parent=23 // pred_check_branch
              %139 = sbr.rel (0) target = $region28
            $region27: #{tpu_custom_call.1} parent=23 // pred_region
              loop: start=0, step=1, limit=1
              $region29: #{tpu_custom_call.1} parent=27 // loop_pre_header
                _
              $region30: #{tpu_custom_call.1} parent=27 // loop_header
                %s141 = sphi 0, %s145
                %p142 = scmp.ge.s32.totalorder %s141, 1
                %s146 = sphi %s135, %s135
                %s147 = sphi %s130, %s130
              $region31: #{tpu_custom_call.1} parent=27 // loop_header_branch
                %144 = sbr.rel (%p142) target = $region35
              $region32: #{tpu_custom_call.1} parent=27 // loop_body
                %v148 = vld [vmem:[%s146] sm:$0xff]
                %149 = vst [vmem:[%s147] sm:$0xff] %v148
                %v150 = vld [vmem:[%s146 + $0x8] sm:$0xff]
                %151 = vst [vmem:[%s147 + $0x8] sm:$0xff] %v150
                %v152 = vld [vmem:[%s146 + $0x10] sm:$0xff]
                %153 = vst [vmem:[%s147 + $0x10] sm:$0xff] %v152
                %v154 = vld [vmem:[%s146 + $0x48] sm:$0xff]
                %155 = vst [vmem:[%s147 + $0x18] sm:$0xff] %v154
                %v156 = vld [vmem:[%s146 + $0x50] sm:$0xff]
                %157 = vst [vmem:[%s147 + $0x20] sm:$0xff] %v156
                %v158 = vld [vmem:[%s146 + $0x58] sm:$0xff]
                %159 = vst [vmem:[%s147 + $0x28] sm:$0xff] %v158
                %v160 = vld [vmem:[%s146 + $0x90] sm:$0xff]
                %161 = vst [vmem:[%s147 + $0x30] sm:$0xff] %v160
                %v162 = vld [vmem:[%s146 + $0x98] sm:$0xff]
                %163 = vst [vmem:[%s147 + $0x38] sm:$0xff] %v162
                %v164 = vld [vmem:[%s146 + $0xa0] sm:$0xff]
                %165 = vst [vmem:[%s147 + $0x40] sm:$0xff] %v164
                %v166 = vld [vmem:[%s146 + $0xd8] sm:$0xff]
                %167 = vst [vmem:[%s147 + $0x48] sm:$0xff] %v166
                %v168 = vld [vmem:[%s146 + $0xe0] sm:$0xff]
                %169 = vst [vmem:[%s147 + $0x50] sm:$0xff] %v168
                %v170 = vld [vmem:[%s146 + $0xe8] sm:$0xff]
                %171 = vst [vmem:[%s147 + $0x58] sm:$0xff] %v170
                %v172 = vld [vmem:[%s146 + $0x120] sm:$0xff]
                %173 = vst [vmem:[%s147 + $0x60] sm:$0xff] %v172
                %v174 = vld [vmem:[%s146 + $0x128] sm:$0xff]
                %175 = vst [vmem:[%s147 + $0x68] sm:$0xff] %v174
                %v176 = vld [vmem:[%s146 + $0x130] sm:$0xff]
                %177 = vst [vmem:[%s147 + $0x70] sm:$0xff] %v176
                %v178 = vld [vmem:[%s146 + $0x168] sm:$0xff]
                %179 = vst [vmem:[%s147 + $0x78] sm:$0xff] %v178
                %v180 = vld [vmem:[%s146 + $0x170] sm:$0xff]
                %181 = vst [vmem:[%s147 + $0x80] sm:$0xff] %v180
                %v182 = vld [vmem:[%s146 + $0x178] sm:$0xff]
                %183 = vst [vmem:[%s147 + $0x88] sm:$0xff] %v182
                %v184 = vld [vmem:[%s146 + $0x1b0] sm:$0xff]
                %185 = vst [vmem:[%s147 + $0x90] sm:$0xff] %v184
                %v186 = vld [vmem:[%s146 + $0x1b8] sm:$0xff]
                %187 = vst [vmem:[%s147 + $0x98] sm:$0xff] %v186
                %v188 = vld [vmem:[%s146 + $0x1c0] sm:$0xff]
                %189 = vst [vmem:[%s147 + $0xa0] sm:$0xff] %v188
              $region33: #{tpu_custom_call.1} parent=27 // loop_footer
                %s145 = sadd.s32 1, %s141
              $region34: #{tpu_custom_call.1} parent=27 // loop_footer_branch
                %140 = sbr.rel target = $region30
              $region35: #{tpu_custom_call.1} parent=27 // loop_exit
                _
            $region28: #{tpu_custom_call.1} parent=23 // pred_fallthru
              _
            // Predicated region
            $region36: #{tpu_custom_call.1} parent=23 // pred_check
              _
            $region37: #{tpu_custom_call.1} parent=23 // pred_check_branch
              %191 = sbr.rel target = $region39
            $region38: #{tpu_custom_call.1} parent=23 // pred_region
              _
            $region39: #{tpu_custom_call.1} parent=23 // pred_fallthru
              _
          $region24: #{tpu_custom_call.1} parent=19 // pred_fallthru
            _
          %192 = vnop
        $region20: #{tpu_custom_call.1} parent=15 // pred_fallthru
          _
        // Predicated region
        $region40: #{tpu_custom_call.1} parent=15 // pred_check
          %p193 = pneg %p71
        $region41: #{tpu_custom_call.1} parent=15 // pred_check_branch
          %195 = sbr.rel (%p193) target = $region43
        $region42: #{tpu_custom_call.1} parent=15 // pred_region
          %s196 = sand.u32 %s61, 1
          %s197 = sand.u32 %s61, 1
          %s198 = smul.addr %s197, 96
          %s199 = scalar_lea.vmem [#allocation4], %s198
          %s200 = smul.u32 3, %s19
          %s201 = smul.addr %s200, 8
          %s202 = scalar_lea.vmem %s1, %s201
          // Predicated region
          $region44: #{tpu_custom_call.1} parent=42 // pred_check
            _
          $region45: #{tpu_custom_call.1} parent=42 // pred_check_branch
            %204 = sbr.rel (0) target = $region47
          $region46: #{tpu_custom_call.1} parent=42 // pred_region
            // Predicated region
            $region48: #{tpu_custom_call.1} parent=46 // pred_check
              _
            $region49: #{tpu_custom_call.1} parent=46 // pred_check_branch
              %206 = sbr.rel (0) target = $region51
            $region50: #{tpu_custom_call.1} parent=46 // pred_region
              loop: start=0, step=1, limit=1
              $region52: #{tpu_custom_call.1} parent=50 // loop_pre_header
                _
              $region53: #{tpu_custom_call.1} parent=50 // loop_header
                %s208 = sphi 0, %s212
                %p209 = scmp.ge.s32.totalorder %s208, 1
                %s213 = sphi %s202, %s202
                %s214 = sphi %s199, %s199
              $region54: #{tpu_custom_call.1} parent=50 // loop_header_branch
                %211 = sbr.rel (%p209) target = $region58
              $region55: #{tpu_custom_call.1} parent=50 // loop_body
                %v215 = vld [vmem:[%s213] sm:$0xff]
                %216 = vst [vmem:[%s214] sm:$0xff] %v215
                %v217 = vld [vmem:[%s213 + $0x8] sm:$0xff]
                %218 = vst [vmem:[%s214 + $0x8] sm:$0xff] %v217
                %v219 = vld [vmem:[%s213 + $0x10] sm:$0xff]
                %220 = vst [vmem:[%s214 + $0x10] sm:$0xff] %v219
                %v221 = vld [vmem:[%s213 + $0x48] sm:$0xff]
                %222 = vst [vmem:[%s214 + $0x18] sm:$0xff] %v221
                %v223 = vld [vmem:[%s213 + $0x50] sm:$0xff]
                %224 = vst [vmem:[%s214 + $0x20] sm:$0xff] %v223
                %v225 = vld [vmem:[%s213 + $0x58] sm:$0xff]
                %226 = vst [vmem:[%s214 + $0x28] sm:$0xff] %v225
                %v227 = vld [vmem:[%s213 + $0x90] sm:$0xff]
                %228 = vst [vmem:[%s214 + $0x30] sm:$0xff] %v227
                %v229 = vld [vmem:[%s213 + $0x98] sm:$0xff]
                %230 = vst [vmem:[%s214 + $0x38] sm:$0xff] %v229
                %v231 = vld [vmem:[%s213 + $0xa0] sm:$0xff]
                %232 = vst [vmem:[%s214 + $0x40] sm:$0xff] %v231
                %v233 = vld [vmem:[%s213 + $0xd8] sm:$0xff]
                %234 = vst [vmem:[%s214 + $0x48] sm:$0xff] %v233
                %v235 = vld [vmem:[%s213 + $0xe0] sm:$0xff]
                %236 = vst [vmem:[%s214 + $0x50] sm:$0xff] %v235
                %v237 = vld [vmem:[%s213 + $0xe8] sm:$0xff]
                %238 = vst [vmem:[%s214 + $0x58] sm:$0xff] %v237
              $region56: #{tpu_custom_call.1} parent=50 // loop_footer
                %s212 = sadd.s32 1, %s208
              $region57: #{tpu_custom_call.1} parent=50 // loop_footer_branch
                %207 = sbr.rel target = $region53
              $region58: #{tpu_custom_call.1} parent=50 // loop_exit
                _
            $region51: #{tpu_custom_call.1} parent=46 // pred_fallthru
              _
            // Predicated region
            $region59: #{tpu_custom_call.1} parent=46 // pred_check
              _
            $region60: #{tpu_custom_call.1} parent=46 // pred_check_branch
              %240 = sbr.rel target = $region62
            $region61: #{tpu_custom_call.1} parent=46 // pred_region
              _
            $region62: #{tpu_custom_call.1} parent=46 // pred_fallthru
              _
          $region47: #{tpu_custom_call.1} parent=42 // pred_fallthru
            _
          %241 = vnop
        $region43: #{tpu_custom_call.1} parent=15 // pred_fallthru
          _
      $region16: #{tpu_custom_call.1} parent=5 // pred_fallthru
        _
      %p242 = scmp.le.s32.totalorder 1, %s11
      %p243 = scmp.lt.s32.totalorder %s11, 4
      %p244 = pnand %p242, %p243
      %p245 = pneg %p244
      // Predicated region
      $region63: #{tpu_custom_call.1} parent=5 // pred_check
        _
      $region64: #{tpu_custom_call.1} parent=5 // pred_check_branch
        %247 = sbr.rel (%p244) target = $region66
      $region65: #{tpu_custom_call.1} parent=5 // pred_region
        %s248 = ssub.s32 %s11, 1
        %s249 = sand.u32 %s38, 1
        %s250 = sand.u32 %s38, 1
        %s251 = smul.addr %s250, 168
        %s252 = scalar_lea.vmem [#allocation3], %s251
        // Predicated region
        $region67: #{tpu_custom_call.1} parent=65 // pred_check
          %p253 = pneg %p51
        $region68: #{tpu_custom_call.1} parent=65 // pred_check_branch
          %255 = sbr.rel (%p253) target = $region70
        $region69: #{tpu_custom_call.1} parent=65 // pred_region
          _
        $region70: #{tpu_custom_call.1} parent=65 // pred_fallthru
          _
        %s256 = sand.u32 %s64, 1
        %s257 = sand.u32 %s64, 1
        %s258 = smul.addr %s257, 96
        %s259 = scalar_lea.vmem [#allocation4], %s258
        // Predicated region
        $region71: #{tpu_custom_call.1} parent=65 // pred_check
          %p260 = pneg %p77
        $region72: #{tpu_custom_call.1} parent=65 // pred_check_branch
          %262 = sbr.rel (%p260) target = $region74
        $region73: #{tpu_custom_call.1} parent=65 // pred_region
          _
        $region74: #{tpu_custom_call.1} parent=65 // pred_fallthru
          _
        %s263 = sand.u32 %s38, 1
        %s264 = sand.u32 %s38, 1
        %s265 = smul.addr %s264, 168
        %s266 = scalar_lea.vmem [#allocation3], %s265
        %p267 = pneg %p51
        %p268 = pneg %p48
        %s269 = sand.u32 %s64, 1
        %s270 = sand.u32 %s64, 1
        %s271 = smul.addr %s270, 96
        %s272 = scalar_lea.vmem [#allocation4], %s271
        %p273 = pneg %p77
        %p274 = pneg %p74
        %p275 = pneg %p105
        %p276 = pneg %p102
        %s277 = sand.u32 %s92, 1
        %s278 = scalar_lea.sflag [#allocation6], %s277
        %s279 = sand.u32 %s92, 1
        %s280 = smul.addr %s279, 168
        %s281 = scalar_lea.vmem [#allocation5], %s280
        %s282 = smul.u32 3, %s21
        %s283 = smul.u32 3, %s21
        %s284 = smul.u32 3, %s21
        %285 = vst [vmem:[#allocation2] sm:$0xff] 0.0
        %286 = vst [vmem:[#allocation2 + $0x8] sm:$0xff] 0.0
        %287 = vst [vmem:[#allocation2 + $0x10] sm:$0xff] 0.0
        %288 = vst [vmem:[#allocation2 + $0x18] sm:$0xf] 0.0
        %289 = vst [vmem:[#allocation2 + $0x20] sm:$0xf] 0.0
        %290 = vst [vmem:[#allocation2 + $0x28] sm:$0xf] 0.0
        %291 = vst [vmem:[#allocation2 + $0x30] sm:$0xff] 0.0
        %292 = vst [vmem:[#allocation2 + $0x38] sm:$0xff] 0.0
        %293 = vst [vmem:[#allocation2 + $0x40] sm:$0xff] 0.0
        %294 = vst [vmem:[#allocation2 + $0x48] sm:$0xf] 0.0
        %295 = vst [vmem:[#allocation2 + $0x50] sm:$0xf] 0.0
        %296 = vst [vmem:[#allocation2 + $0x58] sm:$0xf] 0.0
        %297 = vst [vmem:[#allocation2 + $0x60] sm:$0xff] 0.0
        %298 = vst [vmem:[#allocation2 + $0x68] sm:$0xff] 0.0
        %299 = vst [vmem:[#allocation2 + $0x70] sm:$0xff] 0.0
        %300 = vst [vmem:[#allocation2 + $0x78] sm:$0xf] 0.0
        %301 = vst [vmem:[#allocation2 + $0x80] sm:$0xf] 0.0
        %302 = vst [vmem:[#allocation2 + $0x88] sm:$0xf] 0.0
        %303 = vst [vmem:[#allocation2 + $0x90] sm:$0xff] 0.0
        %304 = vst [vmem:[#allocation2 + $0x98] sm:$0xff] 0.0
        %305 = vst [vmem:[#allocation2 + $0xa0] sm:$0xff] 0.0
        %306 = vst [vmem:[#allocation2 + $0xa8] sm:$0xf] 0.0
        %307 = vst [vmem:[#allocation2 + $0xb0] sm:$0xf] 0.0
        %308 = vst [vmem:[#allocation2 + $0xb8] sm:$0xf] 0.0
        %309 = vst [vmem:[#allocation2 + $0xc0] sm:$0xff] 0.0
        %310 = vst [vmem:[#allocation2 + $0xc8] sm:$0xff] 0.0
        %311 = vst [vmem:[#allocation2 + $0xd0] sm:$0xff] 0.0
        %312 = vst [vmem:[#allocation2 + $0xd8] sm:$0xf] 0.0
        %313 = vst [vmem:[#allocation2 + $0xe0] sm:$0xf] 0.0
        %314 = vst [vmem:[#allocation2 + $0xe8] sm:$0xf] 0.0
        %315 = vst [vmem:[#allocation2 + $0xf0] sm:$0xff] 0.0
        %316 = vst [vmem:[#allocation2 + $0xf8] sm:$0xff] 0.0
        %317 = vst [vmem:[#allocation2 + $0x100] sm:$0xff] 0.0
        %318 = vst [vmem:[#allocation2 + $0x108] sm:$0xf] 0.0
        %319 = vst [vmem:[#allocation2 + $0x110] sm:$0xf] 0.0
        %320 = vst [vmem:[#allocation2 + $0x118] sm:$0xf] 0.0
        %321 = vst [vmem:[#allocation2 + $0x120] sm:$0xff] 0.0
        %322 = vst [vmem:[#allocation2 + $0x128] sm:$0xff] 0.0
        %323 = vst [vmem:[#allocation2 + $0x130] sm:$0xff] 0.0
        %324 = vst [vmem:[#allocation2 + $0x138] sm:$0xf] 0.0
        %325 = vst [vmem:[#allocation2 + $0x140] sm:$0xf] 0.0
        %326 = vst [vmem:[#allocation2 + $0x148] sm:$0xf] 0.0
        %327 = vst [vmem:[#allocation2 + $0x150] sm:$0xff] 0.0
        %328 = vst [vmem:[#allocation2 + $0x158] sm:$0xff] 0.0
        %329 = vst [vmem:[#allocation2 + $0x160] sm:$0xff] 0.0
        %330 = vst [vmem:[#allocation2 + $0x168] sm:$0xf] 0.0
        %331 = vst [vmem:[#allocation2 + $0x170] sm:$0xf] 0.0
        %332 = vst [vmem:[#allocation2 + $0x178] sm:$0xf] 0.0
        %333 = vst [vmem:[#allocation2 + $0x180] sm:$0xff] 0.0
        %334 = vst [vmem:[#allocation2 + $0x188] sm:$0xff] 0.0
        %335 = vst [vmem:[#allocation2 + $0x190] sm:$0xff] 0.0
        %336 = vst [vmem:[#allocation2 + $0x198] sm:$0xf] 0.0
        %337 = vst [vmem:[#allocation2 + $0x1a0] sm:$0xf] 0.0
        %338 = vst [vmem:[#allocation2 + $0x1a8] sm:$0xf] 0.0
        %339 = vst [vmem:[#allocation2 + $0x1b0] sm:$0xff] 0.0
        %340 = vst [vmem:[#allocation2 + $0x1b8] sm:$0xff] 0.0
        %341 = vst [vmem:[#allocation2 + $0x1c0] sm:$0xff] 0.0
        %342 = vst [vmem:[#allocation2 + $0x1c8] sm:$0xf] 0.0
        %343 = vst [vmem:[#allocation2 + $0x1d0] sm:$0xf] 0.0
        %344 = vst [vmem:[#allocation2 + $0x1d8] sm:$0xf] 0.0
        %345 = vst [vmem:[#allocation2 + $0x1e0] sm:$0xff] 0.0
        %346 = vst [vmem:[#allocation2 + $0x1e8] sm:$0xff] 0.0
        %347 = vst [vmem:[#allocation2 + $0x1f0] sm:$0xff] 0.0
        %348 = vst [vmem:[#allocation2 + $0x1f8] sm:$0xf] 0.0
        %349 = vst [vmem:[#allocation2 + $0x200] sm:$0xf] 0.0
        %350 = vst [vmem:[#allocation2 + $0x208] sm:$0xf] 0.0
        %v351 = vld [vmem:[%s252] sm:$0x7f]
        %v352 = vld [vmem:[%s252 + $0x8] sm:$0x7f]
        %v353 = vld [vmem:[%s252 + $0x10] sm:$0x7f]
        %v354 = vld [vmem:[%s252 + $0x18] sm:$0x7f]
        %v355 = vld [vmem:[%s252 + $0x20] sm:$0x7f]
        %v356 = vld [vmem:[%s252 + $0x28] sm:$0x7f]
        %v357 = vld [vmem:[%s252 + $0x30] sm:$0x7f]
        %v358 = vld [vmem:[%s252 + $0x38] sm:$0x7f]
        %v359 = vld [vmem:[%s252 + $0x40] sm:$0x7f]
        %v360 = vld [vmem:[%s252 + $0x48] sm:$0x7f]
        %v361 = vld [vmem:[%s252 + $0x50] sm:$0x7f]
        %v362 = vld [vmem:[%s252 + $0x58] sm:$0x7f]
        %v363 = vld [vmem:[%s252 + $0x60] sm:$0x7f]
        %v364 = vld [vmem:[%s252 + $0x68] sm:$0x7f]
        %v365 = vld [vmem:[%s252 + $0x70] sm:$0x7f]
        %v366 = vld [vmem:[%s252 + $0x78] sm:$0x7f]
        %v367 = vld [vmem:[%s252 + $0x80] sm:$0x7f]
        %v368 = vld [vmem:[%s252 + $0x88] sm:$0x7f]
        %v369 = vld [vmem:[%s252 + $0x90] sm:$0x7f]
        %v370 = vld [vmem:[%s252 + $0x98] sm:$0x7f]
        %v371 = vld [vmem:[%s252 + $0xa0] sm:$0x7f]
        %v372 = vmax.f32 %v351, 0.0
        %v373 = vmax.f32 %v352, 0.0
        %v374 = vmax.f32 %v353, 0.0
        %v375 = vmax.f32 %v354, 0.0
        %v376 = vmax.f32 %v355, 0.0
        %v377 = vmax.f32 %v356, 0.0
        %v378 = vmax.f32 %v357, 0.0
        %v379 = vmax.f32 %v358, 0.0
        %v380 = vmax.f32 %v359, 0.0
        %v381 = vmax.f32 %v360, 0.0
        %v382 = vmax.f32 %v361, 0.0
        %v383 = vmax.f32 %v362, 0.0
        %v384 = vmax.f32 %v363, 0.0
        %v385 = vmax.f32 %v364, 0.0
        %v386 = vmax.f32 %v365, 0.0
        %v387 = vmax.f32 %v366, 0.0
        %v388 = vmax.f32 %v367, 0.0
        %v389 = vmax.f32 %v368, 0.0
        %v390 = vmax.f32 %v369, 0.0
        %v391 = vmax.f32 %v370, 0.0
        %v392 = vmax.f32 %v371, 0.0
        %v414 = vrot.slane %v372, 6
        %v415 = vrot.slane %v373, 6
        %v416 = vrot.slane %v374, 6
        %v417 = vrot.slane %v375, 6
        %v418 = vrot.slane %v376, 6
        %v419 = vrot.slane %v377, 6
        %v420 = vrot.slane %v378, 6
        %v421 = vrot.slane %v379, 6
        %v422 = vrot.slane %v380, 6
        %v423 = vrot.slane %v381, 6
        %v424 = vrot.slane %v382, 6
        %v425 = vrot.slane %v383, 6
        %v426 = vrot.slane %v384, 6
        %v427 = vrot.slane %v385, 6
        %v428 = vrot.slane %v386, 6
        %v429 = vrot.slane %v387, 6
        %v430 = vrot.slane %v388, 6
        %v431 = vrot.slane %v389, 6
        %v432 = vrot.slane %v390, 6
        %v433 = vrot.slane %v391, 6
        %v434 = vrot.slane %v392, 6
        %s456 = scalar_lea.vmem [#allocation2], 96
        %457 = vst [vmem:[%s456] sm:$0xfc] %v414
        %458 = vst [vmem:[%s456 + $0x8] sm:$0xfc] %v415
        %459 = vst [vmem:[%s456 + $0x10] sm:$0xfc] %v416
        %460 = vst [vmem:[%s456 + $0x18] sm:$0x1] %v414
        %461 = vst [vmem:[%s456 + $0x20] sm:$0x1] %v415
        %462 = vst [vmem:[%s456 + $0x28] sm:$0x1] %v416
        %463 = vst [vmem:[%s456 + $0x30] sm:$0xfc] %v417
        %464 = vst [vmem:[%s456 + $0x38] sm:$0xfc] %v418
        %465 = vst [vmem:[%s456 + $0x40] sm:$0xfc] %v419
        %466 = vst [vmem:[%s456 + $0x48] sm:$0x1] %v417
        %467 = vst [vmem:[%s456 + $0x50] sm:$0x1] %v418
        %468 = vst [vmem:[%s456 + $0x58] sm:$0x1] %v419
        %469 = vst [vmem:[%s456 + $0x60] sm:$0xfc] %v420
        %470 = vst [vmem:[%s456 + $0x68] sm:$0xfc] %v421
        %471 = vst [vmem:[%s456 + $0x70] sm:$0xfc] %v422
        %472 = vst [vmem:[%s456 + $0x78] sm:$0x1] %v420
        %473 = vst [vmem:[%s456 + $0x80] sm:$0x1] %v421
        %474 = vst [vmem:[%s456 + $0x88] sm:$0x1] %v422
        %475 = vst [vmem:[%s456 + $0x90] sm:$0xfc] %v423
        %476 = vst [vmem:[%s456 + $0x98] sm:$0xfc] %v424
        %477 = vst [vmem:[%s456 + $0xa0] sm:$0xfc] %v425
        %478 = vst [vmem:[%s456 + $0xa8] sm:$0x1] %v423
        %479 = vst [vmem:[%s456 + $0xb0] sm:$0x1] %v424
        %480 = vst [vmem:[%s456 + $0xb8] sm:$0x1] %v425
        %481 = vst [vmem:[%s456 + $0xc0] sm:$0xfc] %v426
        %482 = vst [vmem:[%s456 + $0xc8] sm:$0xfc] %v427
        %483 = vst [vmem:[%s456 + $0xd0] sm:$0xfc] %v428
        %484 = vst [vmem:[%s456 + $0xd8] sm:$0x1] %v426
        %485 = vst [vmem:[%s456 + $0xe0] sm:$0x1] %v427
        %486 = vst [vmem:[%s456 + $0xe8] sm:$0x1] %v428
        %487 = vst [vmem:[%s456 + $0xf0] sm:$0xfc] %v429
        %488 = vst [vmem:[%s456 + $0xf8] sm:$0xfc] %v430
        %489 = vst [vmem:[%s456 + $0x100] sm:$0xfc] %v431
        %490 = vst [vmem:[%s456 + $0x108] sm:$0x1] %v429
        %491 = vst [vmem:[%s456 + $0x110] sm:$0x1] %v430
        %492 = vst [vmem:[%s456 + $0x118] sm:$0x1] %v431
        %493 = vst [vmem:[%s456 + $0x120] sm:$0xfc] %v432
        %494 = vst [vmem:[%s456 + $0x128] sm:$0xfc] %v433
        %495 = vst [vmem:[%s456 + $0x130] sm:$0xfc] %v434
        %496 = vst [vmem:[%s456 + $0x138] sm:$0x1] %v432
        %497 = vst [vmem:[%s456 + $0x140] sm:$0x1] %v433
        %498 = vst [vmem:[%s456 + $0x148] sm:$0x1] %v434
        %v499 = vld [vmem:[#allocation2] sm:$0xff]
        %v500 = vld [vmem:[#allocation2 + $0x8] sm:$0xff]
        %v501 = vld [vmem:[#allocation2 + $0x10] sm:$0xff]
        %v502 = vld [vmem:[#allocation2 + $0x30] sm:$0xff]
        %v503 = vld [vmem:[#allocation2 + $0x38] sm:$0xff]
        %v504 = vld [vmem:[#allocation2 + $0x40] sm:$0xff]
        %v505 = vld [vmem:[#allocation2 + $0x60] sm:$0xff]
        %v506 = vld [vmem:[#allocation2 + $0x68] sm:$0xff]
        %v507 = vld [vmem:[#allocation2 + $0x70] sm:$0xff]
        %v508 = vld [vmem:[#allocation2 + $0x90] sm:$0xff]
        %v509 = vld [vmem:[#allocation2 + $0x98] sm:$0xff]
        %v510 = vld [vmem:[#allocation2 + $0xa0] sm:$0xff]
        %v511 = vld [vmem:[#allocation2 + $0xc0] sm:$0xff]
        %v512 = vld [vmem:[#allocation2 + $0xc8] sm:$0xff]
        %v513 = vld [vmem:[#allocation2 + $0xd0] sm:$0xff]
        %v514 = vld [vmem:[#allocation2 + $0xf0] sm:$0xff]
        %v515 = vld [vmem:[#allocation2 + $0xf8] sm:$0xff]
        %v516 = vld [vmem:[#allocation2 + $0x100] sm:$0xff]
        %v517 = vld [vmem:[#allocation2 + $0x120] sm:$0xff]
        %v518 = vld [vmem:[#allocation2 + $0x128] sm:$0xff]
        %v519 = vld [vmem:[#allocation2 + $0x130] sm:$0xff]
        %v520 = vld [vmem:[%s259] ss:$8 sm:$0x7]
        %v522 = vlaneseq
        %v523 = vshrl.u32 %v522, 7
        %v524 = vsub.s32 0, %v523
        %v525 = vrot.slane %v520, %v524
        %v526 = vlaneseq
        %v527 = vshrl.u32 %v526, 7
        %v528 = vsub.s32 1, %v527
        %v529 = vrot.slane %v520, %v528
        %v530 = vlaneseq
        %v531 = vshrl.u32 %v530, 7
        %v532 = vsub.s32 2, %v531
        %v533 = vrot.slane %v520, %v532
        %v537 = vmul.f32 %v499, %v525
        %v538 = vmul.f32 %v500, %v529
        %v539 = vmul.f32 %v501, %v533
        %v540 = vmul.f32 %v502, %v525
        %v541 = vmul.f32 %v503, %v529
        %v542 = vmul.f32 %v504, %v533
        %v543 = vmul.f32 %v505, %v525
        %v544 = vmul.f32 %v506, %v529
        %v545 = vmul.f32 %v507, %v533
        %v546 = vmul.f32 %v508, %v525
        %v547 = vmul.f32 %v509, %v529
        %v548 = vmul.f32 %v510, %v533
        %v549 = vmul.f32 %v511, %v525
        %v550 = vmul.f32 %v512, %v529
        %v551 = vmul.f32 %v513, %v533
        %v552 = vmul.f32 %v514, %v525
        %v553 = vmul.f32 %v515, %v529
        %v554 = vmul.f32 %v516, %v533
        %v555 = vmul.f32 %v517, %v525
        %v556 = vmul.f32 %v518, %v529
        %v557 = vmul.f32 %v519, %v533
        %v558 = vadd.f32 %v537, 0.0
        %v559 = vadd.f32 %v538, 0.0
        %v560 = vadd.f32 %v539, 0.0
        %v561 = vadd.f32 %v540, 0.0
        %v562 = vadd.f32 %v541, 0.0
        %v563 = vadd.f32 %v542, 0.0
        %v564 = vadd.f32 %v543, 0.0
        %v565 = vadd.f32 %v544, 0.0
        %v566 = vadd.f32 %v545, 0.0
        %v567 = vadd.f32 %v546, 0.0
        %v568 = vadd.f32 %v547, 0.0
        %v569 = vadd.f32 %v548, 0.0
        %v570 = vadd.f32 %v549, 0.0
        %v571 = vadd.f32 %v550, 0.0
        %v572 = vadd.f32 %v551, 0.0
        %v573 = vadd.f32 %v552, 0.0
        %v574 = vadd.f32 %v553, 0.0
        %v575 = vadd.f32 %v554, 0.0
        %v576 = vadd.f32 %v555, 0.0
        %v577 = vadd.f32 %v556, 0.0
        %v578 = vadd.f32 %v557, 0.0
        %v579 = vld [vmem:[#allocation2] sm:$0xfe]
        %v580 = vld [vmem:[#allocation2 + $0x8] sm:$0xfe]
        %v581 = vld [vmem:[#allocation2 + $0x10] sm:$0xfe]
        %v582 = vld [vmem:[#allocation2 + $0x18] sm:$0x1]
        %v583 = vld [vmem:[#allocation2 + $0x20] sm:$0x1]
        %v584 = vld [vmem:[#allocation2 + $0x28] sm:$0x1]
        %v585 = vld [vmem:[#allocation2 + $0x30] sm:$0xfe]
        %v586 = vld [vmem:[#allocation2 + $0x38] sm:$0xfe]
        %v587 = vld [vmem:[#allocation2 + $0x40] sm:$0xfe]
        %v588 = vld [vmem:[#allocation2 + $0x48] sm:$0x1]
        %v589 = vld [vmem:[#allocation2 + $0x50] sm:$0x1]
        %v590 = vld [vmem:[#allocation2 + $0x58] sm:$0x1]
        %v591 = vld [vmem:[#allocation2 + $0x60] sm:$0xfe]
        %v592 = vld [vmem:[#allocation2 + $0x68] sm:$0xfe]
        %v593 = vld [vmem:[#allocation2 + $0x70] sm:$0xfe]
        %v594 = vld [vmem:[#allocation2 + $0x78] sm:$0x1]
        %v595 = vld [vmem:[#allocation2 + $0x80] sm:$0x1]
        %v596 = vld [vmem:[#allocation2 + $0x88] sm:$0x1]
        %v597 = vld [vmem:[#allocation2 + $0x90] sm:$0xfe]
        %v598 = vld [vmem:[#allocation2 + $0x98] sm:$0xfe]
        %v599 = vld [vmem:[#allocation2 + $0xa0] sm:$0xfe]
        %v600 = vld [vmem:[#allocation2 + $0xa8] sm:$0x1]
        %v601 = vld [vmem:[#allocation2 + $0xb0] sm:$0x1]
        %v602 = vld [vmem:[#allocation2 + $0xb8] sm:$0x1]
        %v603 = vld [vmem:[#allocation2 + $0xc0] sm:$0xfe]
        %v604 = vld [vmem:[#allocation2 + $0xc8] sm:$0xfe]
        %v605 = vld [vmem:[#allocation2 + $0xd0] sm:$0xfe]
        %v606 = vld [vmem:[#allocation2 + $0xd8] sm:$0x1]
        %v607 = vld [vmem:[#allocation2 + $0xe0] sm:$0x1]
        %v608 = vld [vmem:[#allocation2 + $0xe8] sm:$0x1]
        %v609 = vld [vmem:[#allocation2 + $0xf0] sm:$0xfe]
        %v610 = vld [vmem:[#allocation2 + $0xf8] sm:$0xfe]
        %v611 = vld [vmem:[#allocation2 + $0x100] sm:$0xfe]
        %v612 = vld [vmem:[#allocation2 + $0x108] sm:$0x1]
        %v613 = vld [vmem:[#allocation2 + $0x110] sm:$0x1]
        %v614 = vld [vmem:[#allocation2 + $0x118] sm:$0x1]
        %v615 = vld [vmem:[#allocation2 + $0x120] sm:$0xfe]
        %v616 = vld [vmem:[#allocation2 + $0x128] sm:$0xfe]
        %v617 = vld [vmem:[#allocation2 + $0x130] sm:$0xfe]
        %v618 = vld [vmem:[#allocation2 + $0x138] sm:$0x1]
        %v619 = vld [vmem:[#allocation2 + $0x140] sm:$0x1]
        %v620 = vld [vmem:[#allocation2 + $0x148] sm:$0x1]
        %s621 = scalar_lea.vmem %s259, 1 [#allocation4]
        %v622 = vld [vmem:[%s621] ss:$8 sm:$0x7]
        %v624 = vlaneseq
        %v625 = vshrl.u32 %v624, 7
        %v626 = vsub.s32 0, %v625
        %v627 = vrot.slane %v622, %v626
        %v628 = vlaneseq
        %v629 = vshrl.u32 %v628, 7
        %v630 = vsub.s32 1, %v629
        %v631 = vrot.slane %v622, %v630
        %v632 = vlaneseq
        %v633 = vshrl.u32 %v632, 7
        %v634 = vsub.s32 2, %v633
        %v635 = vrot.slane %v622, %v634
        %v639 = vmul.f32 %v579, %v627
        %v640 = vmul.f32 %v580, %v631
        %v641 = vmul.f32 %v581, %v635
        %v642 = vmul.f32 %v582, %v627
        %v643 = vmul.f32 %v583, %v631
        %v644 = vmul.f32 %v584, %v635
        %v645 = vmul.f32 %v585, %v627
        %v646 = vmul.f32 %v586, %v631
        %v647 = vmul.f32 %v587, %v635
        %v648 = vmul.f32 %v588, %v627
        %v649 = vmul.f32 %v589, %v631
        %v650 = vmul.f32 %v590, %v635
        %v651 = vmul.f32 %v591, %v627
        %v652 = vmul.f32 %v592, %v631
        %v653 = vmul.f32 %v593, %v635
        %v654 = vmul.f32 %v594, %v627
        %v655 = vmul.f32 %v595, %v631
        %v656 = vmul.f32 %v596, %v635
        %v657 = vmul.f32 %v597, %v627
        %v658 = vmul.f32 %v598, %v631
        %v659 = vmul.f32 %v599, %v635
        %v660 = vmul.f32 %v600, %v627
        %v661 = vmul.f32 %v601, %v631
        %v662 = vmul.f32 %v602, %v635
        %v663 = vmul.f32 %v603, %v627
        %v664 = vmul.f32 %v604, %v631
        %v665 = vmul.f32 %v605, %v635
        %v666 = vmul.f32 %v606, %v627
        %v667 = vmul.f32 %v607, %v631
        %v668 = vmul.f32 %v608, %v635
        %v669 = vmul.f32 %v609, %v627
        %v670 = vmul.f32 %v610, %v631
        %v671 = vmul.f32 %v611, %v635
        %v672 = vmul.f32 %v612, %v627
        %v673 = vmul.f32 %v613, %v631
        %v674 = vmul.f32 %v614, %v635
        %v675 = vmul.f32 %v615, %v627
        %v676 = vmul.f32 %v616, %v631
        %v677 = vmul.f32 %v617, %v635
        %v678 = vmul.f32 %v618, %v627
        %v679 = vmul.f32 %v619, %v631
        %v680 = vmul.f32 %v620, %v635
        %vm723 = vcmask 1046528
        %v724 = vrot.slane %v639, 1
        %v725 = vrot.slane %v642, 1
        %v726 = vsel %vm723, %v724, %v725
        %v727 = vrot.slane %v640, 1
        %v728 = vrot.slane %v643, 1
        %v729 = vsel %vm723, %v727, %v728
        %v730 = vrot.slane %v641, 1
        %v731 = vrot.slane %v644, 1
        %v732 = vsel %vm723, %v730, %v731
        %v733 = vrot.slane %v645, 1
        %v734 = vrot.slane %v648, 1
        %v735 = vsel %vm723, %v733, %v734
        %v736 = vrot.slane %v646, 1
        %v737 = vrot.slane %v649, 1
        %v738 = vsel %vm723, %v736, %v737
        %v739 = vrot.slane %v647, 1
        %v740 = vrot.slane %v650, 1
        %v741 = vsel %vm723, %v739, %v740
        %v742 = vrot.slane %v651, 1
        %v743 = vrot.slane %v654, 1
        %v744 = vsel %vm723, %v742, %v743
        %v745 = vrot.slane %v652, 1
        %v746 = vrot.slane %v655, 1
        %v747 = vsel %vm723, %v745, %v746
        %v748 = vrot.slane %v653, 1
        %v749 = vrot.slane %v656, 1
        %v750 = vsel %vm723, %v748, %v749
        %v751 = vrot.slane %v657, 1
        %v752 = vrot.slane %v660, 1
        %v753 = vsel %vm723, %v751, %v752
        %v754 = vrot.slane %v658, 1
        %v755 = vrot.slane %v661, 1
        %v756 = vsel %vm723, %v754, %v755
        %v757 = vrot.slane %v659, 1
        %v758 = vrot.slane %v662, 1
        %v759 = vsel %vm723, %v757, %v758
        %v760 = vrot.slane %v663, 1
        %v761 = vrot.slane %v666, 1
        %v762 = vsel %vm723, %v760, %v761
        %v763 = vrot.slane %v664, 1
        %v764 = vrot.slane %v667, 1
        %v765 = vsel %vm723, %v763, %v764
        %v766 = vrot.slane %v665, 1
        %v767 = vrot.slane %v668, 1
        %v768 = vsel %vm723, %v766, %v767
        %v769 = vrot.slane %v669, 1
        %v770 = vrot.slane %v672, 1
        %v771 = vsel %vm723, %v769, %v770
        %v772 = vrot.slane %v670, 1
        %v773 = vrot.slane %v673, 1
        %v774 = vsel %vm723, %v772, %v773
        %v775 = vrot.slane %v671, 1
        %v776 = vrot.slane %v674, 1
        %v777 = vsel %vm723, %v775, %v776
        %v778 = vrot.slane %v675, 1
        %v779 = vrot.slane %v678, 1
        %v780 = vsel %vm723, %v778, %v779
        %v781 = vrot.slane %v676, 1
        %v782 = vrot.slane %v679, 1
        %v783 = vsel %vm723, %v781, %v782
        %v784 = vrot.slane %v677, 1
        %v785 = vrot.slane %v680, 1
        %v786 = vsel %vm723, %v784, %v785
        %v808 = vadd.f32 %v558, %v726
        %v809 = vadd.f32 %v559, %v729
        %v810 = vadd.f32 %v560, %v732
        %v811 = vadd.f32 %v561, %v735
        %v812 = vadd.f32 %v562, %v738
        %v813 = vadd.f32 %v563, %v741
        %v814 = vadd.f32 %v564, %v744
        %v815 = vadd.f32 %v565, %v747
        %v816 = vadd.f32 %v566, %v750
        %v817 = vadd.f32 %v567, %v753
        %v818 = vadd.f32 %v568, %v756
        %v819 = vadd.f32 %v569, %v759
        %v820 = vadd.f32 %v570, %v762
        %v821 = vadd.f32 %v571, %v765
        %v822 = vadd.f32 %v572, %v768
        %v823 = vadd.f32 %v573, %v771
        %v824 = vadd.f32 %v574, %v774
        %v825 = vadd.f32 %v575, %v777
        %v826 = vadd.f32 %v576, %v780
        %v827 = vadd.f32 %v577, %v783
        %v828 = vadd.f32 %v578, %v786
        %v829 = vld [vmem:[#allocation2] sm:$0xfc]
        %v830 = vld [vmem:[#allocation2 + $0x8] sm:$0xfc]
        %v831 = vld [vmem:[#allocation2 + $0x10] sm:$0xfc]
        %v832 = vld [vmem:[#allocation2 + $0x18] sm:$0x3]
        %v833 = vld [vmem:[#allocation2 + $0x20] sm:$0x3]
        %v834 = vld [vmem:[#allocation2 + $0x28] sm:$0x3]
        %v835 = vld [vmem:[#allocation2 + $0x30] sm:$0xfc]
        %v836 = vld [vmem:[#allocation2 + $0x38] sm:$0xfc]
        %v837 = vld [vmem:[#allocation2 + $0x40] sm:$0xfc]
        %v838 = vld [vmem:[#allocation2 + $0x48] sm:$0x3]
        %v839 = vld [vmem:[#allocation2 + $0x50] sm:$0x3]
        %v840 = vld [vmem:[#allocation2 + $0x58] sm:$0x3]
        %v841 = vld [vmem:[#allocation2 + $0x60] sm:$0xfc]
        %v842 = vld [vmem:[#allocation2 + $0x68] sm:$0xfc]
        %v843 = vld [vmem:[#allocation2 + $0x70] sm:$0xfc]
        %v844 = vld [vmem:[#allocation2 + $0x78] sm:$0x3]
        %v845 = vld [vmem:[#allocation2 + $0x80] sm:$0x3]
        %v846 = vld [vmem:[#allocation2 + $0x88] sm:$0x3]
        %v847 = vld [vmem:[#allocation2 + $0x90] sm:$0xfc]
        %v848 = vld [vmem:[#allocation2 + $0x98] sm:$0xfc]
        %v849 = vld [vmem:[#allocation2 + $0xa0] sm:$0xfc]
        %v850 = vld [vmem:[#allocation2 + $0xa8] sm:$0x3]
        %v851 = vld [vmem:[#allocation2 + $0xb0] sm:$0x3]
        %v852 = vld [vmem:[#allocation2 + $0xb8] sm:$0x3]
        %v853 = vld [vmem:[#allocation2 + $0xc0] sm:$0xfc]
        %v854 = vld [vmem:[#allocation2 + $0xc8] sm:$0xfc]
        %v855 = vld [vmem:[#allocation2 + $0xd0] sm:$0xfc]
        %v856 = vld [vmem:[#allocation2 + $0xd8] sm:$0x3]
        %v857 = vld [vmem:[#allocation2 + $0xe0] sm:$0x3]
        %v858 = vld [vmem:[#allocation2 + $0xe8] sm:$0x3]
        %v859 = vld [vmem:[#allocation2 + $0xf0] sm:$0xfc]
        %v860 = vld [vmem:[#allocation2 + $0xf8] sm:$0xfc]
        %v861 = vld [vmem:[#allocation2 + $0x100] sm:$0xfc]
        %v862 = vld [vmem:[#allocation2 + $0x108] sm:$0x3]
        %v863 = vld [vmem:[#allocation2 + $0x110] sm:$0x3]
        %v864 = vld [vmem:[#allocation2 + $0x118] sm:$0x3]
        %v865 = vld [vmem:[#allocation2 + $0x120] sm:$0xfc]
        %v866 = vld [vmem:[#allocation2 + $0x128] sm:$0xfc]
        %v867 = vld [vmem:[#allocation2 + $0x130] sm:$0xfc]
        %v868 = vld [vmem:[#allocation2 + $0x138] sm:$0x3]
        %v869 = vld [vmem:[#allocation2 + $0x140] sm:$0x3]
        %v870 = vld [vmem:[#allocation2 + $0x148] sm:$0x3]
        %s871 = scalar_lea.vmem %s259, 2 [#allocation4]
        %v872 = vld [vmem:[%s871] ss:$8 sm:$0x7]
        %v874 = vlaneseq
        %v875 = vshrl.u32 %v874, 7
        %v876 = vsub.s32 0, %v875
        %v877 = vrot.slane %v872, %v876
        %v878 = vlaneseq
        %v879 = vshrl.u32 %v878, 7
        %v880 = vsub.s32 1, %v879
        %v881 = vrot.slane %v872, %v880
        %v882 = vlaneseq
        %v883 = vshrl.u32 %v882, 7
        %v884 = vsub.s32 2, %v883
        %v885 = vrot.slane %v872, %v884
        %v889 = vmul.f32 %v829, %v877
        %v890 = vmul.f32 %v830, %v881
        %v891 = vmul.f32 %v831, %v885
        %v892 = vmul.f32 %v832, %v877
        %v893 = vmul.f32 %v833, %v881
        %v894 = vmul.f32 %v834, %v885
        %v895 = vmul.f32 %v835, %v877
        %v896 = vmul.f32 %v836, %v881
        %v897 = vmul.f32 %v837, %v885
        %v898 = vmul.f32 %v838, %v877
        %v899 = vmul.f32 %v839, %v881
        %v900 = vmul.f32 %v840, %v885
        %v901 = vmul.f32 %v841, %v877
        %v902 = vmul.f32 %v842, %v881
        %v903 = vmul.f32 %v843, %v885
        %v904 = vmul.f32 %v844, %v877
        %v905 = vmul.f32 %v845, %v881
        %v906 = vmul.f32 %v846, %v885
        %v907 = vmul.f32 %v847, %v877
        %v908 = vmul.f32 %v848, %v881
        %v909 = vmul.f32 %v849, %v885
        %v910 = vmul.f32 %v850, %v877
        %v911 = vmul.f32 %v851, %v881
        %v912 = vmul.f32 %v852, %v885
        %v913 = vmul.f32 %v853, %v877
        %v914 = vmul.f32 %v854, %v881
        %v915 = vmul.f32 %v855, %v885
        %v916 = vmul.f32 %v856, %v877
        %v917 = vmul.f32 %v857, %v881
        %v918 = vmul.f32 %v858, %v885
        %v919 = vmul.f32 %v859, %v877
        %v920 = vmul.f32 %v860, %v881
        %v921 = vmul.f32 %v861, %v885
        %v922 = vmul.f32 %v862, %v877
        %v923 = vmul.f32 %v863, %v881
        %v924 = vmul.f32 %v864, %v885
        %v925 = vmul.f32 %v865, %v877
        %v926 = vmul.f32 %v866, %v881
        %v927 = vmul.f32 %v867, %v885
        %v928 = vmul.f32 %v868, %v877
        %v929 = vmul.f32 %v869, %v881
        %v930 = vmul.f32 %v870, %v885
        %vm973 = vcmask 1045504
        %v974 = vrot.slane %v889, 2
        %v975 = vrot.slane %v892, 2
        %v976 = vsel %vm973, %v974, %v975
        %v977 = vrot.slane %v890, 2
        %v978 = vrot.slane %v893, 2
        %v979 = vsel %vm973, %v977, %v978
        %v980 = vrot.slane %v891, 2
        %v981 = vrot.slane %v894, 2
        %v982 = vsel %vm973, %v980, %v981
        %v983 = vrot.slane %v895, 2
        %v984 = vrot.slane %v898, 2
        %v985 = vsel %vm973, %v983, %v984
        %v986 = vrot.slane %v896, 2
        %v987 = vrot.slane %v899, 2
        %v988 = vsel %vm973, %v986, %v987
        %v989 = vrot.slane %v897, 2
        %v990 = vrot.slane %v900, 2
        %v991 = vsel %vm973, %v989, %v990
        %v992 = vrot.slane %v901, 2
        %v993 = vrot.slane %v904, 2
        %v994 = vsel %vm973, %v992, %v993
        %v995 = vrot.slane %v902, 2
        %v996 = vrot.slane %v905, 2
        %v997 = vsel %vm973, %v995, %v996
        %v998 = vrot.slane %v903, 2
        %v999 = vrot.slane %v906, 2
        %v1000 = vsel %vm973, %v998, %v999
        %v1001 = vrot.slane %v907, 2
        %v1002 = vrot.slane %v910, 2
        %v1003 = vsel %vm973, %v1001, %v1002
        %v1004 = vrot.slane %v908, 2
        %v1005 = vrot.slane %v911, 2
        %v1006 = vsel %vm973, %v1004, %v1005
        %v1007 = vrot.slane %v909, 2
        %v1008 = vrot.slane %v912, 2
        %v1009 = vsel %vm973, %v1007, %v1008
        %v1010 = vrot.slane %v913, 2
        %v1011 = vrot.slane %v916, 2
        %v1012 = vsel %vm973, %v1010, %v1011
        %v1013 = vrot.slane %v914, 2
        %v1014 = vrot.slane %v917, 2
        %v1015 = vsel %vm973, %v1013, %v1014
        %v1016 = vrot.slane %v915, 2
        %v1017 = vrot.slane %v918, 2
        %v1018 = vsel %vm973, %v1016, %v1017
        %v1019 = vrot.slane %v919, 2
        %v1020 = vrot.slane %v922, 2
        %v1021 = vsel %vm973, %v1019, %v1020
        %v1022 = vrot.slane %v920, 2
        %v1023 = vrot.slane %v923, 2
        %v1024 = vsel %vm973, %v1022, %v1023
        %v1025 = vrot.slane %v921, 2
        %v1026 = vrot.slane %v924, 2
        %v1027 = vsel %vm973, %v1025, %v1026
        %v1028 = vrot.slane %v925, 2
        %v1029 = vrot.slane %v928, 2
        %v1030 = vsel %vm973, %v1028, %v1029
        %v1031 = vrot.slane %v926, 2
        %v1032 = vrot.slane %v929, 2
        %v1033 = vsel %vm973, %v1031, %v1032
        %v1034 = vrot.slane %v927, 2
        %v1035 = vrot.slane %v930, 2
        %v1036 = vsel %vm973, %v1034, %v1035
        %v1058 = vadd.f32 %v808, %v976
        %v1059 = vadd.f32 %v809, %v979
        %v1060 = vadd.f32 %v810, %v982
        %v1061 = vadd.f32 %v811, %v985
        %v1062 = vadd.f32 %v812, %v988
        %v1063 = vadd.f32 %v813, %v991
        %v1064 = vadd.f32 %v814, %v994
        %v1065 = vadd.f32 %v815, %v997
        %v1066 = vadd.f32 %v816, %v1000
        %v1067 = vadd.f32 %v817, %v1003
        %v1068 = vadd.f32 %v818, %v1006
        %v1069 = vadd.f32 %v819, %v1009
        %v1070 = vadd.f32 %v820, %v1012
        %v1071 = vadd.f32 %v821, %v1015
        %v1072 = vadd.f32 %v822, %v1018
        %v1073 = vadd.f32 %v823, %v1021
        %v1074 = vadd.f32 %v824, %v1024
        %v1075 = vadd.f32 %v825, %v1027
        %v1076 = vadd.f32 %v826, %v1030
        %v1077 = vadd.f32 %v827, %v1033
        %v1078 = vadd.f32 %v828, %v1036
        %v1079 = vld [vmem:[#allocation2] sm:$0xf8]
        %v1080 = vld [vmem:[#allocation2 + $0x8] sm:$0xf8]
        %v1081 = vld [vmem:[#allocation2 + $0x10] sm:$0xf8]
        %v1082 = vld [vmem:[#allocation2 + $0x18] sm:$0x7]
        %v1083 = vld [vmem:[#allocation2 + $0x20] sm:$0x7]
        %v1084 = vld [vmem:[#allocation2 + $0x28] sm:$0x7]
        %v1085 = vld [vmem:[#allocation2 + $0x30] sm:$0xf8]
        %v1086 = vld [vmem:[#allocation2 + $0x38] sm:$0xf8]
        %v1087 = vld [vmem:[#allocation2 + $0x40] sm:$0xf8]
        %v1088 = vld [vmem:[#allocation2 + $0x48] sm:$0x7]
        %v1089 = vld [vmem:[#allocation2 + $0x50] sm:$0x7]
        %v1090 = vld [vmem:[#allocation2 + $0x58] sm:$0x7]
        %v1091 = vld [vmem:[#allocation2 + $0x60] sm:$0xf8]
        %v1092 = vld [vmem:[#allocation2 + $0x68] sm:$0xf8]
        %v1093 = vld [vmem:[#allocation2 + $0x70] sm:$0xf8]
        %v1094 = vld [vmem:[#allocation2 + $0x78] sm:$0x7]
        %v1095 = vld [vmem:[#allocation2 + $0x80] sm:$0x7]
        %v1096 = vld [vmem:[#allocation2 + $0x88] sm:$0x7]
        %v1097 = vld [vmem:[#allocation2 + $0x90] sm:$0xf8]
        %v1098 = vld [vmem:[#allocation2 + $0x98] sm:$0xf8]
        %v1099 = vld [vmem:[#allocation2 + $0xa0] sm:$0xf8]
        %v1100 = vld [vmem:[#allocation2 + $0xa8] sm:$0x7]
        %v1101 = vld [vmem:[#allocation2 + $0xb0] sm:$0x7]
        %v1102 = vld [vmem:[#allocation2 + $0xb8] sm:$0x7]
        %v1103 = vld [vmem:[#allocation2 + $0xc0] sm:$0xf8]
        %v1104 = vld [vmem:[#allocation2 + $0xc8] sm:$0xf8]
        %v1105 = vld [vmem:[#allocation2 + $0xd0] sm:$0xf8]
        %v1106 = vld [vmem:[#allocation2 + $0xd8] sm:$0x7]
        %v1107 = vld [vmem:[#allocation2 + $0xe0] sm:$0x7]
        %v1108 = vld [vmem:[#allocation2 + $0xe8] sm:$0x7]
        %v1109 = vld [vmem:[#allocation2 + $0xf0] sm:$0xf8]
        %v1110 = vld [vmem:[#allocation2 + $0xf8] sm:$0xf8]
        %v1111 = vld [vmem:[#allocation2 + $0x100] sm:$0xf8]
        %v1112 = vld [vmem:[#allocation2 + $0x108] sm:$0x7]
        %v1113 = vld [vmem:[#allocation2 + $0x110] sm:$0x7]
        %v1114 = vld [vmem:[#allocation2 + $0x118] sm:$0x7]
        %v1115 = vld [vmem:[#allocation2 + $0x120] sm:$0xf8]
        %v1116 = vld [vmem:[#allocation2 + $0x128] sm:$0xf8]
        %v1117 = vld [vmem:[#allocation2 + $0x130] sm:$0xf8]
        %v1118 = vld [vmem:[#allocation2 + $0x138] sm:$0x7]
        %v1119 = vld [vmem:[#allocation2 + $0x140] sm:$0x7]
        %v1120 = vld [vmem:[#allocation2 + $0x148] sm:$0x7]
        %s1121 = scalar_lea.vmem %s259, 3 [#allocation4]
        %v1122 = vld [vmem:[%s1121] ss:$8 sm:$0x7]
        %v1124 = vlaneseq
        %v1125 = vshrl.u32 %v1124, 7
        %v1126 = vsub.s32 0, %v1125
        %v1127 = vrot.slane %v1122, %v1126
        %v1128 = vlaneseq
        %v1129 = vshrl.u32 %v1128, 7
        %v1130 = vsub.s32 1, %v1129
        %v1131 = vrot.slane %v1122, %v1130
        %v1132 = vlaneseq
        %v1133 = vshrl.u32 %v1132, 7
        %v1134 = vsub.s32 2, %v1133
        %v1135 = vrot.slane %v1122, %v1134
        %v1139 = vmul.f32 %v1079, %v1127
        %v1140 = vmul.f32 %v1080, %v1131
        %v1141 = vmul.f32 %v1081, %v1135
        %v1142 = vmul.f32 %v1082, %v1127
        %v1143 = vmul.f32 %v1083, %v1131
        %v1144 = vmul.f32 %v1084, %v1135
        %v1145 = vmul.f32 %v1085, %v1127
        %v1146 = vmul.f32 %v1086, %v1131
        %v1147 = vmul.f32 %v1087, %v1135
        %v1148 = vmul.f32 %v1088, %v1127
        %v1149 = vmul.f32 %v1089, %v1131
        %v1150 = vmul.f32 %v1090, %v1135
        %v1151 = vmul.f32 %v1091, %v1127
        %v1152 = vmul.f32 %v1092, %v1131
        %v1153 = vmul.f32 %v1093, %v1135
        %v1154 = vmul.f32 %v1094, %v1127
        %v1155 = vmul.f32 %v1095, %v1131
        %v1156 = vmul.f32 %v1096, %v1135
        %v1157 = vmul.f32 %v1097, %v1127
        %v1158 = vmul.f32 %v1098, %v1131
        %v1159 = vmul.f32 %v1099, %v1135
        %v1160 = vmul.f32 %v1100, %v1127
        %v1161 = vmul.f32 %v1101, %v1131
        %v1162 = vmul.f32 %v1102, %v1135
        %v1163 = vmul.f32 %v1103, %v1127
        %v1164 = vmul.f32 %v1104, %v1131
        %v1165 = vmul.f32 %v1105, %v1135
        %v1166 = vmul.f32 %v1106, %v1127
        %v1167 = vmul.f32 %v1107, %v1131
        %v1168 = vmul.f32 %v1108, %v1135
        %v1169 = vmul.f32 %v1109, %v1127
        %v1170 = vmul.f32 %v1110, %v1131
        %v1171 = vmul.f32 %v1111, %v1135
        %v1172 = vmul.f32 %v1112, %v1127
        %v1173 = vmul.f32 %v1113, %v1131
        %v1174 = vmul.f32 %v1114, %v1135
        %v1175 = vmul.f32 %v1115, %v1127
        %v1176 = vmul.f32 %v1116, %v1131
        %v1177 = vmul.f32 %v1117, %v1135
        %v1178 = vmul.f32 %v1118, %v1127
        %v1179 = vmul.f32 %v1119, %v1131
        %v1180 = vmul.f32 %v1120, %v1135
        %vm1223 = vcmask 1044480
        %v1224 = vrot.slane %v1139, 3
        %v1225 = vrot.slane %v1142, 3
        %v1226 = vsel %vm1223, %v1224, %v1225
        %v1227 = vrot.slane %v1140, 3
        %v1228 = vrot.slane %v1143, 3
        %v1229 = vsel %vm1223, %v1227, %v1228
        %v1230 = vrot.slane %v1141, 3
        %v1231 = vrot.slane %v1144, 3
        %v1232 = vsel %vm1223, %v1230, %v1231
        %v1233 = vrot.slane %v1145, 3
        %v1234 = vrot.slane %v1148, 3
        %v1235 = vsel %vm1223, %v1233, %v1234
        %v1236 = vrot.slane %v1146, 3
        %v1237 = vrot.slane %v1149, 3
        %v1238 = vsel %vm1223, %v1236, %v1237
        %v1239 = vrot.slane %v1147, 3
        %v1240 = vrot.slane %v1150, 3
        %v1241 = vsel %vm1223, %v1239, %v1240
        %v1242 = vrot.slane %v1151, 3
        %v1243 = vrot.slane %v1154, 3
        %v1244 = vsel %vm1223, %v1242, %v1243
        %v1245 = vrot.slane %v1152, 3
        %v1246 = vrot.slane %v1155, 3
        %v1247 = vsel %vm1223, %v1245, %v1246
        %v1248 = vrot.slane %v1153, 3
        %v1249 = vrot.slane %v1156, 3
        %v1250 = vsel %vm1223, %v1248, %v1249
        %v1251 = vrot.slane %v1157, 3
        %v1252 = vrot.slane %v1160, 3
        %v1253 = vsel %vm1223, %v1251, %v1252
        %v1254 = vrot.slane %v1158, 3
        %v1255 = vrot.slane %v1161, 3
        %v1256 = vsel %vm1223, %v1254, %v1255
        %v1257 = vrot.slane %v1159, 3
        %v1258 = vrot.slane %v1162, 3
        %v1259 = vsel %vm1223, %v1257, %v1258
        %v1260 = vrot.slane %v1163, 3
        %v1261 = vrot.slane %v1166, 3
        %v1262 = vsel %vm1223, %v1260, %v1261
        %v1263 = vrot.slane %v1164, 3
        %v1264 = vrot.slane %v1167, 3
        %v1265 = vsel %vm1223, %v1263, %v1264
        %v1266 = vrot.slane %v1165, 3
        %v1267 = vrot.slane %v1168, 3
        %v1268 = vsel %vm1223, %v1266, %v1267
        %v1269 = vrot.slane %v1169, 3
        %v1270 = vrot.slane %v1172, 3
        %v1271 = vsel %vm1223, %v1269, %v1270
        %v1272 = vrot.slane %v1170, 3
        %v1273 = vrot.slane %v1173, 3
        %v1274 = vsel %vm1223, %v1272, %v1273
        %v1275 = vrot.slane %v1171, 3
        %v1276 = vrot.slane %v1174, 3
        %v1277 = vsel %vm1223, %v1275, %v1276
        %v1278 = vrot.slane %v1175, 3
        %v1279 = vrot.slane %v1178, 3
        %v1280 = vsel %vm1223, %v1278, %v1279
        %v1281 = vrot.slane %v1176, 3
        %v1282 = vrot.slane %v1179, 3
        %v1283 = vsel %vm1223, %v1281, %v1282
        %v1284 = vrot.slane %v1177, 3
        %v1285 = vrot.slane %v1180, 3
        %v1286 = vsel %vm1223, %v1284, %v1285
        %v1308 = vadd.f32 %v1058, %v1226
        %v1309 = vadd.f32 %v1059, %v1229
        %v1310 = vadd.f32 %v1060, %v1232
        %v1311 = vadd.f32 %v1061, %v1235
        %v1312 = vadd.f32 %v1062, %v1238
        %v1313 = vadd.f32 %v1063, %v1241
        %v1314 = vadd.f32 %v1064, %v1244
        %v1315 = vadd.f32 %v1065, %v1247
        %v1316 = vadd.f32 %v1066, %v1250
        %v1317 = vadd.f32 %v1067, %v1253
        %v1318 = vadd.f32 %v1068, %v1256
        %v1319 = vadd.f32 %v1069, %v1259
        %v1320 = vadd.f32 %v1070, %v1262
        %v1321 = vadd.f32 %v1071, %v1265
        %v1322 = vadd.f32 %v1072, %v1268
        %v1323 = vadd.f32 %v1073, %v1271
        %v1324 = vadd.f32 %v1074, %v1274
        %v1325 = vadd.f32 %v1075, %v1277
        %v1326 = vadd.f32 %v1076, %v1280
        %v1327 = vadd.f32 %v1077, %v1283
        %v1328 = vadd.f32 %v1078, %v1286
        %v1329 = vld [vmem:[#allocation2] sm:$0xf0]
        %v1330 = vld [vmem:[#allocation2 + $0x8] sm:$0xf0]
        %v1331 = vld [vmem:[#allocation2 + $0x10] sm:$0xf0]
        %v1332 = vld [vmem:[#allocation2 + $0x18] sm:$0xf]
        %v1333 = vld [vmem:[#allocation2 + $0x20] sm:$0xf]
        %v1334 = vld [vmem:[#allocation2 + $0x28] sm:$0xf]
        %v1335 = vld [vmem:[#allocation2 + $0x30] sm:$0xf0]
        %v1336 = vld [vmem:[#allocation2 + $0x38] sm:$0xf0]
        %v1337 = vld [vmem:[#allocation2 + $0x40] sm:$0xf0]
        %v1338 = vld [vmem:[#allocation2 + $0x48] sm:$0xf]
        %v1339 = vld [vmem:[#allocation2 + $0x50] sm:$0xf]
        %v1340 = vld [vmem:[#allocation2 + $0x58] sm:$0xf]
        %v1341 = vld [vmem:[#allocation2 + $0x60] sm:$0xf0]
        %v1342 = vld [vmem:[#allocation2 + $0x68] sm:$0xf0]
        %v1343 = vld [vmem:[#allocation2 + $0x70] sm:$0xf0]
        %v1344 = vld [vmem:[#allocation2 + $0x78] sm:$0xf]
        %v1345 = vld [vmem:[#allocation2 + $0x80] sm:$0xf]
        %v1346 = vld [vmem:[#allocation2 + $0x88] sm:$0xf]
        %v1347 = vld [vmem:[#allocation2 + $0x90] sm:$0xf0]
        %v1348 = vld [vmem:[#allocation2 + $0x98] sm:$0xf0]
        %v1349 = vld [vmem:[#allocation2 + $0xa0] sm:$0xf0]
        %v1350 = vld [vmem:[#allocation2 + $0xa8] sm:$0xf]
        %v1351 = vld [vmem:[#allocation2 + $0xb0] sm:$0xf]
        %v1352 = vld [vmem:[#allocation2 + $0xb8] sm:$0xf]
        %v1353 = vld [vmem:[#allocation2 + $0xc0] sm:$0xf0]
        %v1354 = vld [vmem:[#allocation2 + $0xc8] sm:$0xf0]
        %v1355 = vld [vmem:[#allocation2 + $0xd0] sm:$0xf0]
        %v1356 = vld [vmem:[#allocation2 + $0xd8] sm:$0xf]
        %v1357 = vld [vmem:[#allocation2 + $0xe0] sm:$0xf]
        %v1358 = vld [vmem:[#allocation2 + $0xe8] sm:$0xf]
        %v1359 = vld [vmem:[#allocation2 + $0xf0] sm:$0xf0]
        %v1360 = vld [vmem:[#allocation2 + $0xf8] sm:$0xf0]
        %v1361 = vld [vmem:[#allocation2 + $0x100] sm:$0xf0]
        %v1362 = vld [vmem:[#allocation2 + $0x108] sm:$0xf]
        %v1363 = vld [vmem:[#allocation2 + $0x110] sm:$0xf]
        %v1364 = vld [vmem:[#allocation2 + $0x118] sm:$0xf]
        %v1365 = vld [vmem:[#allocation2 + $0x120] sm:$0xf0]
        %v1366 = vld [vmem:[#allocation2 + $0x128] sm:$0xf0]
        %v1367 = vld [vmem:[#allocation2 + $0x130] sm:$0xf0]
        %v1368 = vld [vmem:[#allocation2 + $0x138] sm:$0xf]
        %v1369 = vld [vmem:[#allocation2 + $0x140] sm:$0xf]
        %v1370 = vld [vmem:[#allocation2 + $0x148] sm:$0xf]
        %s1371 = scalar_lea.vmem %s259, 4 [#allocation4]
        %v1372 = vld [vmem:[%s1371] ss:$8 sm:$0x7]
        %v1374 = vlaneseq
        %v1375 = vshrl.u32 %v1374, 7
        %v1376 = vsub.s32 0, %v1375
        %v1377 = vrot.slane %v1372, %v1376
        %v1378 = vlaneseq
        %v1379 = vshrl.u32 %v1378, 7
        %v1380 = vsub.s32 1, %v1379
        %v1381 = vrot.slane %v1372, %v1380
        %v1382 = vlaneseq
        %v1383 = vshrl.u32 %v1382, 7
        %v1384 = vsub.s32 2, %v1383
        %v1385 = vrot.slane %v1372, %v1384
        %v1389 = vmul.f32 %v1329, %v1377
        %v1390 = vmul.f32 %v1330, %v1381
        %v1391 = vmul.f32 %v1331, %v1385
        %v1392 = vmul.f32 %v1332, %v1377
        %v1393 = vmul.f32 %v1333, %v1381
        %v1394 = vmul.f32 %v1334, %v1385
        %v1395 = vmul.f32 %v1335, %v1377
        %v1396 = vmul.f32 %v1336, %v1381
        %v1397 = vmul.f32 %v1337, %v1385
        %v1398 = vmul.f32 %v1338, %v1377
        %v1399 = vmul.f32 %v1339, %v1381
        %v1400 = vmul.f32 %v1340, %v1385
        %v1401 = vmul.f32 %v1341, %v1377
        %v1402 = vmul.f32 %v1342, %v1381
        %v1403 = vmul.f32 %v1343, %v1385
        %v1404 = vmul.f32 %v1344, %v1377
        %v1405 = vmul.f32 %v1345, %v1381
        %v1406 = vmul.f32 %v1346, %v1385
        %v1407 = vmul.f32 %v1347, %v1377
        %v1408 = vmul.f32 %v1348, %v1381
        %v1409 = vmul.f32 %v1349, %v1385
        %v1410 = vmul.f32 %v1350, %v1377
        %v1411 = vmul.f32 %v1351, %v1381
        %v1412 = vmul.f32 %v1352, %v1385
        %v1413 = vmul.f32 %v1353, %v1377
        %v1414 = vmul.f32 %v1354, %v1381
        %v1415 = vmul.f32 %v1355, %v1385
        %v1416 = vmul.f32 %v1356, %v1377
        %v1417 = vmul.f32 %v1357, %v1381
        %v1418 = vmul.f32 %v1358, %v1385
        %v1419 = vmul.f32 %v1359, %v1377
        %v1420 = vmul.f32 %v1360, %v1381
        %v1421 = vmul.f32 %v1361, %v1385
        %v1422 = vmul.f32 %v1362, %v1377
        %v1423 = vmul.f32 %v1363, %v1381
        %v1424 = vmul.f32 %v1364, %v1385
        %v1425 = vmul.f32 %v1365, %v1377
        %v1426 = vmul.f32 %v1366, %v1381
        %v1427 = vmul.f32 %v1367, %v1385
        %v1428 = vmul.f32 %v1368, %v1377
        %v1429 = vmul.f32 %v1369, %v1381
        %v1430 = vmul.f32 %v1370, %v1385
        %vm1473 = vcmask 1043456
        %v1474 = vrot.slane %v1389, 4
        %v1475 = vrot.slane %v1392, 4
        %v1476 = vsel %vm1473, %v1474, %v1475
        %v1477 = vrot.slane %v1390, 4
        %v1478 = vrot.slane %v1393, 4
        %v1479 = vsel %vm1473, %v1477, %v1478
        %v1480 = vrot.slane %v1391, 4
        %v1481 = vrot.slane %v1394, 4
        %v1482 = vsel %vm1473, %v1480, %v1481
        %v1483 = vrot.slane %v1395, 4
        %v1484 = vrot.slane %v1398, 4
        %v1485 = vsel %vm1473, %v1483, %v1484
        %v1486 = vrot.slane %v1396, 4
        %v1487 = vrot.slane %v1399, 4
        %v1488 = vsel %vm1473, %v1486, %v1487
        %v1489 = vrot.slane %v1397, 4
        %v1490 = vrot.slane %v1400, 4
        %v1491 = vsel %vm1473, %v1489, %v1490
        %v1492 = vrot.slane %v1401, 4
        %v1493 = vrot.slane %v1404, 4
        %v1494 = vsel %vm1473, %v1492, %v1493
        %v1495 = vrot.slane %v1402, 4
        %v1496 = vrot.slane %v1405, 4
        %v1497 = vsel %vm1473, %v1495, %v1496
        %v1498 = vrot.slane %v1403, 4
        %v1499 = vrot.slane %v1406, 4
        %v1500 = vsel %vm1473, %v1498, %v1499
        %v1501 = vrot.slane %v1407, 4
        %v1502 = vrot.slane %v1410, 4
        %v1503 = vsel %vm1473, %v1501, %v1502
        %v1504 = vrot.slane %v1408, 4
        %v1505 = vrot.slane %v1411, 4
        %v1506 = vsel %vm1473, %v1504, %v1505
        %v1507 = vrot.slane %v1409, 4
        %v1508 = vrot.slane %v1412, 4
        %v1509 = vsel %vm1473, %v1507, %v1508
        %v1510 = vrot.slane %v1413, 4
        %v1511 = vrot.slane %v1416, 4
        %v1512 = vsel %vm1473, %v1510, %v1511
        %v1513 = vrot.slane %v1414, 4
        %v1514 = vrot.slane %v1417, 4
        %v1515 = vsel %vm1473, %v1513, %v1514
        %v1516 = vrot.slane %v1415, 4
        %v1517 = vrot.slane %v1418, 4
        %v1518 = vsel %vm1473, %v1516, %v1517
        %v1519 = vrot.slane %v1419, 4
        %v1520 = vrot.slane %v1422, 4
        %v1521 = vsel %vm1473, %v1519, %v1520
        %v1522 = vrot.slane %v1420, 4
        %v1523 = vrot.slane %v1423, 4
        %v1524 = vsel %vm1473, %v1522, %v1523
        %v1525 = vrot.slane %v1421, 4
        %v1526 = vrot.slane %v1424, 4
        %v1527 = vsel %vm1473, %v1525, %v1526
        %v1528 = vrot.slane %v1425, 4
        %v1529 = vrot.slane %v1428, 4
        %v1530 = vsel %vm1473, %v1528, %v1529
        %v1531 = vrot.slane %v1426, 4
        %v1532 = vrot.slane %v1429, 4
        %v1533 = vsel %vm1473, %v1531, %v1532
        %v1534 = vrot.slane %v1427, 4
        %v1535 = vrot.slane %v1430, 4
        %v1536 = vsel %vm1473, %v1534, %v1535
        %v1558 = vadd.f32 %v1308, %v1476
        %v1559 = vadd.f32 %v1309, %v1479
        %v1560 = vadd.f32 %v1310, %v1482
        %v1561 = vadd.f32 %v1311, %v1485
        %v1562 = vadd.f32 %v1312, %v1488
        %v1563 = vadd.f32 %v1313, %v1491
        %v1564 = vadd.f32 %v1314, %v1494
        %v1565 = vadd.f32 %v1315, %v1497
        %v1566 = vadd.f32 %v1316, %v1500
        %v1567 = vadd.f32 %v1317, %v1503
        %v1568 = vadd.f32 %v1318, %v1506
        %v1569 = vadd.f32 %v1319, %v1509
        %v1570 = vadd.f32 %v1320, %v1512
        %v1571 = vadd.f32 %v1321, %v1515
        %v1572 = vadd.f32 %v1322, %v1518
        %v1573 = vadd.f32 %v1323, %v1521
        %v1574 = vadd.f32 %v1324, %v1524
        %v1575 = vadd.f32 %v1325, %v1527
        %v1576 = vadd.f32 %v1326, %v1530
        %v1577 = vadd.f32 %v1327, %v1533
        %v1578 = vadd.f32 %v1328, %v1536
        %s1579 = scalar_lea.vmem [#allocation2], 48
        %v1580 = vld [vmem:[%s1579] sm:$0xff]
        %v1581 = vld [vmem:[%s1579 + $0x8] sm:$0xff]
        %v1582 = vld [vmem:[%s1579 + $0x10] sm:$0xff]
        %v1583 = vld [vmem:[%s1579 + $0x30] sm:$0xff]
        %v1584 = vld [vmem:[%s1579 + $0x38] sm:$0xff]
        %v1585 = vld [vmem:[%s1579 + $0x40] sm:$0xff]
        %v1586 = vld [vmem:[%s1579 + $0x60] sm:$0xff]
        %v1587 = vld [vmem:[%s1579 + $0x68] sm:$0xff]
        %v1588 = vld [vmem:[%s1579 + $0x70] sm:$0xff]
        %v1589 = vld [vmem:[%s1579 + $0x90] sm:$0xff]
        %v1590 = vld [vmem:[%s1579 + $0x98] sm:$0xff]
        %v1591 = vld [vmem:[%s1579 + $0xa0] sm:$0xff]
        %v1592 = vld [vmem:[%s1579 + $0xc0] sm:$0xff]
        %v1593 = vld [vmem:[%s1579 + $0xc8] sm:$0xff]
        %v1594 = vld [vmem:[%s1579 + $0xd0] sm:$0xff]
        %v1595 = vld [vmem:[%s1579 + $0xf0] sm:$0xff]
        %v1596 = vld [vmem:[%s1579 + $0xf8] sm:$0xff]
        %v1597 = vld [vmem:[%s1579 + $0x100] sm:$0xff]
        %v1598 = vld [vmem:[%s1579 + $0x120] sm:$0xff]
        %v1599 = vld [vmem:[%s1579 + $0x128] sm:$0xff]
        %v1600 = vld [vmem:[%s1579 + $0x130] sm:$0xff]
        %s1601 = scalar_lea.vmem %s259, 5 [#allocation4]
        %v1602 = vld [vmem:[%s1601] ss:$8 sm:$0x7]
        %v1604 = vlaneseq
        %v1605 = vshrl.u32 %v1604, 7
        %v1606 = vsub.s32 0, %v1605
        %v1607 = vrot.slane %v1602, %v1606
        %v1608 = vlaneseq
        %v1609 = vshrl.u32 %v1608, 7
        %v1610 = vsub.s32 1, %v1609
        %v1611 = vrot.slane %v1602, %v1610
        %v1612 = vlaneseq
        %v1613 = vshrl.u32 %v1612, 7
        %v1614 = vsub.s32 2, %v1613
        %v1615 = vrot.slane %v1602, %v1614
        %v1619 = vmul.f32 %v1580, %v1607
        %v1620 = vmul.f32 %v1581, %v1611
        %v1621 = vmul.f32 %v1582, %v1615
        %v1622 = vmul.f32 %v1583, %v1607
        %v1623 = vmul.f32 %v1584, %v1611
        %v1624 = vmul.f32 %v1585, %v1615
        %v1625 = vmul.f32 %v1586, %v1607
        %v1626 = vmul.f32 %v1587, %v1611
        %v1627 = vmul.f32 %v1588, %v1615
        %v1628 = vmul.f32 %v1589, %v1607
        %v1629 = vmul.f32 %v1590, %v1611
        %v1630 = vmul.f32 %v1591, %v1615
        %v1631 = vmul.f32 %v1592, %v1607
        %v1632 = vmul.f32 %v1593, %v1611
        %v1633 = vmul.f32 %v1594, %v1615
        %v1634 = vmul.f32 %v1595, %v1607
        %v1635 = vmul.f32 %v1596, %v1611
        %v1636 = vmul.f32 %v1597, %v1615
        %v1637 = vmul.f32 %v1598, %v1607
        %v1638 = vmul.f32 %v1599, %v1611
        %v1639 = vmul.f32 %v1600, %v1615
        %v1640 = vadd.f32 %v1558, %v1619
        %v1641 = vadd.f32 %v1559, %v1620
        %v1642 = vadd.f32 %v1560, %v1621
        %v1643 = vadd.f32 %v1561, %v1622
        %v1644 = vadd.f32 %v1562, %v1623
        %v1645 = vadd.f32 %v1563, %v1624
        %v1646 = vadd.f32 %v1564, %v1625
        %v1647 = vadd.f32 %v1565, %v1626
        %v1648 = vadd.f32 %v1566, %v1627
        %v1649 = vadd.f32 %v1567, %v1628
        %v1650 = vadd.f32 %v1568, %v1629
        %v1651 = vadd.f32 %v1569, %v1630
        %v1652 = vadd.f32 %v1570, %v1631
        %v1653 = vadd.f32 %v1571, %v1632
        %v1654 = vadd.f32 %v1572, %v1633
        %v1655 = vadd.f32 %v1573, %v1634
        %v1656 = vadd.f32 %v1574, %v1635
        %v1657 = vadd.f32 %v1575, %v1636
        %v1658 = vadd.f32 %v1576, %v1637
        %v1659 = vadd.f32 %v1577, %v1638
        %v1660 = vadd.f32 %v1578, %v1639
        %v1661 = vld [vmem:[%s1579] sm:$0xfe]
        %v1662 = vld [vmem:[%s1579 + $0x8] sm:$0xfe]
        %v1663 = vld [vmem:[%s1579 + $0x10] sm:$0xfe]
        %v1664 = vld [vmem:[%s1579 + $0x18] sm:$0x1]
        %v1665 = vld [vmem:[%s1579 + $0x20] sm:$0x1]
        %v1666 = vld [vmem:[%s1579 + $0x28] sm:$0x1]
        %v1667 = vld [vmem:[%s1579 + $0x30] sm:$0xfe]
        %v1668 = vld [vmem:[%s1579 + $0x38] sm:$0xfe]
        %v1669 = vld [vmem:[%s1579 + $0x40] sm:$0xfe]
        %v1670 = vld [vmem:[%s1579 + $0x48] sm:$0x1]
        %v1671 = vld [vmem:[%s1579 + $0x50] sm:$0x1]
        %v1672 = vld [vmem:[%s1579 + $0x58] sm:$0x1]
        %v1673 = vld [vmem:[%s1579 + $0x60] sm:$0xfe]
        %v1674 = vld [vmem:[%s1579 + $0x68] sm:$0xfe]
        %v1675 = vld [vmem:[%s1579 + $0x70] sm:$0xfe]
        %v1676 = vld [vmem:[%s1579 + $0x78] sm:$0x1]
        %v1677 = vld [vmem:[%s1579 + $0x80] sm:$0x1]
        %v1678 = vld [vmem:[%s1579 + $0x88] sm:$0x1]
        %v1679 = vld [vmem:[%s1579 + $0x90] sm:$0xfe]
        %v1680 = vld [vmem:[%s1579 + $0x98] sm:$0xfe]
        %v1681 = vld [vmem:[%s1579 + $0xa0] sm:$0xfe]
        %v1682 = vld [vmem:[%s1579 + $0xa8] sm:$0x1]
        %v1683 = vld [vmem:[%s1579 + $0xb0] sm:$0x1]
        %v1684 = vld [vmem:[%s1579 + $0xb8] sm:$0x1]
        %v1685 = vld [vmem:[%s1579 + $0xc0] sm:$0xfe]
        %v1686 = vld [vmem:[%s1579 + $0xc8] sm:$0xfe]
        %v1687 = vld [vmem:[%s1579 + $0xd0] sm:$0xfe]
        %v1688 = vld [vmem:[%s1579 + $0xd8] sm:$0x1]
        %v1689 = vld [vmem:[%s1579 + $0xe0] sm:$0x1]
        %v1690 = vld [vmem:[%s1579 + $0xe8] sm:$0x1]
        %v1691 = vld [vmem:[%s1579 + $0xf0] sm:$0xfe]
        %v1692 = vld [vmem:[%s1579 + $0xf8] sm:$0xfe]
        %v1693 = vld [vmem:[%s1579 + $0x100] sm:$0xfe]
        %v1694 = vld [vmem:[%s1579 + $0x108] sm:$0x1]
        %v1695 = vld [vmem:[%s1579 + $0x110] sm:$0x1]
        %v1696 = vld [vmem:[%s1579 + $0x118] sm:$0x1]
        %v1697 = vld [vmem:[%s1579 + $0x120] sm:$0xfe]
        %v1698 = vld [vmem:[%s1579 + $0x128] sm:$0xfe]
        %v1699 = vld [vmem:[%s1579 + $0x130] sm:$0xfe]
        %v1700 = vld [vmem:[%s1579 + $0x138] sm:$0x1]
        %v1701 = vld [vmem:[%s1579 + $0x140] sm:$0x1]
        %v1702 = vld [vmem:[%s1579 + $0x148] sm:$0x1]
        %s1703 = scalar_lea.vmem %s259, 6 [#allocation4]
        %v1704 = vld [vmem:[%s1703] ss:$8 sm:$0x7]
        %v1706 = vlaneseq
        %v1707 = vshrl.u32 %v1706, 7
        %v1708 = vsub.s32 0, %v1707
        %v1709 = vrot.slane %v1704, %v1708
        %v1710 = vlaneseq
        %v1711 = vshrl.u32 %v1710, 7
        %v1712 = vsub.s32 1, %v1711
        %v1713 = vrot.slane %v1704, %v1712
        %v1714 = vlaneseq
        %v1715 = vshrl.u32 %v1714, 7
        %v1716 = vsub.s32 2, %v1715
        %v1717 = vrot.slane %v1704, %v1716
        %v1721 = vmul.f32 %v1661, %v1709
        %v1722 = vmul.f32 %v1662, %v1713
        %v1723 = vmul.f32 %v1663, %v1717
        %v1724 = vmul.f32 %v1664, %v1709
        %v1725 = vmul.f32 %v1665, %v1713
        %v1726 = vmul.f32 %v1666, %v1717
        %v1727 = vmul.f32 %v1667, %v1709
        %v1728 = vmul.f32 %v1668, %v1713
        %v1729 = vmul.f32 %v1669, %v1717
        %v1730 = vmul.f32 %v1670, %v1709
        %v1731 = vmul.f32 %v1671, %v1713
        %v1732 = vmul.f32 %v1672, %v1717
        %v1733 = vmul.f32 %v1673, %v1709
        %v1734 = vmul.f32 %v1674, %v1713
        %v1735 = vmul.f32 %v1675, %v1717
        %v1736 = vmul.f32 %v1676, %v1709
        %v1737 = vmul.f32 %v1677, %v1713
        %v1738 = vmul.f32 %v1678, %v1717
        %v1739 = vmul.f32 %v1679, %v1709
        %v1740 = vmul.f32 %v1680, %v1713
        %v1741 = vmul.f32 %v1681, %v1717
        %v1742 = vmul.f32 %v1682, %v1709
        %v1743 = vmul.f32 %v1683, %v1713
        %v1744 = vmul.f32 %v1684, %v1717
        %v1745 = vmul.f32 %v1685, %v1709
        %v1746 = vmul.f32 %v1686, %v1713
        %v1747 = vmul.f32 %v1687, %v1717
        %v1748 = vmul.f32 %v1688, %v1709
        %v1749 = vmul.f32 %v1689, %v1713
        %v1750 = vmul.f32 %v1690, %v1717
        %v1751 = vmul.f32 %v1691, %v1709
        %v1752 = vmul.f32 %v1692, %v1713
        %v1753 = vmul.f32 %v1693, %v1717
        %v1754 = vmul.f32 %v1694, %v1709
        %v1755 = vmul.f32 %v1695, %v1713
        %v1756 = vmul.f32 %v1696, %v1717
        %v1757 = vmul.f32 %v1697, %v1709
        %v1758 = vmul.f32 %v1698, %v1713
        %v1759 = vmul.f32 %v1699, %v1717
        %v1760 = vmul.f32 %v1700, %v1709
        %v1761 = vmul.f32 %v1701, %v1713
        %v1762 = vmul.f32 %v1702, %v1717
        %v1805 = vrot.slane %v1721, 1
        %v1806 = vrot.slane %v1724, 1
        %v1807 = vsel %vm723, %v1805, %v1806
        %v1808 = vrot.slane %v1722, 1
        %v1809 = vrot.slane %v1725, 1
        %v1810 = vsel %vm723, %v1808, %v1809
        %v1811 = vrot.slane %v1723, 1
        %v1812 = vrot.slane %v1726, 1
        %v1813 = vsel %vm723, %v1811, %v1812
        %v1814 = vrot.slane %v1727, 1
        %v1815 = vrot.slane %v1730, 1
        %v1816 = vsel %vm723, %v1814, %v1815
        %v1817 = vrot.slane %v1728, 1
        %v1818 = vrot.slane %v1731, 1
        %v1819 = vsel %vm723, %v1817, %v1818
        %v1820 = vrot.slane %v1729, 1
        %v1821 = vrot.slane %v1732, 1
        %v1822 = vsel %vm723, %v1820, %v1821
        %v1823 = vrot.slane %v1733, 1
        %v1824 = vrot.slane %v1736, 1
        %v1825 = vsel %vm723, %v1823, %v1824
        %v1826 = vrot.slane %v1734, 1
        %v1827 = vrot.slane %v1737, 1
        %v1828 = vsel %vm723, %v1826, %v1827
        %v1829 = vrot.slane %v1735, 1
        %v1830 = vrot.slane %v1738, 1
        %v1831 = vsel %vm723, %v1829, %v1830
        %v1832 = vrot.slane %v1739, 1
        %v1833 = vrot.slane %v1742, 1
        %v1834 = vsel %vm723, %v1832, %v1833
        %v1835 = vrot.slane %v1740, 1
        %v1836 = vrot.slane %v1743, 1
        %v1837 = vsel %vm723, %v1835, %v1836
        %v1838 = vrot.slane %v1741, 1
        %v1839 = vrot.slane %v1744, 1
        %v1840 = vsel %vm723, %v1838, %v1839
        %v1841 = vrot.slane %v1745, 1
        %v1842 = vrot.slane %v1748, 1
        %v1843 = vsel %vm723, %v1841, %v1842
        %v1844 = vrot.slane %v1746, 1
        %v1845 = vrot.slane %v1749, 1
        %v1846 = vsel %vm723, %v1844, %v1845
        %v1847 = vrot.slane %v1747, 1
        %v1848 = vrot.slane %v1750, 1
        %v1849 = vsel %vm723, %v1847, %v1848
        %v1850 = vrot.slane %v1751, 1
        %v1851 = vrot.slane %v1754, 1
        %v1852 = vsel %vm723, %v1850, %v1851
        %v1853 = vrot.slane %v1752, 1
        %v1854 = vrot.slane %v1755, 1
        %v1855 = vsel %vm723, %v1853, %v1854
        %v1856 = vrot.slane %v1753, 1
        %v1857 = vrot.slane %v1756, 1
        %v1858 = vsel %vm723, %v1856, %v1857
        %v1859 = vrot.slane %v1757, 1
        %v1860 = vrot.slane %v1760, 1
        %v1861 = vsel %vm723, %v1859, %v1860
        %v1862 = vrot.slane %v1758, 1
        %v1863 = vrot.slane %v1761, 1
        %v1864 = vsel %vm723, %v1862, %v1863
        %v1865 = vrot.slane %v1759, 1
        %v1866 = vrot.slane %v1762, 1
        %v1867 = vsel %vm723, %v1865, %v1866
        %v1889 = vadd.f32 %v1640, %v1807
        %v1890 = vadd.f32 %v1641, %v1810
        %v1891 = vadd.f32 %v1642, %v1813
        %v1892 = vadd.f32 %v1643, %v1816
        %v1893 = vadd.f32 %v1644, %v1819
        %v1894 = vadd.f32 %v1645, %v1822
        %v1895 = vadd.f32 %v1646, %v1825
        %v1896 = vadd.f32 %v1647, %v1828
        %v1897 = vadd.f32 %v1648, %v1831
        %v1898 = vadd.f32 %v1649, %v1834
        %v1899 = vadd.f32 %v1650, %v1837
        %v1900 = vadd.f32 %v1651, %v1840
        %v1901 = vadd.f32 %v1652, %v1843
        %v1902 = vadd.f32 %v1653, %v1846
        %v1903 = vadd.f32 %v1654, %v1849
        %v1904 = vadd.f32 %v1655, %v1852
        %v1905 = vadd.f32 %v1656, %v1855
        %v1906 = vadd.f32 %v1657, %v1858
        %v1907 = vadd.f32 %v1658, %v1861
        %v1908 = vadd.f32 %v1659, %v1864
        %v1909 = vadd.f32 %v1660, %v1867
        %v1910 = vld [vmem:[%s1579] sm:$0xfc]
        %v1911 = vld [vmem:[%s1579 + $0x8] sm:$0xfc]
        %v1912 = vld [vmem:[%s1579 + $0x10] sm:$0xfc]
        %v1913 = vld [vmem:[%s1579 + $0x18] sm:$0x3]
        %v1914 = vld [vmem:[%s1579 + $0x20] sm:$0x3]
        %v1915 = vld [vmem:[%s1579 + $0x28] sm:$0x3]
        %v1916 = vld [vmem:[%s1579 + $0x30] sm:$0xfc]
        %v1917 = vld [vmem:[%s1579 + $0x38] sm:$0xfc]
        %v1918 = vld [vmem:[%s1579 + $0x40] sm:$0xfc]
        %v1919 = vld [vmem:[%s1579 + $0x48] sm:$0x3]
        %v1920 = vld [vmem:[%s1579 + $0x50] sm:$0x3]
        %v1921 = vld [vmem:[%s1579 + $0x58] sm:$0x3]
        %v1922 = vld [vmem:[%s1579 + $0x60] sm:$0xfc]
        %v1923 = vld [vmem:[%s1579 + $0x68] sm:$0xfc]
        %v1924 = vld [vmem:[%s1579 + $0x70] sm:$0xfc]
        %v1925 = vld [vmem:[%s1579 + $0x78] sm:$0x3]
        %v1926 = vld [vmem:[%s1579 + $0x80] sm:$0x3]
        %v1927 = vld [vmem:[%s1579 + $0x88] sm:$0x3]
        %v1928 = vld [vmem:[%s1579 + $0x90] sm:$0xfc]
        %v1929 = vld [vmem:[%s1579 + $0x98] sm:$0xfc]
        %v1930 = vld [vmem:[%s1579 + $0xa0] sm:$0xfc]
        %v1931 = vld [vmem:[%s1579 + $0xa8] sm:$0x3]
        %v1932 = vld [vmem:[%s1579 + $0xb0] sm:$0x3]
        %v1933 = vld [vmem:[%s1579 + $0xb8] sm:$0x3]
        %v1934 = vld [vmem:[%s1579 + $0xc0] sm:$0xfc]
        %v1935 = vld [vmem:[%s1579 + $0xc8] sm:$0xfc]
        %v1936 = vld [vmem:[%s1579 + $0xd0] sm:$0xfc]
        %v1937 = vld [vmem:[%s1579 + $0xd8] sm:$0x3]
        %v1938 = vld [vmem:[%s1579 + $0xe0] sm:$0x3]
        %v1939 = vld [vmem:[%s1579 + $0xe8] sm:$0x3]
        %v1940 = vld [vmem:[%s1579 + $0xf0] sm:$0xfc]
        %v1941 = vld [vmem:[%s1579 + $0xf8] sm:$0xfc]
        %v1942 = vld [vmem:[%s1579 + $0x100] sm:$0xfc]
        %v1943 = vld [vmem:[%s1579 + $0x108] sm:$0x3]
        %v1944 = vld [vmem:[%s1579 + $0x110] sm:$0x3]
        %v1945 = vld [vmem:[%s1579 + $0x118] sm:$0x3]
        %v1946 = vld [vmem:[%s1579 + $0x120] sm:$0xfc]
        %v1947 = vld [vmem:[%s1579 + $0x128] sm:$0xfc]
        %v1948 = vld [vmem:[%s1579 + $0x130] sm:$0xfc]
        %v1949 = vld [vmem:[%s1579 + $0x138] sm:$0x3]
        %v1950 = vld [vmem:[%s1579 + $0x140] sm:$0x3]
        %v1951 = vld [vmem:[%s1579 + $0x148] sm:$0x3]
        %s1952 = scalar_lea.vmem %s259, 7 [#allocation4]
        %v1953 = vld [vmem:[%s1952] ss:$8 sm:$0x7]
        %v1955 = vlaneseq
        %v1956 = vshrl.u32 %v1955, 7
        %v1957 = vsub.s32 0, %v1956
        %v1958 = vrot.slane %v1953, %v1957
        %v1959 = vlaneseq
        %v1960 = vshrl.u32 %v1959, 7
        %v1961 = vsub.s32 1, %v1960
        %v1962 = vrot.slane %v1953, %v1961
        %v1963 = vlaneseq
        %v1964 = vshrl.u32 %v1963, 7
        %v1965 = vsub.s32 2, %v1964
        %v1966 = vrot.slane %v1953, %v1965
        %v1970 = vmul.f32 %v1910, %v1958
        %v1971 = vmul.f32 %v1911, %v1962
        %v1972 = vmul.f32 %v1912, %v1966
        %v1973 = vmul.f32 %v1913, %v1958
        %v1974 = vmul.f32 %v1914, %v1962
        %v1975 = vmul.f32 %v1915, %v1966
        %v1976 = vmul.f32 %v1916, %v1958
        %v1977 = vmul.f32 %v1917, %v1962
        %v1978 = vmul.f32 %v1918, %v1966
        %v1979 = vmul.f32 %v1919, %v1958
        %v1980 = vmul.f32 %v1920, %v1962
        %v1981 = vmul.f32 %v1921, %v1966
        %v1982 = vmul.f32 %v1922, %v1958
        %v1983 = vmul.f32 %v1923, %v1962
        %v1984 = vmul.f32 %v1924, %v1966
        %v1985 = vmul.f32 %v1925, %v1958
        %v1986 = vmul.f32 %v1926, %v1962
        %v1987 = vmul.f32 %v1927, %v1966
        %v1988 = vmul.f32 %v1928, %v1958
        %v1989 = vmul.f32 %v1929, %v1962
        %v1990 = vmul.f32 %v1930, %v1966
        %v1991 = vmul.f32 %v1931, %v1958
        %v1992 = vmul.f32 %v1932, %v1962
        %v1993 = vmul.f32 %v1933, %v1966
        %v1994 = vmul.f32 %v1934, %v1958
        %v1995 = vmul.f32 %v1935, %v1962
        %v1996 = vmul.f32 %v1936, %v1966
        %v1997 = vmul.f32 %v1937, %v1958
        %v1998 = vmul.f32 %v1938, %v1962
        %v1999 = vmul.f32 %v1939, %v1966
        %v2000 = vmul.f32 %v1940, %v1958
        %v2001 = vmul.f32 %v1941, %v1962
        %v2002 = vmul.f32 %v1942, %v1966
        %v2003 = vmul.f32 %v1943, %v1958
        %v2004 = vmul.f32 %v1944, %v1962
        %v2005 = vmul.f32 %v1945, %v1966
        %v2006 = vmul.f32 %v1946, %v1958
        %v2007 = vmul.f32 %v1947, %v1962
        %v2008 = vmul.f32 %v1948, %v1966
        %v2009 = vmul.f32 %v1949, %v1958
        %v2010 = vmul.f32 %v1950, %v1962
        %v2011 = vmul.f32 %v1951, %v1966
        %v2054 = vrot.slane %v1970, 2
        %v2055 = vrot.slane %v1973, 2
        %v2056 = vsel %vm973, %v2054, %v2055
        %v2057 = vrot.slane %v1971, 2
        %v2058 = vrot.slane %v1974, 2
        %v2059 = vsel %vm973, %v2057, %v2058
        %v2060 = vrot.slane %v1972, 2
        %v2061 = vrot.slane %v1975, 2
        %v2062 = vsel %vm973, %v2060, %v2061
        %v2063 = vrot.slane %v1976, 2
        %v2064 = vrot.slane %v1979, 2
        %v2065 = vsel %vm973, %v2063, %v2064
        %v2066 = vrot.slane %v1977, 2
        %v2067 = vrot.slane %v1980, 2
        %v2068 = vsel %vm973, %v2066, %v2067
        %v2069 = vrot.slane %v1978, 2
        %v2070 = vrot.slane %v1981, 2
        %v2071 = vsel %vm973, %v2069, %v2070
        %v2072 = vrot.slane %v1982, 2
        %v2073 = vrot.slane %v1985, 2
        %v2074 = vsel %vm973, %v2072, %v2073
        %v2075 = vrot.slane %v1983, 2
        %v2076 = vrot.slane %v1986, 2
        %v2077 = vsel %vm973, %v2075, %v2076
        %v2078 = vrot.slane %v1984, 2
        %v2079 = vrot.slane %v1987, 2
        %v2080 = vsel %vm973, %v2078, %v2079
        %v2081 = vrot.slane %v1988, 2
        %v2082 = vrot.slane %v1991, 2
        %v2083 = vsel %vm973, %v2081, %v2082
        %v2084 = vrot.slane %v1989, 2
        %v2085 = vrot.slane %v1992, 2
        %v2086 = vsel %vm973, %v2084, %v2085
        %v2087 = vrot.slane %v1990, 2
        %v2088 = vrot.slane %v1993, 2
        %v2089 = vsel %vm973, %v2087, %v2088
        %v2090 = vrot.slane %v1994, 2
        %v2091 = vrot.slane %v1997, 2
        %v2092 = vsel %vm973, %v2090, %v2091
        %v2093 = vrot.slane %v1995, 2
        %v2094 = vrot.slane %v1998, 2
        %v2095 = vsel %vm973, %v2093, %v2094
        %v2096 = vrot.slane %v1996, 2
        %v2097 = vrot.slane %v1999, 2
        %v2098 = vsel %vm973, %v2096, %v2097
        %v2099 = vrot.slane %v2000, 2
        %v2100 = vrot.slane %v2003, 2
        %v2101 = vsel %vm973, %v2099, %v2100
        %v2102 = vrot.slane %v2001, 2
        %v2103 = vrot.slane %v2004, 2
        %v2104 = vsel %vm973, %v2102, %v2103
        %v2105 = vrot.slane %v2002, 2
        %v2106 = vrot.slane %v2005, 2
        %v2107 = vsel %vm973, %v2105, %v2106
        %v2108 = vrot.slane %v2006, 2
        %v2109 = vrot.slane %v2009, 2
        %v2110 = vsel %vm973, %v2108, %v2109
        %v2111 = vrot.slane %v2007, 2
        %v2112 = vrot.slane %v2010, 2
        %v2113 = vsel %vm973, %v2111, %v2112
        %v2114 = vrot.slane %v2008, 2
        %v2115 = vrot.slane %v2011, 2
        %v2116 = vsel %vm973, %v2114, %v2115
        %v2138 = vadd.f32 %v1889, %v2056
        %v2139 = vadd.f32 %v1890, %v2059
        %v2140 = vadd.f32 %v1891, %v2062
        %v2141 = vadd.f32 %v1892, %v2065
        %v2142 = vadd.f32 %v1893, %v2068
        %v2143 = vadd.f32 %v1894, %v2071
        %v2144 = vadd.f32 %v1895, %v2074
        %v2145 = vadd.f32 %v1896, %v2077
        %v2146 = vadd.f32 %v1897, %v2080
        %v2147 = vadd.f32 %v1898, %v2083
        %v2148 = vadd.f32 %v1899, %v2086
        %v2149 = vadd.f32 %v1900, %v2089
        %v2150 = vadd.f32 %v1901, %v2092
        %v2151 = vadd.f32 %v1902, %v2095
        %v2152 = vadd.f32 %v1903, %v2098
        %v2153 = vadd.f32 %v1904, %v2101
        %v2154 = vadd.f32 %v1905, %v2104
        %v2155 = vadd.f32 %v1906, %v2107
        %v2156 = vadd.f32 %v1907, %v2110
        %v2157 = vadd.f32 %v1908, %v2113
        %v2158 = vadd.f32 %v1909, %v2116
        %v2159 = vld [vmem:[%s1579] sm:$0xf8]
        %v2160 = vld [vmem:[%s1579 + $0x8] sm:$0xf8]
        %v2161 = vld [vmem:[%s1579 + $0x10] sm:$0xf8]
        %v2162 = vld [vmem:[%s1579 + $0x18] sm:$0x7]
        %v2163 = vld [vmem:[%s1579 + $0x20] sm:$0x7]
        %v2164 = vld [vmem:[%s1579 + $0x28] sm:$0x7]
        %v2165 = vld [vmem:[%s1579 + $0x30] sm:$0xf8]
        %v2166 = vld [vmem:[%s1579 + $0x38] sm:$0xf8]
        %v2167 = vld [vmem:[%s1579 + $0x40] sm:$0xf8]
        %v2168 = vld [vmem:[%s1579 + $0x48] sm:$0x7]
        %v2169 = vld [vmem:[%s1579 + $0x50] sm:$0x7]
        %v2170 = vld [vmem:[%s1579 + $0x58] sm:$0x7]
        %v2171 = vld [vmem:[%s1579 + $0x60] sm:$0xf8]
        %v2172 = vld [vmem:[%s1579 + $0x68] sm:$0xf8]
        %v2173 = vld [vmem:[%s1579 + $0x70] sm:$0xf8]
        %v2174 = vld [vmem:[%s1579 + $0x78] sm:$0x7]
        %v2175 = vld [vmem:[%s1579 + $0x80] sm:$0x7]
        %v2176 = vld [vmem:[%s1579 + $0x88] sm:$0x7]
        %v2177 = vld [vmem:[%s1579 + $0x90] sm:$0xf8]
        %v2178 = vld [vmem:[%s1579 + $0x98] sm:$0xf8]
        %v2179 = vld [vmem:[%s1579 + $0xa0] sm:$0xf8]
        %v2180 = vld [vmem:[%s1579 + $0xa8] sm:$0x7]
        %v2181 = vld [vmem:[%s1579 + $0xb0] sm:$0x7]
        %v2182 = vld [vmem:[%s1579 + $0xb8] sm:$0x7]
        %v2183 = vld [vmem:[%s1579 + $0xc0] sm:$0xf8]
        %v2184 = vld [vmem:[%s1579 + $0xc8] sm:$0xf8]
        %v2185 = vld [vmem:[%s1579 + $0xd0] sm:$0xf8]
        %v2186 = vld [vmem:[%s1579 + $0xd8] sm:$0x7]
        %v2187 = vld [vmem:[%s1579 + $0xe0] sm:$0x7]
        %v2188 = vld [vmem:[%s1579 + $0xe8] sm:$0x7]
        %v2189 = vld [vmem:[%s1579 + $0xf0] sm:$0xf8]
        %v2190 = vld [vmem:[%s1579 + $0xf8] sm:$0xf8]
        %v2191 = vld [vmem:[%s1579 + $0x100] sm:$0xf8]
        %v2192 = vld [vmem:[%s1579 + $0x108] sm:$0x7]
        %v2193 = vld [vmem:[%s1579 + $0x110] sm:$0x7]
        %v2194 = vld [vmem:[%s1579 + $0x118] sm:$0x7]
        %v2195 = vld [vmem:[%s1579 + $0x120] sm:$0xf8]
        %v2196 = vld [vmem:[%s1579 + $0x128] sm:$0xf8]
        %v2197 = vld [vmem:[%s1579 + $0x130] sm:$0xf8]
        %v2198 = vld [vmem:[%s1579 + $0x138] sm:$0x7]
        %v2199 = vld [vmem:[%s1579 + $0x140] sm:$0x7]
        %v2200 = vld [vmem:[%s1579 + $0x148] sm:$0x7]
        %s2201 = scalar_lea.vmem %s259, 24 [#allocation4]
        %v2202 = vld [vmem:[%s2201] ss:$8 sm:$0x7]
        %v2204 = vlaneseq
        %v2205 = vshrl.u32 %v2204, 7
        %v2206 = vsub.s32 0, %v2205
        %v2207 = vrot.slane %v2202, %v2206
        %v2208 = vlaneseq
        %v2209 = vshrl.u32 %v2208, 7
        %v2210 = vsub.s32 1, %v2209
        %v2211 = vrot.slane %v2202, %v2210
        %v2212 = vlaneseq
        %v2213 = vshrl.u32 %v2212, 7
        %v2214 = vsub.s32 2, %v2213
        %v2215 = vrot.slane %v2202, %v2214
        %v2219 = vmul.f32 %v2159, %v2207
        %v2220 = vmul.f32 %v2160, %v2211
        %v2221 = vmul.f32 %v2161, %v2215
        %v2222 = vmul.f32 %v2162, %v2207
        %v2223 = vmul.f32 %v2163, %v2211
        %v2224 = vmul.f32 %v2164, %v2215
        %v2225 = vmul.f32 %v2165, %v2207
        %v2226 = vmul.f32 %v2166, %v2211
        %v2227 = vmul.f32 %v2167, %v2215
        %v2228 = vmul.f32 %v2168, %v2207
        %v2229 = vmul.f32 %v2169, %v2211
        %v2230 = vmul.f32 %v2170, %v2215
        %v2231 = vmul.f32 %v2171, %v2207
        %v2232 = vmul.f32 %v2172, %v2211
        %v2233 = vmul.f32 %v2173, %v2215
        %v2234 = vmul.f32 %v2174, %v2207
        %v2235 = vmul.f32 %v2175, %v2211
        %v2236 = vmul.f32 %v2176, %v2215
        %v2237 = vmul.f32 %v2177, %v2207
        %v2238 = vmul.f32 %v2178, %v2211
        %v2239 = vmul.f32 %v2179, %v2215
        %v2240 = vmul.f32 %v2180, %v2207
        %v2241 = vmul.f32 %v2181, %v2211
        %v2242 = vmul.f32 %v2182, %v2215
        %v2243 = vmul.f32 %v2183, %v2207
        %v2244 = vmul.f32 %v2184, %v2211
        %v2245 = vmul.f32 %v2185, %v2215
        %v2246 = vmul.f32 %v2186, %v2207
        %v2247 = vmul.f32 %v2187, %v2211
        %v2248 = vmul.f32 %v2188, %v2215
        %v2249 = vmul.f32 %v2189, %v2207
        %v2250 = vmul.f32 %v2190, %v2211
        %v2251 = vmul.f32 %v2191, %v2215
        %v2252 = vmul.f32 %v2192, %v2207
        %v2253 = vmul.f32 %v2193, %v2211
        %v2254 = vmul.f32 %v2194, %v2215
        %v2255 = vmul.f32 %v2195, %v2207
        %v2256 = vmul.f32 %v2196, %v2211
        %v2257 = vmul.f32 %v2197, %v2215
        %v2258 = vmul.f32 %v2198, %v2207
        %v2259 = vmul.f32 %v2199, %v2211
        %v2260 = vmul.f32 %v2200, %v2215
        %v2303 = vrot.slane %v2219, 3
        %v2304 = vrot.slane %v2222, 3
        %v2305 = vsel %vm1223, %v2303, %v2304
        %v2306 = vrot.slane %v2220, 3
        %v2307 = vrot.slane %v2223, 3
        %v2308 = vsel %vm1223, %v2306, %v2307
        %v2309 = vrot.slane %v2221, 3
        %v2310 = vrot.slane %v2224, 3
        %v2311 = vsel %vm1223, %v2309, %v2310
        %v2312 = vrot.slane %v2225, 3
        %v2313 = vrot.slane %v2228, 3
        %v2314 = vsel %vm1223, %v2312, %v2313
        %v2315 = vrot.slane %v2226, 3
        %v2316 = vrot.slane %v2229, 3
        %v2317 = vsel %vm1223, %v2315, %v2316
        %v2318 = vrot.slane %v2227, 3
        %v2319 = vrot.slane %v2230, 3
        %v2320 = vsel %vm1223, %v2318, %v2319
        %v2321 = vrot.slane %v2231, 3
        %v2322 = vrot.slane %v2234, 3
        %v2323 = vsel %vm1223, %v2321, %v2322
        %v2324 = vrot.slane %v2232, 3
        %v2325 = vrot.slane %v2235, 3
        %v2326 = vsel %vm1223, %v2324, %v2325
        %v2327 = vrot.slane %v2233, 3
        %v2328 = vrot.slane %v2236, 3
        %v2329 = vsel %vm1223, %v2327, %v2328
        %v2330 = vrot.slane %v2237, 3
        %v2331 = vrot.slane %v2240, 3
        %v2332 = vsel %vm1223, %v2330, %v2331
        %v2333 = vrot.slane %v2238, 3
        %v2334 = vrot.slane %v2241, 3
        %v2335 = vsel %vm1223, %v2333, %v2334
        %v2336 = vrot.slane %v2239, 3
        %v2337 = vrot.slane %v2242, 3
        %v2338 = vsel %vm1223, %v2336, %v2337
        %v2339 = vrot.slane %v2243, 3
        %v2340 = vrot.slane %v2246, 3
        %v2341 = vsel %vm1223, %v2339, %v2340
        %v2342 = vrot.slane %v2244, 3
        %v2343 = vrot.slane %v2247, 3
        %v2344 = vsel %vm1223, %v2342, %v2343
        %v2345 = vrot.slane %v2245, 3
        %v2346 = vrot.slane %v2248, 3
        %v2347 = vsel %vm1223, %v2345, %v2346
        %v2348 = vrot.slane %v2249, 3
        %v2349 = vrot.slane %v2252, 3
        %v2350 = vsel %vm1223, %v2348, %v2349
        %v2351 = vrot.slane %v2250, 3
        %v2352 = vrot.slane %v2253, 3
        %v2353 = vsel %vm1223, %v2351, %v2352
        %v2354 = vrot.slane %v2251, 3
        %v2355 = vrot.slane %v2254, 3
        %v2356 = vsel %vm1223, %v2354, %v2355
        %v2357 = vrot.slane %v2255, 3
        %v2358 = vrot.slane %v2258, 3
        %v2359 = vsel %vm1223, %v2357, %v2358
        %v2360 = vrot.slane %v2256, 3
        %v2361 = vrot.slane %v2259, 3
        %v2362 = vsel %vm1223, %v2360, %v2361
        %v2363 = vrot.slane %v2257, 3
        %v2364 = vrot.slane %v2260, 3
        %v2365 = vsel %vm1223, %v2363, %v2364
        %v2387 = vadd.f32 %v2138, %v2305
        %v2388 = vadd.f32 %v2139, %v2308
        %v2389 = vadd.f32 %v2140, %v2311
        %v2390 = vadd.f32 %v2141, %v2314
        %v2391 = vadd.f32 %v2142, %v2317
        %v2392 = vadd.f32 %v2143, %v2320
        %v2393 = vadd.f32 %v2144, %v2323
        %v2394 = vadd.f32 %v2145, %v2326
        %v2395 = vadd.f32 %v2146, %v2329
        %v2396 = vadd.f32 %v2147, %v2332
        %v2397 = vadd.f32 %v2148, %v2335
        %v2398 = vadd.f32 %v2149, %v2338
        %v2399 = vadd.f32 %v2150, %v2341
        %v2400 = vadd.f32 %v2151, %v2344
        %v2401 = vadd.f32 %v2152, %v2347
        %v2402 = vadd.f32 %v2153, %v2350
        %v2403 = vadd.f32 %v2154, %v2353
        %v2404 = vadd.f32 %v2155, %v2356
        %v2405 = vadd.f32 %v2156, %v2359
        %v2406 = vadd.f32 %v2157, %v2362
        %v2407 = vadd.f32 %v2158, %v2365
        %v2408 = vld [vmem:[%s1579] sm:$0xf0]
        %v2409 = vld [vmem:[%s1579 + $0x8] sm:$0xf0]
        %v2410 = vld [vmem:[%s1579 + $0x10] sm:$0xf0]
        %v2411 = vld [vmem:[%s1579 + $0x18] sm:$0xf]
        %v2412 = vld [vmem:[%s1579 + $0x20] sm:$0xf]
        %v2413 = vld [vmem:[%s1579 + $0x28] sm:$0xf]
        %v2414 = vld [vmem:[%s1579 + $0x30] sm:$0xf0]
        %v2415 = vld [vmem:[%s1579 + $0x38] sm:$0xf0]
        %v2416 = vld [vmem:[%s1579 + $0x40] sm:$0xf0]
        %v2417 = vld [vmem:[%s1579 + $0x48] sm:$0xf]
        %v2418 = vld [vmem:[%s1579 + $0x50] sm:$0xf]
        %v2419 = vld [vmem:[%s1579 + $0x58] sm:$0xf]
        %v2420 = vld [vmem:[%s1579 + $0x60] sm:$0xf0]
        %v2421 = vld [vmem:[%s1579 + $0x68] sm:$0xf0]
        %v2422 = vld [vmem:[%s1579 + $0x70] sm:$0xf0]
        %v2423 = vld [vmem:[%s1579 + $0x78] sm:$0xf]
        %v2424 = vld [vmem:[%s1579 + $0x80] sm:$0xf]
        %v2425 = vld [vmem:[%s1579 + $0x88] sm:$0xf]
        %v2426 = vld [vmem:[%s1579 + $0x90] sm:$0xf0]
        %v2427 = vld [vmem:[%s1579 + $0x98] sm:$0xf0]
        %v2428 = vld [vmem:[%s1579 + $0xa0] sm:$0xf0]
        %v2429 = vld [vmem:[%s1579 + $0xa8] sm:$0xf]
        %v2430 = vld [vmem:[%s1579 + $0xb0] sm:$0xf]
        %v2431 = vld [vmem:[%s1579 + $0xb8] sm:$0xf]
        %v2432 = vld [vmem:[%s1579 + $0xc0] sm:$0xf0]
        %v2433 = vld [vmem:[%s1579 + $0xc8] sm:$0xf0]
        %v2434 = vld [vmem:[%s1579 + $0xd0] sm:$0xf0]
        %v2435 = vld [vmem:[%s1579 + $0xd8] sm:$0xf]
        %v2436 = vld [vmem:[%s1579 + $0xe0] sm:$0xf]
        %v2437 = vld [vmem:[%s1579 + $0xe8] sm:$0xf]
        %v2438 = vld [vmem:[%s1579 + $0xf0] sm:$0xf0]
        %v2439 = vld [vmem:[%s1579 + $0xf8] sm:$0xf0]
        %v2440 = vld [vmem:[%s1579 + $0x100] sm:$0xf0]
        %v2441 = vld [vmem:[%s1579 + $0x108] sm:$0xf]
        %v2442 = vld [vmem:[%s1579 + $0x110] sm:$0xf]
        %v2443 = vld [vmem:[%s1579 + $0x118] sm:$0xf]
        %v2444 = vld [vmem:[%s1579 + $0x120] sm:$0xf0]
        %v2445 = vld [vmem:[%s1579 + $0x128] sm:$0xf0]
        %v2446 = vld [vmem:[%s1579 + $0x130] sm:$0xf0]
        %v2447 = vld [vmem:[%s1579 + $0x138] sm:$0xf]
        %v2448 = vld [vmem:[%s1579 + $0x140] sm:$0xf]
        %v2449 = vld [vmem:[%s1579 + $0x148] sm:$0xf]
        %s2450 = scalar_lea.vmem %s259, 25 [#allocation4]
        %v2451 = vld [vmem:[%s2450] ss:$8 sm:$0x7]
        %v2453 = vlaneseq
        %v2454 = vshrl.u32 %v2453, 7
        %v2455 = vsub.s32 0, %v2454
        %v2456 = vrot.slane %v2451, %v2455
        %v2457 = vlaneseq
        %v2458 = vshrl.u32 %v2457, 7
        %v2459 = vsub.s32 1, %v2458
        %v2460 = vrot.slane %v2451, %v2459
        %v2461 = vlaneseq
        %v2462 = vshrl.u32 %v2461, 7
        %v2463 = vsub.s32 2, %v2462
        %v2464 = vrot.slane %v2451, %v2463
        %v2468 = vmul.f32 %v2408, %v2456
        %v2469 = vmul.f32 %v2409, %v2460
        %v2470 = vmul.f32 %v2410, %v2464
        %v2471 = vmul.f32 %v2411, %v2456
        %v2472 = vmul.f32 %v2412, %v2460
        %v2473 = vmul.f32 %v2413, %v2464
        %v2474 = vmul.f32 %v2414, %v2456
        %v2475 = vmul.f32 %v2415, %v2460
        %v2476 = vmul.f32 %v2416, %v2464
        %v2477 = vmul.f32 %v2417, %v2456
        %v2478 = vmul.f32 %v2418, %v2460
        %v2479 = vmul.f32 %v2419, %v2464
        %v2480 = vmul.f32 %v2420, %v2456
        %v2481 = vmul.f32 %v2421, %v2460
        %v2482 = vmul.f32 %v2422, %v2464
        %v2483 = vmul.f32 %v2423, %v2456
        %v2484 = vmul.f32 %v2424, %v2460
        %v2485 = vmul.f32 %v2425, %v2464
        %v2486 = vmul.f32 %v2426, %v2456
        %v2487 = vmul.f32 %v2427, %v2460
        %v2488 = vmul.f32 %v2428, %v2464
        %v2489 = vmul.f32 %v2429, %v2456
        %v2490 = vmul.f32 %v2430, %v2460
        %v2491 = vmul.f32 %v2431, %v2464
        %v2492 = vmul.f32 %v2432, %v2456
        %v2493 = vmul.f32 %v2433, %v2460
        %v2494 = vmul.f32 %v2434, %v2464
        %v2495 = vmul.f32 %v2435, %v2456
        %v2496 = vmul.f32 %v2436, %v2460
        %v2497 = vmul.f32 %v2437, %v2464
        %v2498 = vmul.f32 %v2438, %v2456
        %v2499 = vmul.f32 %v2439, %v2460
        %v2500 = vmul.f32 %v2440, %v2464
        %v2501 = vmul.f32 %v2441, %v2456
        %v2502 = vmul.f32 %v2442, %v2460
        %v2503 = vmul.f32 %v2443, %v2464
        %v2504 = vmul.f32 %v2444, %v2456
        %v2505 = vmul.f32 %v2445, %v2460
        %v2506 = vmul.f32 %v2446, %v2464
        %v2507 = vmul.f32 %v2447, %v2456
        %v2508 = vmul.f32 %v2448, %v2460
        %v2509 = vmul.f32 %v2449, %v2464
        %v2552 = vrot.slane %v2468, 4
        %v2553 = vrot.slane %v2471, 4
        %v2554 = vsel %vm1473, %v2552, %v2553
        %v2555 = vrot.slane %v2469, 4
        %v2556 = vrot.slane %v2472, 4
        %v2557 = vsel %vm1473, %v2555, %v2556
        %v2558 = vrot.slane %v2470, 4
        %v2559 = vrot.slane %v2473, 4
        %v2560 = vsel %vm1473, %v2558, %v2559
        %v2561 = vrot.slane %v2474, 4
        %v2562 = vrot.slane %v2477, 4
        %v2563 = vsel %vm1473, %v2561, %v2562
        %v2564 = vrot.slane %v2475, 4
        %v2565 = vrot.slane %v2478, 4
        %v2566 = vsel %vm1473, %v2564, %v2565
        %v2567 = vrot.slane %v2476, 4
        %v2568 = vrot.slane %v2479, 4
        %v2569 = vsel %vm1473, %v2567, %v2568
        %v2570 = vrot.slane %v2480, 4
        %v2571 = vrot.slane %v2483, 4
        %v2572 = vsel %vm1473, %v2570, %v2571
        %v2573 = vrot.slane %v2481, 4
        %v2574 = vrot.slane %v2484, 4
        %v2575 = vsel %vm1473, %v2573, %v2574
        %v2576 = vrot.slane %v2482, 4
        %v2577 = vrot.slane %v2485, 4
        %v2578 = vsel %vm1473, %v2576, %v2577
        %v2579 = vrot.slane %v2486, 4
        %v2580 = vrot.slane %v2489, 4
        %v2581 = vsel %vm1473, %v2579, %v2580
        %v2582 = vrot.slane %v2487, 4
        %v2583 = vrot.slane %v2490, 4
        %v2584 = vsel %vm1473, %v2582, %v2583
        %v2585 = vrot.slane %v2488, 4
        %v2586 = vrot.slane %v2491, 4
        %v2587 = vsel %vm1473, %v2585, %v2586
        %v2588 = vrot.slane %v2492, 4
        %v2589 = vrot.slane %v2495, 4
        %v2590 = vsel %vm1473, %v2588, %v2589
        %v2591 = vrot.slane %v2493, 4
        %v2592 = vrot.slane %v2496, 4
        %v2593 = vsel %vm1473, %v2591, %v2592
        %v2594 = vrot.slane %v2494, 4
        %v2595 = vrot.slane %v2497, 4
        %v2596 = vsel %vm1473, %v2594, %v2595
        %v2597 = vrot.slane %v2498, 4
        %v2598 = vrot.slane %v2501, 4
        %v2599 = vsel %vm1473, %v2597, %v2598
        %v2600 = vrot.slane %v2499, 4
        %v2601 = vrot.slane %v2502, 4
        %v2602 = vsel %vm1473, %v2600, %v2601
        %v2603 = vrot.slane %v2500, 4
        %v2604 = vrot.slane %v2503, 4
        %v2605 = vsel %vm1473, %v2603, %v2604
        %v2606 = vrot.slane %v2504, 4
        %v2607 = vrot.slane %v2507, 4
        %v2608 = vsel %vm1473, %v2606, %v2607
        %v2609 = vrot.slane %v2505, 4
        %v2610 = vrot.slane %v2508, 4
        %v2611 = vsel %vm1473, %v2609, %v2610
        %v2612 = vrot.slane %v2506, 4
        %v2613 = vrot.slane %v2509, 4
        %v2614 = vsel %vm1473, %v2612, %v2613
        %v2636 = vadd.f32 %v2387, %v2554
        %v2637 = vadd.f32 %v2388, %v2557
        %v2638 = vadd.f32 %v2389, %v2560
        %v2639 = vadd.f32 %v2390, %v2563
        %v2640 = vadd.f32 %v2391, %v2566
        %v2641 = vadd.f32 %v2392, %v2569
        %v2642 = vadd.f32 %v2393, %v2572
        %v2643 = vadd.f32 %v2394, %v2575
        %v2644 = vadd.f32 %v2395, %v2578
        %v2645 = vadd.f32 %v2396, %v2581
        %v2646 = vadd.f32 %v2397, %v2584
        %v2647 = vadd.f32 %v2398, %v2587
        %v2648 = vadd.f32 %v2399, %v2590
        %v2649 = vadd.f32 %v2400, %v2593
        %v2650 = vadd.f32 %v2401, %v2596
        %v2651 = vadd.f32 %v2402, %v2599
        %v2652 = vadd.f32 %v2403, %v2602
        %v2653 = vadd.f32 %v2404, %v2605
        %v2654 = vadd.f32 %v2405, %v2608
        %v2655 = vadd.f32 %v2406, %v2611
        %v2656 = vadd.f32 %v2407, %v2614
        %v2657 = vld [vmem:[%s456] sm:$0xff]
        %v2658 = vld [vmem:[%s456 + $0x8] sm:$0xff]
        %v2659 = vld [vmem:[%s456 + $0x10] sm:$0xff]
        %v2660 = vld [vmem:[%s456 + $0x30] sm:$0xff]
        %v2661 = vld [vmem:[%s456 + $0x38] sm:$0xff]
        %v2662 = vld [vmem:[%s456 + $0x40] sm:$0xff]
        %v2663 = vld [vmem:[%s456 + $0x60] sm:$0xff]
        %v2664 = vld [vmem:[%s456 + $0x68] sm:$0xff]
        %v2665 = vld [vmem:[%s456 + $0x70] sm:$0xff]
        %v2666 = vld [vmem:[%s456 + $0x90] sm:$0xff]
        %v2667 = vld [vmem:[%s456 + $0x98] sm:$0xff]
        %v2668 = vld [vmem:[%s456 + $0xa0] sm:$0xff]
        %v2669 = vld [vmem:[%s456 + $0xc0] sm:$0xff]
        %v2670 = vld [vmem:[%s456 + $0xc8] sm:$0xff]
        %v2671 = vld [vmem:[%s456 + $0xd0] sm:$0xff]
        %v2672 = vld [vmem:[%s456 + $0xf0] sm:$0xff]
        %v2673 = vld [vmem:[%s456 + $0xf8] sm:$0xff]
        %v2674 = vld [vmem:[%s456 + $0x100] sm:$0xff]
        %v2675 = vld [vmem:[%s456 + $0x120] sm:$0xff]
        %v2676 = vld [vmem:[%s456 + $0x128] sm:$0xff]
        %v2677 = vld [vmem:[%s456 + $0x130] sm:$0xff]
        %s2678 = scalar_lea.vmem %s259, 26 [#allocation4]
        %v2679 = vld [vmem:[%s2678] ss:$8 sm:$0x7]
        %v2681 = vlaneseq
        %v2682 = vshrl.u32 %v2681, 7
        %v2683 = vsub.s32 0, %v2682
        %v2684 = vrot.slane %v2679, %v2683
        %v2685 = vlaneseq
        %v2686 = vshrl.u32 %v2685, 7
        %v2687 = vsub.s32 1, %v2686
        %v2688 = vrot.slane %v2679, %v2687
        %v2689 = vlaneseq
        %v2690 = vshrl.u32 %v2689, 7
        %v2691 = vsub.s32 2, %v2690
        %v2692 = vrot.slane %v2679, %v2691
        %v2696 = vmul.f32 %v2657, %v2684
        %v2697 = vmul.f32 %v2658, %v2688
        %v2698 = vmul.f32 %v2659, %v2692
        %v2699 = vmul.f32 %v2660, %v2684
        %v2700 = vmul.f32 %v2661, %v2688
        %v2701 = vmul.f32 %v2662, %v2692
        %v2702 = vmul.f32 %v2663, %v2684
        %v2703 = vmul.f32 %v2664, %v2688
        %v2704 = vmul.f32 %v2665, %v2692
        %v2705 = vmul.f32 %v2666, %v2684
        %v2706 = vmul.f32 %v2667, %v2688
        %v2707 = vmul.f32 %v2668, %v2692
        %v2708 = vmul.f32 %v2669, %v2684
        %v2709 = vmul.f32 %v2670, %v2688
        %v2710 = vmul.f32 %v2671, %v2692
        %v2711 = vmul.f32 %v2672, %v2684
        %v2712 = vmul.f32 %v2673, %v2688
        %v2713 = vmul.f32 %v2674, %v2692
        %v2714 = vmul.f32 %v2675, %v2684
        %v2715 = vmul.f32 %v2676, %v2688
        %v2716 = vmul.f32 %v2677, %v2692
        %v2717 = vadd.f32 %v2636, %v2696
        %v2718 = vadd.f32 %v2637, %v2697
        %v2719 = vadd.f32 %v2638, %v2698
        %v2720 = vadd.f32 %v2639, %v2699
        %v2721 = vadd.f32 %v2640, %v2700
        %v2722 = vadd.f32 %v2641, %v2701
        %v2723 = vadd.f32 %v2642, %v2702
        %v2724 = vadd.f32 %v2643, %v2703
        %v2725 = vadd.f32 %v2644, %v2704
        %v2726 = vadd.f32 %v2645, %v2705
        %v2727 = vadd.f32 %v2646, %v2706
        %v2728 = vadd.f32 %v2647, %v2707
        %v2729 = vadd.f32 %v2648, %v2708
        %v2730 = vadd.f32 %v2649, %v2709
        %v2731 = vadd.f32 %v2650, %v2710
        %v2732 = vadd.f32 %v2651, %v2711
        %v2733 = vadd.f32 %v2652, %v2712
        %v2734 = vadd.f32 %v2653, %v2713
        %v2735 = vadd.f32 %v2654, %v2714
        %v2736 = vadd.f32 %v2655, %v2715
        %v2737 = vadd.f32 %v2656, %v2716
        %v2738 = vld [vmem:[%s456] sm:$0xfe]
        %v2739 = vld [vmem:[%s456 + $0x8] sm:$0xfe]
        %v2740 = vld [vmem:[%s456 + $0x10] sm:$0xfe]
        %v2741 = vld [vmem:[%s456 + $0x18] sm:$0x1]
        %v2742 = vld [vmem:[%s456 + $0x20] sm:$0x1]
        %v2743 = vld [vmem:[%s456 + $0x28] sm:$0x1]
        %v2744 = vld [vmem:[%s456 + $0x30] sm:$0xfe]
        %v2745 = vld [vmem:[%s456 + $0x38] sm:$0xfe]
        %v2746 = vld [vmem:[%s456 + $0x40] sm:$0xfe]
        %v2747 = vld [vmem:[%s456 + $0x48] sm:$0x1]
        %v2748 = vld [vmem:[%s456 + $0x50] sm:$0x1]
        %v2749 = vld [vmem:[%s456 + $0x58] sm:$0x1]
        %v2750 = vld [vmem:[%s456 + $0x60] sm:$0xfe]
        %v2751 = vld [vmem:[%s456 + $0x68] sm:$0xfe]
        %v2752 = vld [vmem:[%s456 + $0x70] sm:$0xfe]
        %v2753 = vld [vmem:[%s456 + $0x78] sm:$0x1]
        %v2754 = vld [vmem:[%s456 + $0x80] sm:$0x1]
        %v2755 = vld [vmem:[%s456 + $0x88] sm:$0x1]
        %v2756 = vld [vmem:[%s456 + $0x90] sm:$0xfe]
        %v2757 = vld [vmem:[%s456 + $0x98] sm:$0xfe]
        %v2758 = vld [vmem:[%s456 + $0xa0] sm:$0xfe]
        %v2759 = vld [vmem:[%s456 + $0xa8] sm:$0x1]
        %v2760 = vld [vmem:[%s456 + $0xb0] sm:$0x1]
        %v2761 = vld [vmem:[%s456 + $0xb8] sm:$0x1]
        %v2762 = vld [vmem:[%s456 + $0xc0] sm:$0xfe]
        %v2763 = vld [vmem:[%s456 + $0xc8] sm:$0xfe]
        %v2764 = vld [vmem:[%s456 + $0xd0] sm:$0xfe]
        %v2765 = vld [vmem:[%s456 + $0xd8] sm:$0x1]
        %v2766 = vld [vmem:[%s456 + $0xe0] sm:$0x1]
        %v2767 = vld [vmem:[%s456 + $0xe8] sm:$0x1]
        %v2768 = vld [vmem:[%s456 + $0xf0] sm:$0xfe]
        %v2769 = vld [vmem:[%s456 + $0xf8] sm:$0xfe]
        %v2770 = vld [vmem:[%s456 + $0x100] sm:$0xfe]
        %v2771 = vld [vmem:[%s456 + $0x108] sm:$0x1]
        %v2772 = vld [vmem:[%s456 + $0x110] sm:$0x1]
        %v2773 = vld [vmem:[%s456 + $0x118] sm:$0x1]
        %v2774 = vld [vmem:[%s456 + $0x120] sm:$0xfe]
        %v2775 = vld [vmem:[%s456 + $0x128] sm:$0xfe]
        %v2776 = vld [vmem:[%s456 + $0x130] sm:$0xfe]
        %v2777 = vld [vmem:[%s456 + $0x138] sm:$0x1]
        %v2778 = vld [vmem:[%s456 + $0x140] sm:$0x1]
        %v2779 = vld [vmem:[%s456 + $0x148] sm:$0x1]
        %s2780 = scalar_lea.vmem %s259, 27 [#allocation4]
        %v2781 = vld [vmem:[%s2780] ss:$8 sm:$0x7]
        %v2783 = vlaneseq
        %v2784 = vshrl.u32 %v2783, 7
        %v2785 = vsub.s32 0, %v2784
        %v2786 = vrot.slane %v2781, %v2785
        %v2787 = vlaneseq
        %v2788 = vshrl.u32 %v2787, 7
        %v2789 = vsub.s32 1, %v2788
        %v2790 = vrot.slane %v2781, %v2789
        %v2791 = vlaneseq
        %v2792 = vshrl.u32 %v2791, 7
        %v2793 = vsub.s32 2, %v2792
        %v2794 = vrot.slane %v2781, %v2793
        %v2798 = vmul.f32 %v2738, %v2786
        %v2799 = vmul.f32 %v2739, %v2790
        %v2800 = vmul.f32 %v2740, %v2794
        %v2801 = vmul.f32 %v2741, %v2786
        %v2802 = vmul.f32 %v2742, %v2790
        %v2803 = vmul.f32 %v2743, %v2794
        %v2804 = vmul.f32 %v2744, %v2786
        %v2805 = vmul.f32 %v2745, %v2790
        %v2806 = vmul.f32 %v2746, %v2794
        %v2807 = vmul.f32 %v2747, %v2786
        %v2808 = vmul.f32 %v2748, %v2790
        %v2809 = vmul.f32 %v2749, %v2794
        %v2810 = vmul.f32 %v2750, %v2786
        %v2811 = vmul.f32 %v2751, %v2790
        %v2812 = vmul.f32 %v2752, %v2794
        %v2813 = vmul.f32 %v2753, %v2786
        %v2814 = vmul.f32 %v2754, %v2790
        %v2815 = vmul.f32 %v2755, %v2794
        %v2816 = vmul.f32 %v2756, %v2786
        %v2817 = vmul.f32 %v2757, %v2790
        %v2818 = vmul.f32 %v2758, %v2794
        %v2819 = vmul.f32 %v2759, %v2786
        %v2820 = vmul.f32 %v2760, %v2790
        %v2821 = vmul.f32 %v2761, %v2794
        %v2822 = vmul.f32 %v2762, %v2786
        %v2823 = vmul.f32 %v2763, %v2790
        %v2824 = vmul.f32 %v2764, %v2794
        %v2825 = vmul.f32 %v2765, %v2786
        %v2826 = vmul.f32 %v2766, %v2790
        %v2827 = vmul.f32 %v2767, %v2794
        %v2828 = vmul.f32 %v2768, %v2786
        %v2829 = vmul.f32 %v2769, %v2790
        %v2830 = vmul.f32 %v2770, %v2794
        %v2831 = vmul.f32 %v2771, %v2786
        %v2832 = vmul.f32 %v2772, %v2790
        %v2833 = vmul.f32 %v2773, %v2794
        %v2834 = vmul.f32 %v2774, %v2786
        %v2835 = vmul.f32 %v2775, %v2790
        %v2836 = vmul.f32 %v2776, %v2794
        %v2837 = vmul.f32 %v2777, %v2786
        %v2838 = vmul.f32 %v2778, %v2790
        %v2839 = vmul.f32 %v2779, %v2794
        %v2882 = vrot.slane %v2798, 1
        %v2883 = vrot.slane %v2801, 1
        %v2884 = vsel %vm723, %v2882, %v2883
        %v2885 = vrot.slane %v2799, 1
        %v2886 = vrot.slane %v2802, 1
        %v2887 = vsel %vm723, %v2885, %v2886
        %v2888 = vrot.slane %v2800, 1
        %v2889 = vrot.slane %v2803, 1
        %v2890 = vsel %vm723, %v2888, %v2889
        %v2891 = vrot.slane %v2804, 1
        %v2892 = vrot.slane %v2807, 1
        %v2893 = vsel %vm723, %v2891, %v2892
        %v2894 = vrot.slane %v2805, 1
        %v2895 = vrot.slane %v2808, 1
        %v2896 = vsel %vm723, %v2894, %v2895
        %v2897 = vrot.slane %v2806, 1
        %v2898 = vrot.slane %v2809, 1
        %v2899 = vsel %vm723, %v2897, %v2898
        %v2900 = vrot.slane %v2810, 1
        %v2901 = vrot.slane %v2813, 1
        %v2902 = vsel %vm723, %v2900, %v2901
        %v2903 = vrot.slane %v2811, 1
        %v2904 = vrot.slane %v2814, 1
        %v2905 = vsel %vm723, %v2903, %v2904
        %v2906 = vrot.slane %v2812, 1
        %v2907 = vrot.slane %v2815, 1
        %v2908 = vsel %vm723, %v2906, %v2907
        %v2909 = vrot.slane %v2816, 1
        %v2910 = vrot.slane %v2819, 1
        %v2911 = vsel %vm723, %v2909, %v2910
        %v2912 = vrot.slane %v2817, 1
        %v2913 = vrot.slane %v2820, 1
        %v2914 = vsel %vm723, %v2912, %v2913
        %v2915 = vrot.slane %v2818, 1
        %v2916 = vrot.slane %v2821, 1
        %v2917 = vsel %vm723, %v2915, %v2916
        %v2918 = vrot.slane %v2822, 1
        %v2919 = vrot.slane %v2825, 1
        %v2920 = vsel %vm723, %v2918, %v2919
        %v2921 = vrot.slane %v2823, 1
        %v2922 = vrot.slane %v2826, 1
        %v2923 = vsel %vm723, %v2921, %v2922
        %v2924 = vrot.slane %v2824, 1
        %v2925 = vrot.slane %v2827, 1
        %v2926 = vsel %vm723, %v2924, %v2925
        %v2927 = vrot.slane %v2828, 1
        %v2928 = vrot.slane %v2831, 1
        %v2929 = vsel %vm723, %v2927, %v2928
        %v2930 = vrot.slane %v2829, 1
        %v2931 = vrot.slane %v2832, 1
        %v2932 = vsel %vm723, %v2930, %v2931
        %v2933 = vrot.slane %v2830, 1
        %v2934 = vrot.slane %v2833, 1
        %v2935 = vsel %vm723, %v2933, %v2934
        %v2936 = vrot.slane %v2834, 1
        %v2937 = vrot.slane %v2837, 1
        %v2938 = vsel %vm723, %v2936, %v2937
        %v2939 = vrot.slane %v2835, 1
        %v2940 = vrot.slane %v2838, 1
        %v2941 = vsel %vm723, %v2939, %v2940
        %v2942 = vrot.slane %v2836, 1
        %v2943 = vrot.slane %v2839, 1
        %v2944 = vsel %vm723, %v2942, %v2943
        %v2966 = vadd.f32 %v2717, %v2884
        %v2967 = vadd.f32 %v2718, %v2887
        %v2968 = vadd.f32 %v2719, %v2890
        %v2969 = vadd.f32 %v2720, %v2893
        %v2970 = vadd.f32 %v2721, %v2896
        %v2971 = vadd.f32 %v2722, %v2899
        %v2972 = vadd.f32 %v2723, %v2902
        %v2973 = vadd.f32 %v2724, %v2905
        %v2974 = vadd.f32 %v2725, %v2908
        %v2975 = vadd.f32 %v2726, %v2911
        %v2976 = vadd.f32 %v2727, %v2914
        %v2977 = vadd.f32 %v2728, %v2917
        %v2978 = vadd.f32 %v2729, %v2920
        %v2979 = vadd.f32 %v2730, %v2923
        %v2980 = vadd.f32 %v2731, %v2926
        %v2981 = vadd.f32 %v2732, %v2929
        %v2982 = vadd.f32 %v2733, %v2932
        %v2983 = vadd.f32 %v2734, %v2935
        %v2984 = vadd.f32 %v2735, %v2938
        %v2985 = vadd.f32 %v2736, %v2941
        %v2986 = vadd.f32 %v2737, %v2944
        %v2987 = vld [vmem:[%s456] sm:$0xfc]
        %v2988 = vld [vmem:[%s456 + $0x8] sm:$0xfc]
        %v2989 = vld [vmem:[%s456 + $0x10] sm:$0xfc]
        %v2990 = vld [vmem:[%s456 + $0x18] sm:$0x3]
        %v2991 = vld [vmem:[%s456 + $0x20] sm:$0x3]
        %v2992 = vld [vmem:[%s456 + $0x28] sm:$0x3]
        %v2993 = vld [vmem:[%s456 + $0x30] sm:$0xfc]
        %v2994 = vld [vmem:[%s456 + $0x38] sm:$0xfc]
        %v2995 = vld [vmem:[%s456 + $0x40] sm:$0xfc]
        %v2996 = vld [vmem:[%s456 + $0x48] sm:$0x3]
        %v2997 = vld [vmem:[%s456 + $0x50] sm:$0x3]
        %v2998 = vld [vmem:[%s456 + $0x58] sm:$0x3]
        %v2999 = vld [vmem:[%s456 + $0x60] sm:$0xfc]
        %v3000 = vld [vmem:[%s456 + $0x68] sm:$0xfc]
        %v3001 = vld [vmem:[%s456 + $0x70] sm:$0xfc]
        %v3002 = vld [vmem:[%s456 + $0x78] sm:$0x3]
        %v3003 = vld [vmem:[%s456 + $0x80] sm:$0x3]
        %v3004 = vld [vmem:[%s456 + $0x88] sm:$0x3]
        %v3005 = vld [vmem:[%s456 + $0x90] sm:$0xfc]
        %v3006 = vld [vmem:[%s456 + $0x98] sm:$0xfc]
        %v3007 = vld [vmem:[%s456 + $0xa0] sm:$0xfc]
        %v3008 = vld [vmem:[%s456 + $0xa8] sm:$0x3]
        %v3009 = vld [vmem:[%s456 + $0xb0] sm:$0x3]
        %v3010 = vld [vmem:[%s456 + $0xb8] sm:$0x3]
        %v3011 = vld [vmem:[%s456 + $0xc0] sm:$0xfc]
        %v3012 = vld [vmem:[%s456 + $0xc8] sm:$0xfc]
        %v3013 = vld [vmem:[%s456 + $0xd0] sm:$0xfc]
        %v3014 = vld [vmem:[%s456 + $0xd8] sm:$0x3]
        %v3015 = vld [vmem:[%s456 + $0xe0] sm:$0x3]
        %v3016 = vld [vmem:[%s456 + $0xe8] sm:$0x3]
        %v3017 = vld [vmem:[%s456 + $0xf0] sm:$0xfc]
        %v3018 = vld [vmem:[%s456 + $0xf8] sm:$0xfc]
        %v3019 = vld [vmem:[%s456 + $0x100] sm:$0xfc]
        %v3020 = vld [vmem:[%s456 + $0x108] sm:$0x3]
        %v3021 = vld [vmem:[%s456 + $0x110] sm:$0x3]
        %v3022 = vld [vmem:[%s456 + $0x118] sm:$0x3]
        %v3023 = vld [vmem:[%s456 + $0x120] sm:$0xfc]
        %v3024 = vld [vmem:[%s456 + $0x128] sm:$0xfc]
        %v3025 = vld [vmem:[%s456 + $0x130] sm:$0xfc]
        %v3026 = vld [vmem:[%s456 + $0x138] sm:$0x3]
        %v3027 = vld [vmem:[%s456 + $0x140] sm:$0x3]
        %v3028 = vld [vmem:[%s456 + $0x148] sm:$0x3]
        %s3029 = scalar_lea.vmem %s259, 28 [#allocation4]
        %v3030 = vld [vmem:[%s3029] ss:$8 sm:$0x7]
        %v3032 = vlaneseq
        %v3033 = vshrl.u32 %v3032, 7
        %v3034 = vsub.s32 0, %v3033
        %v3035 = vrot.slane %v3030, %v3034
        %v3036 = vlaneseq
        %v3037 = vshrl.u32 %v3036, 7
        %v3038 = vsub.s32 1, %v3037
        %v3039 = vrot.slane %v3030, %v3038
        %v3040 = vlaneseq
        %v3041 = vshrl.u32 %v3040, 7
        %v3042 = vsub.s32 2, %v3041
        %v3043 = vrot.slane %v3030, %v3042
        %v3047 = vmul.f32 %v2987, %v3035
        %v3048 = vmul.f32 %v2988, %v3039
        %v3049 = vmul.f32 %v2989, %v3043
        %v3050 = vmul.f32 %v2990, %v3035
        %v3051 = vmul.f32 %v2991, %v3039
        %v3052 = vmul.f32 %v2992, %v3043
        %v3053 = vmul.f32 %v2993, %v3035
        %v3054 = vmul.f32 %v2994, %v3039
        %v3055 = vmul.f32 %v2995, %v3043
        %v3056 = vmul.f32 %v2996, %v3035
        %v3057 = vmul.f32 %v2997, %v3039
        %v3058 = vmul.f32 %v2998, %v3043
        %v3059 = vmul.f32 %v2999, %v3035
        %v3060 = vmul.f32 %v3000, %v3039
        %v3061 = vmul.f32 %v3001, %v3043
        %v3062 = vmul.f32 %v3002, %v3035
        %v3063 = vmul.f32 %v3003, %v3039
        %v3064 = vmul.f32 %v3004, %v3043
        %v3065 = vmul.f32 %v3005, %v3035
        %v3066 = vmul.f32 %v3006, %v3039
        %v3067 = vmul.f32 %v3007, %v3043
        %v3068 = vmul.f32 %v3008, %v3035
        %v3069 = vmul.f32 %v3009, %v3039
        %v3070 = vmul.f32 %v3010, %v3043
        %v3071 = vmul.f32 %v3011, %v3035
        %v3072 = vmul.f32 %v3012, %v3039
        %v3073 = vmul.f32 %v3013, %v3043
        %v3074 = vmul.f32 %v3014, %v3035
        %v3075 = vmul.f32 %v3015, %v3039
        %v3076 = vmul.f32 %v3016, %v3043
        %v3077 = vmul.f32 %v3017, %v3035
        %v3078 = vmul.f32 %v3018, %v3039
        %v3079 = vmul.f32 %v3019, %v3043
        %v3080 = vmul.f32 %v3020, %v3035
        %v3081 = vmul.f32 %v3021, %v3039
        %v3082 = vmul.f32 %v3022, %v3043
        %v3083 = vmul.f32 %v3023, %v3035
        %v3084 = vmul.f32 %v3024, %v3039
        %v3085 = vmul.f32 %v3025, %v3043
        %v3086 = vmul.f32 %v3026, %v3035
        %v3087 = vmul.f32 %v3027, %v3039
        %v3088 = vmul.f32 %v3028, %v3043
        %v3131 = vrot.slane %v3047, 2
        %v3132 = vrot.slane %v3050, 2
        %v3133 = vsel %vm973, %v3131, %v3132
        %v3134 = vrot.slane %v3048, 2
        %v3135 = vrot.slane %v3051, 2
        %v3136 = vsel %vm973, %v3134, %v3135
        %v3137 = vrot.slane %v3049, 2
        %v3138 = vrot.slane %v3052, 2
        %v3139 = vsel %vm973, %v3137, %v3138
        %v3140 = vrot.slane %v3053, 2
        %v3141 = vrot.slane %v3056, 2
        %v3142 = vsel %vm973, %v3140, %v3141
        %v3143 = vrot.slane %v3054, 2
        %v3144 = vrot.slane %v3057, 2
        %v3145 = vsel %vm973, %v3143, %v3144
        %v3146 = vrot.slane %v3055, 2
        %v3147 = vrot.slane %v3058, 2
        %v3148 = vsel %vm973, %v3146, %v3147
        %v3149 = vrot.slane %v3059, 2
        %v3150 = vrot.slane %v3062, 2
        %v3151 = vsel %vm973, %v3149, %v3150
        %v3152 = vrot.slane %v3060, 2
        %v3153 = vrot.slane %v3063, 2
        %v3154 = vsel %vm973, %v3152, %v3153
        %v3155 = vrot.slane %v3061, 2
        %v3156 = vrot.slane %v3064, 2
        %v3157 = vsel %vm973, %v3155, %v3156
        %v3158 = vrot.slane %v3065, 2
        %v3159 = vrot.slane %v3068, 2
        %v3160 = vsel %vm973, %v3158, %v3159
        %v3161 = vrot.slane %v3066, 2
        %v3162 = vrot.slane %v3069, 2
        %v3163 = vsel %vm973, %v3161, %v3162
        %v3164 = vrot.slane %v3067, 2
        %v3165 = vrot.slane %v3070, 2
        %v3166 = vsel %vm973, %v3164, %v3165
        %v3167 = vrot.slane %v3071, 2
        %v3168 = vrot.slane %v3074, 2
        %v3169 = vsel %vm973, %v3167, %v3168
        %v3170 = vrot.slane %v3072, 2
        %v3171 = vrot.slane %v3075, 2
        %v3172 = vsel %vm973, %v3170, %v3171
        %v3173 = vrot.slane %v3073, 2
        %v3174 = vrot.slane %v3076, 2
        %v3175 = vsel %vm973, %v3173, %v3174
        %v3176 = vrot.slane %v3077, 2
        %v3177 = vrot.slane %v3080, 2
        %v3178 = vsel %vm973, %v3176, %v3177
        %v3179 = vrot.slane %v3078, 2
        %v3180 = vrot.slane %v3081, 2
        %v3181 = vsel %vm973, %v3179, %v3180
        %v3182 = vrot.slane %v3079, 2
        %v3183 = vrot.slane %v3082, 2
        %v3184 = vsel %vm973, %v3182, %v3183
        %v3185 = vrot.slane %v3083, 2
        %v3186 = vrot.slane %v3086, 2
        %v3187 = vsel %vm973, %v3185, %v3186
        %v3188 = vrot.slane %v3084, 2
        %v3189 = vrot.slane %v3087, 2
        %v3190 = vsel %vm973, %v3188, %v3189
        %v3191 = vrot.slane %v3085, 2
        %v3192 = vrot.slane %v3088, 2
        %v3193 = vsel %vm973, %v3191, %v3192
        %v3215 = vadd.f32 %v2966, %v3133
        %v3216 = vadd.f32 %v2967, %v3136
        %v3217 = vadd.f32 %v2968, %v3139
        %v3218 = vadd.f32 %v2969, %v3142
        %v3219 = vadd.f32 %v2970, %v3145
        %v3220 = vadd.f32 %v2971, %v3148
        %v3221 = vadd.f32 %v2972, %v3151
        %v3222 = vadd.f32 %v2973, %v3154
        %v3223 = vadd.f32 %v2974, %v3157
        %v3224 = vadd.f32 %v2975, %v3160
        %v3225 = vadd.f32 %v2976, %v3163
        %v3226 = vadd.f32 %v2977, %v3166
        %v3227 = vadd.f32 %v2978, %v3169
        %v3228 = vadd.f32 %v2979, %v3172
        %v3229 = vadd.f32 %v2980, %v3175
        %v3230 = vadd.f32 %v2981, %v3178
        %v3231 = vadd.f32 %v2982, %v3181
        %v3232 = vadd.f32 %v2983, %v3184
        %v3233 = vadd.f32 %v2984, %v3187
        %v3234 = vadd.f32 %v2985, %v3190
        %v3235 = vadd.f32 %v2986, %v3193
        %v3236 = vld [vmem:[%s456] sm:$0xf8]
        %v3237 = vld [vmem:[%s456 + $0x8] sm:$0xf8]
        %v3238 = vld [vmem:[%s456 + $0x10] sm:$0xf8]
        %v3239 = vld [vmem:[%s456 + $0x18] sm:$0x7]
        %v3240 = vld [vmem:[%s456 + $0x20] sm:$0x7]
        %v3241 = vld [vmem:[%s456 + $0x28] sm:$0x7]
        %v3242 = vld [vmem:[%s456 + $0x30] sm:$0xf8]
        %v3243 = vld [vmem:[%s456 + $0x38] sm:$0xf8]
        %v3244 = vld [vmem:[%s456 + $0x40] sm:$0xf8]
        %v3245 = vld [vmem:[%s456 + $0x48] sm:$0x7]
        %v3246 = vld [vmem:[%s456 + $0x50] sm:$0x7]
        %v3247 = vld [vmem:[%s456 + $0x58] sm:$0x7]
        %v3248 = vld [vmem:[%s456 + $0x60] sm:$0xf8]
        %v3249 = vld [vmem:[%s456 + $0x68] sm:$0xf8]
        %v3250 = vld [vmem:[%s456 + $0x70] sm:$0xf8]
        %v3251 = vld [vmem:[%s456 + $0x78] sm:$0x7]
        %v3252 = vld [vmem:[%s456 + $0x80] sm:$0x7]
        %v3253 = vld [vmem:[%s456 + $0x88] sm:$0x7]
        %v3254 = vld [vmem:[%s456 + $0x90] sm:$0xf8]
        %v3255 = vld [vmem:[%s456 + $0x98] sm:$0xf8]
        %v3256 = vld [vmem:[%s456 + $0xa0] sm:$0xf8]
        %v3257 = vld [vmem:[%s456 + $0xa8] sm:$0x7]
        %v3258 = vld [vmem:[%s456 + $0xb0] sm:$0x7]
        %v3259 = vld [vmem:[%s456 + $0xb8] sm:$0x7]
        %v3260 = vld [vmem:[%s456 + $0xc0] sm:$0xf8]
        %v3261 = vld [vmem:[%s456 + $0xc8] sm:$0xf8]
        %v3262 = vld [vmem:[%s456 + $0xd0] sm:$0xf8]
        %v3263 = vld [vmem:[%s456 + $0xd8] sm:$0x7]
        %v3264 = vld [vmem:[%s456 + $0xe0] sm:$0x7]
        %v3265 = vld [vmem:[%s456 + $0xe8] sm:$0x7]
        %v3266 = vld [vmem:[%s456 + $0xf0] sm:$0xf8]
        %v3267 = vld [vmem:[%s456 + $0xf8] sm:$0xf8]
        %v3268 = vld [vmem:[%s456 + $0x100] sm:$0xf8]
        %v3269 = vld [vmem:[%s456 + $0x108] sm:$0x7]
        %v3270 = vld [vmem:[%s456 + $0x110] sm:$0x7]
        %v3271 = vld [vmem:[%s456 + $0x118] sm:$0x7]
        %v3272 = vld [vmem:[%s456 + $0x120] sm:$0xf8]
        %v3273 = vld [vmem:[%s456 + $0x128] sm:$0xf8]
        %v3274 = vld [vmem:[%s456 + $0x130] sm:$0xf8]
        %v3275 = vld [vmem:[%s456 + $0x138] sm:$0x7]
        %v3276 = vld [vmem:[%s456 + $0x140] sm:$0x7]
        %v3277 = vld [vmem:[%s456 + $0x148] sm:$0x7]
        %s3278 = scalar_lea.vmem %s259, 29 [#allocation4]
        %v3279 = vld [vmem:[%s3278] ss:$8 sm:$0x7]
        %v3281 = vlaneseq
        %v3282 = vshrl.u32 %v3281, 7
        %v3283 = vsub.s32 0, %v3282
        %v3284 = vrot.slane %v3279, %v3283
        %v3285 = vlaneseq
        %v3286 = vshrl.u32 %v3285, 7
        %v3287 = vsub.s32 1, %v3286
        %v3288 = vrot.slane %v3279, %v3287
        %v3289 = vlaneseq
        %v3290 = vshrl.u32 %v3289, 7
        %v3291 = vsub.s32 2, %v3290
        %v3292 = vrot.slane %v3279, %v3291
        %v3296 = vmul.f32 %v3236, %v3284
        %v3297 = vmul.f32 %v3237, %v3288
        %v3298 = vmul.f32 %v3238, %v3292
        %v3299 = vmul.f32 %v3239, %v3284
        %v3300 = vmul.f32 %v3240, %v3288
        %v3301 = vmul.f32 %v3241, %v3292
        %v3302 = vmul.f32 %v3242, %v3284
        %v3303 = vmul.f32 %v3243, %v3288
        %v3304 = vmul.f32 %v3244, %v3292
        %v3305 = vmul.f32 %v3245, %v3284
        %v3306 = vmul.f32 %v3246, %v3288
        %v3307 = vmul.f32 %v3247, %v3292
        %v3308 = vmul.f32 %v3248, %v3284
        %v3309 = vmul.f32 %v3249, %v3288
        %v3310 = vmul.f32 %v3250, %v3292
        %v3311 = vmul.f32 %v3251, %v3284
        %v3312 = vmul.f32 %v3252, %v3288
        %v3313 = vmul.f32 %v3253, %v3292
        %v3314 = vmul.f32 %v3254, %v3284
        %v3315 = vmul.f32 %v3255, %v3288
        %v3316 = vmul.f32 %v3256, %v3292
        %v3317 = vmul.f32 %v3257, %v3284
        %v3318 = vmul.f32 %v3258, %v3288
        %v3319 = vmul.f32 %v3259, %v3292
        %v3320 = vmul.f32 %v3260, %v3284
        %v3321 = vmul.f32 %v3261, %v3288
        %v3322 = vmul.f32 %v3262, %v3292
        %v3323 = vmul.f32 %v3263, %v3284
        %v3324 = vmul.f32 %v3264, %v3288
        %v3325 = vmul.f32 %v3265, %v3292
        %v3326 = vmul.f32 %v3266, %v3284
        %v3327 = vmul.f32 %v3267, %v3288
        %v3328 = vmul.f32 %v3268, %v3292
        %v3329 = vmul.f32 %v3269, %v3284
        %v3330 = vmul.f32 %v3270, %v3288
        %v3331 = vmul.f32 %v3271, %v3292
        %v3332 = vmul.f32 %v3272, %v3284
        %v3333 = vmul.f32 %v3273, %v3288
        %v3334 = vmul.f32 %v3274, %v3292
        %v3335 = vmul.f32 %v3275, %v3284
        %v3336 = vmul.f32 %v3276, %v3288
        %v3337 = vmul.f32 %v3277, %v3292
        %v3380 = vrot.slane %v3296, 3
        %v3381 = vrot.slane %v3299, 3
        %v3382 = vsel %vm1223, %v3380, %v3381
        %v3383 = vrot.slane %v3297, 3
        %v3384 = vrot.slane %v3300, 3
        %v3385 = vsel %vm1223, %v3383, %v3384
        %v3386 = vrot.slane %v3298, 3
        %v3387 = vrot.slane %v3301, 3
        %v3388 = vsel %vm1223, %v3386, %v3387
        %v3389 = vrot.slane %v3302, 3
        %v3390 = vrot.slane %v3305, 3
        %v3391 = vsel %vm1223, %v3389, %v3390
        %v3392 = vrot.slane %v3303, 3
        %v3393 = vrot.slane %v3306, 3
        %v3394 = vsel %vm1223, %v3392, %v3393
        %v3395 = vrot.slane %v3304, 3
        %v3396 = vrot.slane %v3307, 3
        %v3397 = vsel %vm1223, %v3395, %v3396
        %v3398 = vrot.slane %v3308, 3
        %v3399 = vrot.slane %v3311, 3
        %v3400 = vsel %vm1223, %v3398, %v3399
        %v3401 = vrot.slane %v3309, 3
        %v3402 = vrot.slane %v3312, 3
        %v3403 = vsel %vm1223, %v3401, %v3402
        %v3404 = vrot.slane %v3310, 3
        %v3405 = vrot.slane %v3313, 3
        %v3406 = vsel %vm1223, %v3404, %v3405
        %v3407 = vrot.slane %v3314, 3
        %v3408 = vrot.slane %v3317, 3
        %v3409 = vsel %vm1223, %v3407, %v3408
        %v3410 = vrot.slane %v3315, 3
        %v3411 = vrot.slane %v3318, 3
        %v3412 = vsel %vm1223, %v3410, %v3411
        %v3413 = vrot.slane %v3316, 3
        %v3414 = vrot.slane %v3319, 3
        %v3415 = vsel %vm1223, %v3413, %v3414
        %v3416 = vrot.slane %v3320, 3
        %v3417 = vrot.slane %v3323, 3
        %v3418 = vsel %vm1223, %v3416, %v3417
        %v3419 = vrot.slane %v3321, 3
        %v3420 = vrot.slane %v3324, 3
        %v3421 = vsel %vm1223, %v3419, %v3420
        %v3422 = vrot.slane %v3322, 3
        %v3423 = vrot.slane %v3325, 3
        %v3424 = vsel %vm1223, %v3422, %v3423
        %v3425 = vrot.slane %v3326, 3
        %v3426 = vrot.slane %v3329, 3
        %v3427 = vsel %vm1223, %v3425, %v3426
        %v3428 = vrot.slane %v3327, 3
        %v3429 = vrot.slane %v3330, 3
        %v3430 = vsel %vm1223, %v3428, %v3429
        %v3431 = vrot.slane %v3328, 3
        %v3432 = vrot.slane %v3331, 3
        %v3433 = vsel %vm1223, %v3431, %v3432
        %v3434 = vrot.slane %v3332, 3
        %v3435 = vrot.slane %v3335, 3
        %v3436 = vsel %vm1223, %v3434, %v3435
        %v3437 = vrot.slane %v3333, 3
        %v3438 = vrot.slane %v3336, 3
        %v3439 = vsel %vm1223, %v3437, %v3438
        %v3440 = vrot.slane %v3334, 3
        %v3441 = vrot.slane %v3337, 3
        %v3442 = vsel %vm1223, %v3440, %v3441
        %v3464 = vadd.f32 %v3215, %v3382
        %v3465 = vadd.f32 %v3216, %v3385
        %v3466 = vadd.f32 %v3217, %v3388
        %v3467 = vadd.f32 %v3218, %v3391
        %v3468 = vadd.f32 %v3219, %v3394
        %v3469 = vadd.f32 %v3220, %v3397
        %v3470 = vadd.f32 %v3221, %v3400
        %v3471 = vadd.f32 %v3222, %v3403
        %v3472 = vadd.f32 %v3223, %v3406
        %v3473 = vadd.f32 %v3224, %v3409
        %v3474 = vadd.f32 %v3225, %v3412
        %v3475 = vadd.f32 %v3226, %v3415
        %v3476 = vadd.f32 %v3227, %v3418
        %v3477 = vadd.f32 %v3228, %v3421
        %v3478 = vadd.f32 %v3229, %v3424
        %v3479 = vadd.f32 %v3230, %v3427
        %v3480 = vadd.f32 %v3231, %v3430
        %v3481 = vadd.f32 %v3232, %v3433
        %v3482 = vadd.f32 %v3233, %v3436
        %v3483 = vadd.f32 %v3234, %v3439
        %v3484 = vadd.f32 %v3235, %v3442
        %v3485 = vld [vmem:[%s456] sm:$0xf0]
        %v3486 = vld [vmem:[%s456 + $0x8] sm:$0xf0]
        %v3487 = vld [vmem:[%s456 + $0x10] sm:$0xf0]
        %v3488 = vld [vmem:[%s456 + $0x18] sm:$0xf]
        %v3489 = vld [vmem:[%s456 + $0x20] sm:$0xf]
        %v3490 = vld [vmem:[%s456 + $0x28] sm:$0xf]
        %v3491 = vld [vmem:[%s456 + $0x30] sm:$0xf0]
        %v3492 = vld [vmem:[%s456 + $0x38] sm:$0xf0]
        %v3493 = vld [vmem:[%s456 + $0x40] sm:$0xf0]
        %v3494 = vld [vmem:[%s456 + $0x48] sm:$0xf]
        %v3495 = vld [vmem:[%s456 + $0x50] sm:$0xf]
        %v3496 = vld [vmem:[%s456 + $0x58] sm:$0xf]
        %v3497 = vld [vmem:[%s456 + $0x60] sm:$0xf0]
        %v3498 = vld [vmem:[%s456 + $0x68] sm:$0xf0]
        %v3499 = vld [vmem:[%s456 + $0x70] sm:$0xf0]
        %v3500 = vld [vmem:[%s456 + $0x78] sm:$0xf]
        %v3501 = vld [vmem:[%s456 + $0x80] sm:$0xf]
        %v3502 = vld [vmem:[%s456 + $0x88] sm:$0xf]
        %v3503 = vld [vmem:[%s456 + $0x90] sm:$0xf0]
        %v3504 = vld [vmem:[%s456 + $0x98] sm:$0xf0]
        %v3505 = vld [vmem:[%s456 + $0xa0] sm:$0xf0]
        %v3506 = vld [vmem:[%s456 + $0xa8] sm:$0xf]
        %v3507 = vld [vmem:[%s456 + $0xb0] sm:$0xf]
        %v3508 = vld [vmem:[%s456 + $0xb8] sm:$0xf]
        %v3509 = vld [vmem:[%s456 + $0xc0] sm:$0xf0]
        %v3510 = vld [vmem:[%s456 + $0xc8] sm:$0xf0]
        %v3511 = vld [vmem:[%s456 + $0xd0] sm:$0xf0]
        %v3512 = vld [vmem:[%s456 + $0xd8] sm:$0xf]
        %v3513 = vld [vmem:[%s456 + $0xe0] sm:$0xf]
        %v3514 = vld [vmem:[%s456 + $0xe8] sm:$0xf]
        %v3515 = vld [vmem:[%s456 + $0xf0] sm:$0xf0]
        %v3516 = vld [vmem:[%s456 + $0xf8] sm:$0xf0]
        %v3517 = vld [vmem:[%s456 + $0x100] sm:$0xf0]
        %v3518 = vld [vmem:[%s456 + $0x108] sm:$0xf]
        %v3519 = vld [vmem:[%s456 + $0x110] sm:$0xf]
        %v3520 = vld [vmem:[%s456 + $0x118] sm:$0xf]
        %v3521 = vld [vmem:[%s456 + $0x120] sm:$0xf0]
        %v3522 = vld [vmem:[%s456 + $0x128] sm:$0xf0]
        %v3523 = vld [vmem:[%s456 + $0x130] sm:$0xf0]
        %v3524 = vld [vmem:[%s456 + $0x138] sm:$0xf]
        %v3525 = vld [vmem:[%s456 + $0x140] sm:$0xf]
        %v3526 = vld [vmem:[%s456 + $0x148] sm:$0xf]
        %s3527 = scalar_lea.vmem %s259, 30 [#allocation4]
        %v3528 = vld [vmem:[%s3527] ss:$8 sm:$0x7]
        %v3530 = vlaneseq
        %v3531 = vshrl.u32 %v3530, 7
        %v3532 = vsub.s32 0, %v3531
        %v3533 = vrot.slane %v3528, %v3532
        %v3534 = vlaneseq
        %v3535 = vshrl.u32 %v3534, 7
        %v3536 = vsub.s32 1, %v3535
        %v3537 = vrot.slane %v3528, %v3536
        %v3538 = vlaneseq
        %v3539 = vshrl.u32 %v3538, 7
        %v3540 = vsub.s32 2, %v3539
        %v3541 = vrot.slane %v3528, %v3540
        %v3545 = vmul.f32 %v3485, %v3533
        %v3546 = vmul.f32 %v3486, %v3537
        %v3547 = vmul.f32 %v3487, %v3541
        %v3548 = vmul.f32 %v3488, %v3533
        %v3549 = vmul.f32 %v3489, %v3537
        %v3550 = vmul.f32 %v3490, %v3541
        %v3551 = vmul.f32 %v3491, %v3533
        %v3552 = vmul.f32 %v3492, %v3537
        %v3553 = vmul.f32 %v3493, %v3541
        %v3554 = vmul.f32 %v3494, %v3533
        %v3555 = vmul.f32 %v3495, %v3537
        %v3556 = vmul.f32 %v3496, %v3541
        %v3557 = vmul.f32 %v3497, %v3533
        %v3558 = vmul.f32 %v3498, %v3537
        %v3559 = vmul.f32 %v3499, %v3541
        %v3560 = vmul.f32 %v3500, %v3533
        %v3561 = vmul.f32 %v3501, %v3537
        %v3562 = vmul.f32 %v3502, %v3541
        %v3563 = vmul.f32 %v3503, %v3533
        %v3564 = vmul.f32 %v3504, %v3537
        %v3565 = vmul.f32 %v3505, %v3541
        %v3566 = vmul.f32 %v3506, %v3533
        %v3567 = vmul.f32 %v3507, %v3537
        %v3568 = vmul.f32 %v3508, %v3541
        %v3569 = vmul.f32 %v3509, %v3533
        %v3570 = vmul.f32 %v3510, %v3537
        %v3571 = vmul.f32 %v3511, %v3541
        %v3572 = vmul.f32 %v3512, %v3533
        %v3573 = vmul.f32 %v3513, %v3537
        %v3574 = vmul.f32 %v3514, %v3541
        %v3575 = vmul.f32 %v3515, %v3533
        %v3576 = vmul.f32 %v3516, %v3537
        %v3577 = vmul.f32 %v3517, %v3541
        %v3578 = vmul.f32 %v3518, %v3533
        %v3579 = vmul.f32 %v3519, %v3537
        %v3580 = vmul.f32 %v3520, %v3541
        %v3581 = vmul.f32 %v3521, %v3533
        %v3582 = vmul.f32 %v3522, %v3537
        %v3583 = vmul.f32 %v3523, %v3541
        %v3584 = vmul.f32 %v3524, %v3533
        %v3585 = vmul.f32 %v3525, %v3537
        %v3586 = vmul.f32 %v3526, %v3541
        %v3629 = vrot.slane %v3545, 4
        %v3630 = vrot.slane %v3548, 4
        %v3631 = vsel %vm1473, %v3629, %v3630
        %v3632 = vrot.slane %v3546, 4
        %v3633 = vrot.slane %v3549, 4
        %v3634 = vsel %vm1473, %v3632, %v3633
        %v3635 = vrot.slane %v3547, 4
        %v3636 = vrot.slane %v3550, 4
        %v3637 = vsel %vm1473, %v3635, %v3636
        %v3638 = vrot.slane %v3551, 4
        %v3639 = vrot.slane %v3554, 4
        %v3640 = vsel %vm1473, %v3638, %v3639
        %v3641 = vrot.slane %v3552, 4
        %v3642 = vrot.slane %v3555, 4
        %v3643 = vsel %vm1473, %v3641, %v3642
        %v3644 = vrot.slane %v3553, 4
        %v3645 = vrot.slane %v3556, 4
        %v3646 = vsel %vm1473, %v3644, %v3645
        %v3647 = vrot.slane %v3557, 4
        %v3648 = vrot.slane %v3560, 4
        %v3649 = vsel %vm1473, %v3647, %v3648
        %v3650 = vrot.slane %v3558, 4
        %v3651 = vrot.slane %v3561, 4
        %v3652 = vsel %vm1473, %v3650, %v3651
        %v3653 = vrot.slane %v3559, 4
        %v3654 = vrot.slane %v3562, 4
        %v3655 = vsel %vm1473, %v3653, %v3654
        %v3656 = vrot.slane %v3563, 4
        %v3657 = vrot.slane %v3566, 4
        %v3658 = vsel %vm1473, %v3656, %v3657
        %v3659 = vrot.slane %v3564, 4
        %v3660 = vrot.slane %v3567, 4
        %v3661 = vsel %vm1473, %v3659, %v3660
        %v3662 = vrot.slane %v3565, 4
        %v3663 = vrot.slane %v3568, 4
        %v3664 = vsel %vm1473, %v3662, %v3663
        %v3665 = vrot.slane %v3569, 4
        %v3666 = vrot.slane %v3572, 4
        %v3667 = vsel %vm1473, %v3665, %v3666
        %v3668 = vrot.slane %v3570, 4
        %v3669 = vrot.slane %v3573, 4
        %v3670 = vsel %vm1473, %v3668, %v3669
        %v3671 = vrot.slane %v3571, 4
        %v3672 = vrot.slane %v3574, 4
        %v3673 = vsel %vm1473, %v3671, %v3672
        %v3674 = vrot.slane %v3575, 4
        %v3675 = vrot.slane %v3578, 4
        %v3676 = vsel %vm1473, %v3674, %v3675
        %v3677 = vrot.slane %v3576, 4
        %v3678 = vrot.slane %v3579, 4
        %v3679 = vsel %vm1473, %v3677, %v3678
        %v3680 = vrot.slane %v3577, 4
        %v3681 = vrot.slane %v3580, 4
        %v3682 = vsel %vm1473, %v3680, %v3681
        %v3683 = vrot.slane %v3581, 4
        %v3684 = vrot.slane %v3584, 4
        %v3685 = vsel %vm1473, %v3683, %v3684
        %v3686 = vrot.slane %v3582, 4
        %v3687 = vrot.slane %v3585, 4
        %v3688 = vsel %vm1473, %v3686, %v3687
        %v3689 = vrot.slane %v3583, 4
        %v3690 = vrot.slane %v3586, 4
        %v3691 = vsel %vm1473, %v3689, %v3690
        %v3713 = vadd.f32 %v3464, %v3631
        %v3714 = vadd.f32 %v3465, %v3634
        %v3715 = vadd.f32 %v3466, %v3637
        %v3716 = vadd.f32 %v3467, %v3640
        %v3717 = vadd.f32 %v3468, %v3643
        %v3718 = vadd.f32 %v3469, %v3646
        %v3719 = vadd.f32 %v3470, %v3649
        %v3720 = vadd.f32 %v3471, %v3652
        %v3721 = vadd.f32 %v3472, %v3655
        %v3722 = vadd.f32 %v3473, %v3658
        %v3723 = vadd.f32 %v3474, %v3661
        %v3724 = vadd.f32 %v3475, %v3664
        %v3725 = vadd.f32 %v3476, %v3667
        %v3726 = vadd.f32 %v3477, %v3670
        %v3727 = vadd.f32 %v3478, %v3673
        %v3728 = vadd.f32 %v3479, %v3676
        %v3729 = vadd.f32 %v3480, %v3679
        %v3730 = vadd.f32 %v3481, %v3682
        %v3731 = vadd.f32 %v3482, %v3685
        %v3732 = vadd.f32 %v3483, %v3688
        %v3733 = vadd.f32 %v3484, %v3691
        %s3734 = scalar_lea.vmem [#allocation2], 144
        %v3735 = vld [vmem:[%s3734] sm:$0xff]
        %v3736 = vld [vmem:[%s3734 + $0x8] sm:$0xff]
        %v3737 = vld [vmem:[%s3734 + $0x10] sm:$0xff]
        %v3738 = vld [vmem:[%s3734 + $0x30] sm:$0xff]
        %v3739 = vld [vmem:[%s3734 + $0x38] sm:$0xff]
        %v3740 = vld [vmem:[%s3734 + $0x40] sm:$0xff]
        %v3741 = vld [vmem:[%s3734 + $0x60] sm:$0xff]
        %v3742 = vld [vmem:[%s3734 + $0x68] sm:$0xff]
        %v3743 = vld [vmem:[%s3734 + $0x70] sm:$0xff]
        %v3744 = vld [vmem:[%s3734 + $0x90] sm:$0xff]
        %v3745 = vld [vmem:[%s3734 + $0x98] sm:$0xff]
        %v3746 = vld [vmem:[%s3734 + $0xa0] sm:$0xff]
        %v3747 = vld [vmem:[%s3734 + $0xc0] sm:$0xff]
        %v3748 = vld [vmem:[%s3734 + $0xc8] sm:$0xff]
        %v3749 = vld [vmem:[%s3734 + $0xd0] sm:$0xff]
        %v3750 = vld [vmem:[%s3734 + $0xf0] sm:$0xff]
        %v3751 = vld [vmem:[%s3734 + $0xf8] sm:$0xff]
        %v3752 = vld [vmem:[%s3734 + $0x100] sm:$0xff]
        %v3753 = vld [vmem:[%s3734 + $0x120] sm:$0xff]
        %v3754 = vld [vmem:[%s3734 + $0x128] sm:$0xff]
        %v3755 = vld [vmem:[%s3734 + $0x130] sm:$0xff]
        %s3756 = scalar_lea.vmem %s259, 31 [#allocation4]
        %v3757 = vld [vmem:[%s3756] ss:$8 sm:$0x7]
        %v3759 = vlaneseq
        %v3760 = vshrl.u32 %v3759, 7
        %v3761 = vsub.s32 0, %v3760
        %v3762 = vrot.slane %v3757, %v3761
        %v3763 = vlaneseq
        %v3764 = vshrl.u32 %v3763, 7
        %v3765 = vsub.s32 1, %v3764
        %v3766 = vrot.slane %v3757, %v3765
        %v3767 = vlaneseq
        %v3768 = vshrl.u32 %v3767, 7
        %v3769 = vsub.s32 2, %v3768
        %v3770 = vrot.slane %v3757, %v3769
        %v3774 = vmul.f32 %v3735, %v3762
        %v3775 = vmul.f32 %v3736, %v3766
        %v3776 = vmul.f32 %v3737, %v3770
        %v3777 = vmul.f32 %v3738, %v3762
        %v3778 = vmul.f32 %v3739, %v3766
        %v3779 = vmul.f32 %v3740, %v3770
        %v3780 = vmul.f32 %v3741, %v3762
        %v3781 = vmul.f32 %v3742, %v3766
        %v3782 = vmul.f32 %v3743, %v3770
        %v3783 = vmul.f32 %v3744, %v3762
        %v3784 = vmul.f32 %v3745, %v3766
        %v3785 = vmul.f32 %v3746, %v3770
        %v3786 = vmul.f32 %v3747, %v3762
        %v3787 = vmul.f32 %v3748, %v3766
        %v3788 = vmul.f32 %v3749, %v3770
        %v3789 = vmul.f32 %v3750, %v3762
        %v3790 = vmul.f32 %v3751, %v3766
        %v3791 = vmul.f32 %v3752, %v3770
        %v3792 = vmul.f32 %v3753, %v3762
        %v3793 = vmul.f32 %v3754, %v3766
        %v3794 = vmul.f32 %v3755, %v3770
        %v3795 = vadd.f32 %v3713, %v3774
        %v3796 = vadd.f32 %v3714, %v3775
        %v3797 = vadd.f32 %v3715, %v3776
        %v3798 = vadd.f32 %v3716, %v3777
        %v3799 = vadd.f32 %v3717, %v3778
        %v3800 = vadd.f32 %v3718, %v3779
        %v3801 = vadd.f32 %v3719, %v3780
        %v3802 = vadd.f32 %v3720, %v3781
        %v3803 = vadd.f32 %v3721, %v3782
        %v3804 = vadd.f32 %v3722, %v3783
        %v3805 = vadd.f32 %v3723, %v3784
        %v3806 = vadd.f32 %v3724, %v3785
        %v3807 = vadd.f32 %v3725, %v3786
        %v3808 = vadd.f32 %v3726, %v3787
        %v3809 = vadd.f32 %v3727, %v3788
        %v3810 = vadd.f32 %v3728, %v3789
        %v3811 = vadd.f32 %v3729, %v3790
        %v3812 = vadd.f32 %v3730, %v3791
        %v3813 = vadd.f32 %v3731, %v3792
        %v3814 = vadd.f32 %v3732, %v3793
        %v3815 = vadd.f32 %v3733, %v3794
        %v3816 = vld [vmem:[%s3734] sm:$0xfe]
        %v3817 = vld [vmem:[%s3734 + $0x8] sm:$0xfe]
        %v3818 = vld [vmem:[%s3734 + $0x10] sm:$0xfe]
        %v3819 = vld [vmem:[%s3734 + $0x18] sm:$0x1]
        %v3820 = vld [vmem:[%s3734 + $0x20] sm:$0x1]
        %v3821 = vld [vmem:[%s3734 + $0x28] sm:$0x1]
        %v3822 = vld [vmem:[%s3734 + $0x30] sm:$0xfe]
        %v3823 = vld [vmem:[%s3734 + $0x38] sm:$0xfe]
        %v3824 = vld [vmem:[%s3734 + $0x40] sm:$0xfe]
        %v3825 = vld [vmem:[%s3734 + $0x48] sm:$0x1]
        %v3826 = vld [vmem:[%s3734 + $0x50] sm:$0x1]
        %v3827 = vld [vmem:[%s3734 + $0x58] sm:$0x1]
        %v3828 = vld [vmem:[%s3734 + $0x60] sm:$0xfe]
        %v3829 = vld [vmem:[%s3734 + $0x68] sm:$0xfe]
        %v3830 = vld [vmem:[%s3734 + $0x70] sm:$0xfe]
        %v3831 = vld [vmem:[%s3734 + $0x78] sm:$0x1]
        %v3832 = vld [vmem:[%s3734 + $0x80] sm:$0x1]
        %v3833 = vld [vmem:[%s3734 + $0x88] sm:$0x1]
        %v3834 = vld [vmem:[%s3734 + $0x90] sm:$0xfe]
        %v3835 = vld [vmem:[%s3734 + $0x98] sm:$0xfe]
        %v3836 = vld [vmem:[%s3734 + $0xa0] sm:$0xfe]
        %v3837 = vld [vmem:[%s3734 + $0xa8] sm:$0x1]
        %v3838 = vld [vmem:[%s3734 + $0xb0] sm:$0x1]
        %v3839 = vld [vmem:[%s3734 + $0xb8] sm:$0x1]
        %v3840 = vld [vmem:[%s3734 + $0xc0] sm:$0xfe]
        %v3841 = vld [vmem:[%s3734 + $0xc8] sm:$0xfe]
        %v3842 = vld [vmem:[%s3734 + $0xd0] sm:$0xfe]
        %v3843 = vld [vmem:[%s3734 + $0xd8] sm:$0x1]
        %v3844 = vld [vmem:[%s3734 + $0xe0] sm:$0x1]
        %v3845 = vld [vmem:[%s3734 + $0xe8] sm:$0x1]
        %v3846 = vld [vmem:[%s3734 + $0xf0] sm:$0xfe]
        %v3847 = vld [vmem:[%s3734 + $0xf8] sm:$0xfe]
        %v3848 = vld [vmem:[%s3734 + $0x100] sm:$0xfe]
        %v3849 = vld [vmem:[%s3734 + $0x108] sm:$0x1]
        %v3850 = vld [vmem:[%s3734 + $0x110] sm:$0x1]
        %v3851 = vld [vmem:[%s3734 + $0x118] sm:$0x1]
        %v3852 = vld [vmem:[%s3734 + $0x120] sm:$0xfe]
        %v3853 = vld [vmem:[%s3734 + $0x128] sm:$0xfe]
        %v3854 = vld [vmem:[%s3734 + $0x130] sm:$0xfe]
        %v3855 = vld [vmem:[%s3734 + $0x138] sm:$0x1]
        %v3856 = vld [vmem:[%s3734 + $0x140] sm:$0x1]
        %v3857 = vld [vmem:[%s3734 + $0x148] sm:$0x1]
        %s3858 = scalar_lea.vmem %s259, 48 [#allocation4]
        %v3859 = vld [vmem:[%s3858] ss:$8 sm:$0x7]
        %v3861 = vlaneseq
        %v3862 = vshrl.u32 %v3861, 7
        %v3863 = vsub.s32 0, %v3862
        %v3864 = vrot.slane %v3859, %v3863
        %v3865 = vlaneseq
        %v3866 = vshrl.u32 %v3865, 7
        %v3867 = vsub.s32 1, %v3866
        %v3868 = vrot.slane %v3859, %v3867
        %v3869 = vlaneseq
        %v3870 = vshrl.u32 %v3869, 7
        %v3871 = vsub.s32 2, %v3870
        %v3872 = vrot.slane %v3859, %v3871
        %v3876 = vmul.f32 %v3816, %v3864
        %v3877 = vmul.f32 %v3817, %v3868
        %v3878 = vmul.f32 %v3818, %v3872
        %v3879 = vmul.f32 %v3819, %v3864
        %v3880 = vmul.f32 %v3820, %v3868
        %v3881 = vmul.f32 %v3821, %v3872
        %v3882 = vmul.f32 %v3822, %v3864
        %v3883 = vmul.f32 %v3823, %v3868
        %v3884 = vmul.f32 %v3824, %v3872
        %v3885 = vmul.f32 %v3825, %v3864
        %v3886 = vmul.f32 %v3826, %v3868
        %v3887 = vmul.f32 %v3827, %v3872
        %v3888 = vmul.f32 %v3828, %v3864
        %v3889 = vmul.f32 %v3829, %v3868
        %v3890 = vmul.f32 %v3830, %v3872
        %v3891 = vmul.f32 %v3831, %v3864
        %v3892 = vmul.f32 %v3832, %v3868
        %v3893 = vmul.f32 %v3833, %v3872
        %v3894 = vmul.f32 %v3834, %v3864
        %v3895 = vmul.f32 %v3835, %v3868
        %v3896 = vmul.f32 %v3836, %v3872
        %v3897 = vmul.f32 %v3837, %v3864
        %v3898 = vmul.f32 %v3838, %v3868
        %v3899 = vmul.f32 %v3839, %v3872
        %v3900 = vmul.f32 %v3840, %v3864
        %v3901 = vmul.f32 %v3841, %v3868
        %v3902 = vmul.f32 %v3842, %v3872
        %v3903 = vmul.f32 %v3843, %v3864
        %v3904 = vmul.f32 %v3844, %v3868
        %v3905 = vmul.f32 %v3845, %v3872
        %v3906 = vmul.f32 %v3846, %v3864
        %v3907 = vmul.f32 %v3847, %v3868
        %v3908 = vmul.f32 %v3848, %v3872
        %v3909 = vmul.f32 %v3849, %v3864
        %v3910 = vmul.f32 %v3850, %v3868
        %v3911 = vmul.f32 %v3851, %v3872
        %v3912 = vmul.f32 %v3852, %v3864
        %v3913 = vmul.f32 %v3853, %v3868
        %v3914 = vmul.f32 %v3854, %v3872
        %v3915 = vmul.f32 %v3855, %v3864
        %v3916 = vmul.f32 %v3856, %v3868
        %v3917 = vmul.f32 %v3857, %v3872
        %v3960 = vrot.slane %v3876, 1
        %v3961 = vrot.slane %v3879, 1
        %v3962 = vsel %vm723, %v3960, %v3961
        %v3963 = vrot.slane %v3877, 1
        %v3964 = vrot.slane %v3880, 1
        %v3965 = vsel %vm723, %v3963, %v3964
        %v3966 = vrot.slane %v3878, 1
        %v3967 = vrot.slane %v3881, 1
        %v3968 = vsel %vm723, %v3966, %v3967
        %v3969 = vrot.slane %v3882, 1
        %v3970 = vrot.slane %v3885, 1
        %v3971 = vsel %vm723, %v3969, %v3970
        %v3972 = vrot.slane %v3883, 1
        %v3973 = vrot.slane %v3886, 1
        %v3974 = vsel %vm723, %v3972, %v3973
        %v3975 = vrot.slane %v3884, 1
        %v3976 = vrot.slane %v3887, 1
        %v3977 = vsel %vm723, %v3975, %v3976
        %v3978 = vrot.slane %v3888, 1
        %v3979 = vrot.slane %v3891, 1
        %v3980 = vsel %vm723, %v3978, %v3979
        %v3981 = vrot.slane %v3889, 1
        %v3982 = vrot.slane %v3892, 1
        %v3983 = vsel %vm723, %v3981, %v3982
        %v3984 = vrot.slane %v3890, 1
        %v3985 = vrot.slane %v3893, 1
        %v3986 = vsel %vm723, %v3984, %v3985
        %v3987 = vrot.slane %v3894, 1
        %v3988 = vrot.slane %v3897, 1
        %v3989 = vsel %vm723, %v3987, %v3988
        %v3990 = vrot.slane %v3895, 1
        %v3991 = vrot.slane %v3898, 1
        %v3992 = vsel %vm723, %v3990, %v3991
        %v3993 = vrot.slane %v3896, 1
        %v3994 = vrot.slane %v3899, 1
        %v3995 = vsel %vm723, %v3993, %v3994
        %v3996 = vrot.slane %v3900, 1
        %v3997 = vrot.slane %v3903, 1
        %v3998 = vsel %vm723, %v3996, %v3997
        %v3999 = vrot.slane %v3901, 1
        %v4000 = vrot.slane %v3904, 1
        %v4001 = vsel %vm723, %v3999, %v4000
        %v4002 = vrot.slane %v3902, 1
        %v4003 = vrot.slane %v3905, 1
        %v4004 = vsel %vm723, %v4002, %v4003
        %v4005 = vrot.slane %v3906, 1
        %v4006 = vrot.slane %v3909, 1
        %v4007 = vsel %vm723, %v4005, %v4006
        %v4008 = vrot.slane %v3907, 1
        %v4009 = vrot.slane %v3910, 1
        %v4010 = vsel %vm723, %v4008, %v4009
        %v4011 = vrot.slane %v3908, 1
        %v4012 = vrot.slane %v3911, 1
        %v4013 = vsel %vm723, %v4011, %v4012
        %v4014 = vrot.slane %v3912, 1
        %v4015 = vrot.slane %v3915, 1
        %v4016 = vsel %vm723, %v4014, %v4015
        %v4017 = vrot.slane %v3913, 1
        %v4018 = vrot.slane %v3916, 1
        %v4019 = vsel %vm723, %v4017, %v4018
        %v4020 = vrot.slane %v3914, 1
        %v4021 = vrot.slane %v3917, 1
        %v4022 = vsel %vm723, %v4020, %v4021
        %v4044 = vadd.f32 %v3795, %v3962
        %v4045 = vadd.f32 %v3796, %v3965
        %v4046 = vadd.f32 %v3797, %v3968
        %v4047 = vadd.f32 %v3798, %v3971
        %v4048 = vadd.f32 %v3799, %v3974
        %v4049 = vadd.f32 %v3800, %v3977
        %v4050 = vadd.f32 %v3801, %v3980
        %v4051 = vadd.f32 %v3802, %v3983
        %v4052 = vadd.f32 %v3803, %v3986
        %v4053 = vadd.f32 %v3804, %v3989
        %v4054 = vadd.f32 %v3805, %v3992
        %v4055 = vadd.f32 %v3806, %v3995
        %v4056 = vadd.f32 %v3807, %v3998
        %v4057 = vadd.f32 %v3808, %v4001
        %v4058 = vadd.f32 %v3809, %v4004
        %v4059 = vadd.f32 %v3810, %v4007
        %v4060 = vadd.f32 %v3811, %v4010
        %v4061 = vadd.f32 %v3812, %v4013
        %v4062 = vadd.f32 %v3813, %v4016
        %v4063 = vadd.f32 %v3814, %v4019
        %v4064 = vadd.f32 %v3815, %v4022
        %v4065 = vld [vmem:[%s3734] sm:$0xfc]
        %v4066 = vld [vmem:[%s3734 + $0x8] sm:$0xfc]
        %v4067 = vld [vmem:[%s3734 + $0x10] sm:$0xfc]
        %v4068 = vld [vmem:[%s3734 + $0x18] sm:$0x3]
        %v4069 = vld [vmem:[%s3734 + $0x20] sm:$0x3]
        %v4070 = vld [vmem:[%s3734 + $0x28] sm:$0x3]
        %v4071 = vld [vmem:[%s3734 + $0x30] sm:$0xfc]
        %v4072 = vld [vmem:[%s3734 + $0x38] sm:$0xfc]
        %v4073 = vld [vmem:[%s3734 + $0x40] sm:$0xfc]
        %v4074 = vld [vmem:[%s3734 + $0x48] sm:$0x3]
        %v4075 = vld [vmem:[%s3734 + $0x50] sm:$0x3]
        %v4076 = vld [vmem:[%s3734 + $0x58] sm:$0x3]
        %v4077 = vld [vmem:[%s3734 + $0x60] sm:$0xfc]
        %v4078 = vld [vmem:[%s3734 + $0x68] sm:$0xfc]
        %v4079 = vld [vmem:[%s3734 + $0x70] sm:$0xfc]
        %v4080 = vld [vmem:[%s3734 + $0x78] sm:$0x3]
        %v4081 = vld [vmem:[%s3734 + $0x80] sm:$0x3]
        %v4082 = vld [vmem:[%s3734 + $0x88] sm:$0x3]
        %v4083 = vld [vmem:[%s3734 + $0x90] sm:$0xfc]
        %v4084 = vld [vmem:[%s3734 + $0x98] sm:$0xfc]
        %v4085 = vld [vmem:[%s3734 + $0xa0] sm:$0xfc]
        %v4086 = vld [vmem:[%s3734 + $0xa8] sm:$0x3]
        %v4087 = vld [vmem:[%s3734 + $0xb0] sm:$0x3]
        %v4088 = vld [vmem:[%s3734 + $0xb8] sm:$0x3]
        %v4089 = vld [vmem:[%s3734 + $0xc0] sm:$0xfc]
        %v4090 = vld [vmem:[%s3734 + $0xc8] sm:$0xfc]
        %v4091 = vld [vmem:[%s3734 + $0xd0] sm:$0xfc]
        %v4092 = vld [vmem:[%s3734 + $0xd8] sm:$0x3]
        %v4093 = vld [vmem:[%s3734 + $0xe0] sm:$0x3]
        %v4094 = vld [vmem:[%s3734 + $0xe8] sm:$0x3]
        %v4095 = vld [vmem:[%s3734 + $0xf0] sm:$0xfc]
        %v4096 = vld [vmem:[%s3734 + $0xf8] sm:$0xfc]
        %v4097 = vld [vmem:[%s3734 + $0x100] sm:$0xfc]
        %v4098 = vld [vmem:[%s3734 + $0x108] sm:$0x3]
        %v4099 = vld [vmem:[%s3734 + $0x110] sm:$0x3]
        %v4100 = vld [vmem:[%s3734 + $0x118] sm:$0x3]
        %v4101 = vld [vmem:[%s3734 + $0x120] sm:$0xfc]
        %v4102 = vld [vmem:[%s3734 + $0x128] sm:$0xfc]
        %v4103 = vld [vmem:[%s3734 + $0x130] sm:$0xfc]
        %v4104 = vld [vmem:[%s3734 + $0x138] sm:$0x3]
        %v4105 = vld [vmem:[%s3734 + $0x140] sm:$0x3]
        %v4106 = vld [vmem:[%s3734 + $0x148] sm:$0x3]
        %s4107 = scalar_lea.vmem %s259, 49 [#allocation4]
        %v4108 = vld [vmem:[%s4107] ss:$8 sm:$0x7]
        %v4110 = vlaneseq
        %v4111 = vshrl.u32 %v4110, 7
        %v4112 = vsub.s32 0, %v4111
        %v4113 = vrot.slane %v4108, %v4112
        %v4114 = vlaneseq
        %v4115 = vshrl.u32 %v4114, 7
        %v4116 = vsub.s32 1, %v4115
        %v4117 = vrot.slane %v4108, %v4116
        %v4118 = vlaneseq
        %v4119 = vshrl.u32 %v4118, 7
        %v4120 = vsub.s32 2, %v4119
        %v4121 = vrot.slane %v4108, %v4120
        %v4125 = vmul.f32 %v4065, %v4113
        %v4126 = vmul.f32 %v4066, %v4117
        %v4127 = vmul.f32 %v4067, %v4121
        %v4128 = vmul.f32 %v4068, %v4113
        %v4129 = vmul.f32 %v4069, %v4117
        %v4130 = vmul.f32 %v4070, %v4121
        %v4131 = vmul.f32 %v4071, %v4113
        %v4132 = vmul.f32 %v4072, %v4117
        %v4133 = vmul.f32 %v4073, %v4121
        %v4134 = vmul.f32 %v4074, %v4113
        %v4135 = vmul.f32 %v4075, %v4117
        %v4136 = vmul.f32 %v4076, %v4121
        %v4137 = vmul.f32 %v4077, %v4113
        %v4138 = vmul.f32 %v4078, %v4117
        %v4139 = vmul.f32 %v4079, %v4121
        %v4140 = vmul.f32 %v4080, %v4113
        %v4141 = vmul.f32 %v4081, %v4117
        %v4142 = vmul.f32 %v4082, %v4121
        %v4143 = vmul.f32 %v4083, %v4113
        %v4144 = vmul.f32 %v4084, %v4117
        %v4145 = vmul.f32 %v4085, %v4121
        %v4146 = vmul.f32 %v4086, %v4113
        %v4147 = vmul.f32 %v4087, %v4117
        %v4148 = vmul.f32 %v4088, %v4121
        %v4149 = vmul.f32 %v4089, %v4113
        %v4150 = vmul.f32 %v4090, %v4117
        %v4151 = vmul.f32 %v4091, %v4121
        %v4152 = vmul.f32 %v4092, %v4113
        %v4153 = vmul.f32 %v4093, %v4117
        %v4154 = vmul.f32 %v4094, %v4121
        %v4155 = vmul.f32 %v4095, %v4113
        %v4156 = vmul.f32 %v4096, %v4117
        %v4157 = vmul.f32 %v4097, %v4121
        %v4158 = vmul.f32 %v4098, %v4113
        %v4159 = vmul.f32 %v4099, %v4117
        %v4160 = vmul.f32 %v4100, %v4121
        %v4161 = vmul.f32 %v4101, %v4113
        %v4162 = vmul.f32 %v4102, %v4117
        %v4163 = vmul.f32 %v4103, %v4121
        %v4164 = vmul.f32 %v4104, %v4113
        %v4165 = vmul.f32 %v4105, %v4117
        %v4166 = vmul.f32 %v4106, %v4121
        %v4209 = vrot.slane %v4125, 2
        %v4210 = vrot.slane %v4128, 2
        %v4211 = vsel %vm973, %v4209, %v4210
        %v4212 = vrot.slane %v4126, 2
        %v4213 = vrot.slane %v4129, 2
        %v4214 = vsel %vm973, %v4212, %v4213
        %v4215 = vrot.slane %v4127, 2
        %v4216 = vrot.slane %v4130, 2
        %v4217 = vsel %vm973, %v4215, %v4216
        %v4218 = vrot.slane %v4131, 2
        %v4219 = vrot.slane %v4134, 2
        %v4220 = vsel %vm973, %v4218, %v4219
        %v4221 = vrot.slane %v4132, 2
        %v4222 = vrot.slane %v4135, 2
        %v4223 = vsel %vm973, %v4221, %v4222
        %v4224 = vrot.slane %v4133, 2
        %v4225 = vrot.slane %v4136, 2
        %v4226 = vsel %vm973, %v4224, %v4225
        %v4227 = vrot.slane %v4137, 2
        %v4228 = vrot.slane %v4140, 2
        %v4229 = vsel %vm973, %v4227, %v4228
        %v4230 = vrot.slane %v4138, 2
        %v4231 = vrot.slane %v4141, 2
        %v4232 = vsel %vm973, %v4230, %v4231
        %v4233 = vrot.slane %v4139, 2
        %v4234 = vrot.slane %v4142, 2
        %v4235 = vsel %vm973, %v4233, %v4234
        %v4236 = vrot.slane %v4143, 2
        %v4237 = vrot.slane %v4146, 2
        %v4238 = vsel %vm973, %v4236, %v4237
        %v4239 = vrot.slane %v4144, 2
        %v4240 = vrot.slane %v4147, 2
        %v4241 = vsel %vm973, %v4239, %v4240
        %v4242 = vrot.slane %v4145, 2
        %v4243 = vrot.slane %v4148, 2
        %v4244 = vsel %vm973, %v4242, %v4243
        %v4245 = vrot.slane %v4149, 2
        %v4246 = vrot.slane %v4152, 2
        %v4247 = vsel %vm973, %v4245, %v4246
        %v4248 = vrot.slane %v4150, 2
        %v4249 = vrot.slane %v4153, 2
        %v4250 = vsel %vm973, %v4248, %v4249
        %v4251 = vrot.slane %v4151, 2
        %v4252 = vrot.slane %v4154, 2
        %v4253 = vsel %vm973, %v4251, %v4252
        %v4254 = vrot.slane %v4155, 2
        %v4255 = vrot.slane %v4158, 2
        %v4256 = vsel %vm973, %v4254, %v4255
        %v4257 = vrot.slane %v4156, 2
        %v4258 = vrot.slane %v4159, 2
        %v4259 = vsel %vm973, %v4257, %v4258
        %v4260 = vrot.slane %v4157, 2
        %v4261 = vrot.slane %v4160, 2
        %v4262 = vsel %vm973, %v4260, %v4261
        %v4263 = vrot.slane %v4161, 2
        %v4264 = vrot.slane %v4164, 2
        %v4265 = vsel %vm973, %v4263, %v4264
        %v4266 = vrot.slane %v4162, 2
        %v4267 = vrot.slane %v4165, 2
        %v4268 = vsel %vm973, %v4266, %v4267
        %v4269 = vrot.slane %v4163, 2
        %v4270 = vrot.slane %v4166, 2
        %v4271 = vsel %vm973, %v4269, %v4270
        %v4293 = vadd.f32 %v4044, %v4211
        %v4294 = vadd.f32 %v4045, %v4214
        %v4295 = vadd.f32 %v4046, %v4217
        %v4296 = vadd.f32 %v4047, %v4220
        %v4297 = vadd.f32 %v4048, %v4223
        %v4298 = vadd.f32 %v4049, %v4226
        %v4299 = vadd.f32 %v4050, %v4229
        %v4300 = vadd.f32 %v4051, %v4232
        %v4301 = vadd.f32 %v4052, %v4235
        %v4302 = vadd.f32 %v4053, %v4238
        %v4303 = vadd.f32 %v4054, %v4241
        %v4304 = vadd.f32 %v4055, %v4244
        %v4305 = vadd.f32 %v4056, %v4247
        %v4306 = vadd.f32 %v4057, %v4250
        %v4307 = vadd.f32 %v4058, %v4253
        %v4308 = vadd.f32 %v4059, %v4256
        %v4309 = vadd.f32 %v4060, %v4259
        %v4310 = vadd.f32 %v4061, %v4262
        %v4311 = vadd.f32 %v4062, %v4265
        %v4312 = vadd.f32 %v4063, %v4268
        %v4313 = vadd.f32 %v4064, %v4271
        %v4314 = vld [vmem:[%s3734] sm:$0xf8]
        %v4315 = vld [vmem:[%s3734 + $0x8] sm:$0xf8]
        %v4316 = vld [vmem:[%s3734 + $0x10] sm:$0xf8]
        %v4317 = vld [vmem:[%s3734 + $0x18] sm:$0x7]
        %v4318 = vld [vmem:[%s3734 + $0x20] sm:$0x7]
        %v4319 = vld [vmem:[%s3734 + $0x28] sm:$0x7]
        %v4320 = vld [vmem:[%s3734 + $0x30] sm:$0xf8]
        %v4321 = vld [vmem:[%s3734 + $0x38] sm:$0xf8]
        %v4322 = vld [vmem:[%s3734 + $0x40] sm:$0xf8]
        %v4323 = vld [vmem:[%s3734 + $0x48] sm:$0x7]
        %v4324 = vld [vmem:[%s3734 + $0x50] sm:$0x7]
        %v4325 = vld [vmem:[%s3734 + $0x58] sm:$0x7]
        %v4326 = vld [vmem:[%s3734 + $0x60] sm:$0xf8]
        %v4327 = vld [vmem:[%s3734 + $0x68] sm:$0xf8]
        %v4328 = vld [vmem:[%s3734 + $0x70] sm:$0xf8]
        %v4329 = vld [vmem:[%s3734 + $0x78] sm:$0x7]
        %v4330 = vld [vmem:[%s3734 + $0x80] sm:$0x7]
        %v4331 = vld [vmem:[%s3734 + $0x88] sm:$0x7]
        %v4332 = vld [vmem:[%s3734 + $0x90] sm:$0xf8]
        %v4333 = vld [vmem:[%s3734 + $0x98] sm:$0xf8]
        %v4334 = vld [vmem:[%s3734 + $0xa0] sm:$0xf8]
        %v4335 = vld [vmem:[%s3734 + $0xa8] sm:$0x7]
        %v4336 = vld [vmem:[%s3734 + $0xb0] sm:$0x7]
        %v4337 = vld [vmem:[%s3734 + $0xb8] sm:$0x7]
        %v4338 = vld [vmem:[%s3734 + $0xc0] sm:$0xf8]
        %v4339 = vld [vmem:[%s3734 + $0xc8] sm:$0xf8]
        %v4340 = vld [vmem:[%s3734 + $0xd0] sm:$0xf8]
        %v4341 = vld [vmem:[%s3734 + $0xd8] sm:$0x7]
        %v4342 = vld [vmem:[%s3734 + $0xe0] sm:$0x7]
        %v4343 = vld [vmem:[%s3734 + $0xe8] sm:$0x7]
        %v4344 = vld [vmem:[%s3734 + $0xf0] sm:$0xf8]
        %v4345 = vld [vmem:[%s3734 + $0xf8] sm:$0xf8]
        %v4346 = vld [vmem:[%s3734 + $0x100] sm:$0xf8]
        %v4347 = vld [vmem:[%s3734 + $0x108] sm:$0x7]
        %v4348 = vld [vmem:[%s3734 + $0x110] sm:$0x7]
        %v4349 = vld [vmem:[%s3734 + $0x118] sm:$0x7]
        %v4350 = vld [vmem:[%s3734 + $0x120] sm:$0xf8]
        %v4351 = vld [vmem:[%s3734 + $0x128] sm:$0xf8]
        %v4352 = vld [vmem:[%s3734 + $0x130] sm:$0xf8]
        %v4353 = vld [vmem:[%s3734 + $0x138] sm:$0x7]
        %v4354 = vld [vmem:[%s3734 + $0x140] sm:$0x7]
        %v4355 = vld [vmem:[%s3734 + $0x148] sm:$0x7]
        %s4356 = scalar_lea.vmem %s259, 50 [#allocation4]
        %v4357 = vld [vmem:[%s4356] ss:$8 sm:$0x7]
        %v4359 = vlaneseq
        %v4360 = vshrl.u32 %v4359, 7
        %v4361 = vsub.s32 0, %v4360
        %v4362 = vrot.slane %v4357, %v4361
        %v4363 = vlaneseq
        %v4364 = vshrl.u32 %v4363, 7
        %v4365 = vsub.s32 1, %v4364
        %v4366 = vrot.slane %v4357, %v4365
        %v4367 = vlaneseq
        %v4368 = vshrl.u32 %v4367, 7
        %v4369 = vsub.s32 2, %v4368
        %v4370 = vrot.slane %v4357, %v4369
        %v4374 = vmul.f32 %v4314, %v4362
        %v4375 = vmul.f32 %v4315, %v4366
        %v4376 = vmul.f32 %v4316, %v4370
        %v4377 = vmul.f32 %v4317, %v4362
        %v4378 = vmul.f32 %v4318, %v4366
        %v4379 = vmul.f32 %v4319, %v4370
        %v4380 = vmul.f32 %v4320, %v4362
        %v4381 = vmul.f32 %v4321, %v4366
        %v4382 = vmul.f32 %v4322, %v4370
        %v4383 = vmul.f32 %v4323, %v4362
        %v4384 = vmul.f32 %v4324, %v4366
        %v4385 = vmul.f32 %v4325, %v4370
        %v4386 = vmul.f32 %v4326, %v4362
        %v4387 = vmul.f32 %v4327, %v4366
        %v4388 = vmul.f32 %v4328, %v4370
        %v4389 = vmul.f32 %v4329, %v4362
        %v4390 = vmul.f32 %v4330, %v4366
        %v4391 = vmul.f32 %v4331, %v4370
        %v4392 = vmul.f32 %v4332, %v4362
        %v4393 = vmul.f32 %v4333, %v4366
        %v4394 = vmul.f32 %v4334, %v4370
        %v4395 = vmul.f32 %v4335, %v4362
        %v4396 = vmul.f32 %v4336, %v4366
        %v4397 = vmul.f32 %v4337, %v4370
        %v4398 = vmul.f32 %v4338, %v4362
        %v4399 = vmul.f32 %v4339, %v4366
        %v4400 = vmul.f32 %v4340, %v4370
        %v4401 = vmul.f32 %v4341, %v4362
        %v4402 = vmul.f32 %v4342, %v4366
        %v4403 = vmul.f32 %v4343, %v4370
        %v4404 = vmul.f32 %v4344, %v4362
        %v4405 = vmul.f32 %v4345, %v4366
        %v4406 = vmul.f32 %v4346, %v4370
        %v4407 = vmul.f32 %v4347, %v4362
        %v4408 = vmul.f32 %v4348, %v4366
        %v4409 = vmul.f32 %v4349, %v4370
        %v4410 = vmul.f32 %v4350, %v4362
        %v4411 = vmul.f32 %v4351, %v4366
        %v4412 = vmul.f32 %v4352, %v4370
        %v4413 = vmul.f32 %v4353, %v4362
        %v4414 = vmul.f32 %v4354, %v4366
        %v4415 = vmul.f32 %v4355, %v4370
        %v4458 = vrot.slane %v4374, 3
        %v4459 = vrot.slane %v4377, 3
        %v4460 = vsel %vm1223, %v4458, %v4459
        %v4461 = vrot.slane %v4375, 3
        %v4462 = vrot.slane %v4378, 3
        %v4463 = vsel %vm1223, %v4461, %v4462
        %v4464 = vrot.slane %v4376, 3
        %v4465 = vrot.slane %v4379, 3
        %v4466 = vsel %vm1223, %v4464, %v4465
        %v4467 = vrot.slane %v4380, 3
        %v4468 = vrot.slane %v4383, 3
        %v4469 = vsel %vm1223, %v4467, %v4468
        %v4470 = vrot.slane %v4381, 3
        %v4471 = vrot.slane %v4384, 3
        %v4472 = vsel %vm1223, %v4470, %v4471
        %v4473 = vrot.slane %v4382, 3
        %v4474 = vrot.slane %v4385, 3
        %v4475 = vsel %vm1223, %v4473, %v4474
        %v4476 = vrot.slane %v4386, 3
        %v4477 = vrot.slane %v4389, 3
        %v4478 = vsel %vm1223, %v4476, %v4477
        %v4479 = vrot.slane %v4387, 3
        %v4480 = vrot.slane %v4390, 3
        %v4481 = vsel %vm1223, %v4479, %v4480
        %v4482 = vrot.slane %v4388, 3
        %v4483 = vrot.slane %v4391, 3
        %v4484 = vsel %vm1223, %v4482, %v4483
        %v4485 = vrot.slane %v4392, 3
        %v4486 = vrot.slane %v4395, 3
        %v4487 = vsel %vm1223, %v4485, %v4486
        %v4488 = vrot.slane %v4393, 3
        %v4489 = vrot.slane %v4396, 3
        %v4490 = vsel %vm1223, %v4488, %v4489
        %v4491 = vrot.slane %v4394, 3
        %v4492 = vrot.slane %v4397, 3
        %v4493 = vsel %vm1223, %v4491, %v4492
        %v4494 = vrot.slane %v4398, 3
        %v4495 = vrot.slane %v4401, 3
        %v4496 = vsel %vm1223, %v4494, %v4495
        %v4497 = vrot.slane %v4399, 3
        %v4498 = vrot.slane %v4402, 3
        %v4499 = vsel %vm1223, %v4497, %v4498
        %v4500 = vrot.slane %v4400, 3
        %v4501 = vrot.slane %v4403, 3
        %v4502 = vsel %vm1223, %v4500, %v4501
        %v4503 = vrot.slane %v4404, 3
        %v4504 = vrot.slane %v4407, 3
        %v4505 = vsel %vm1223, %v4503, %v4504
        %v4506 = vrot.slane %v4405, 3
        %v4507 = vrot.slane %v4408, 3
        %v4508 = vsel %vm1223, %v4506, %v4507
        %v4509 = vrot.slane %v4406, 3
        %v4510 = vrot.slane %v4409, 3
        %v4511 = vsel %vm1223, %v4509, %v4510
        %v4512 = vrot.slane %v4410, 3
        %v4513 = vrot.slane %v4413, 3
        %v4514 = vsel %vm1223, %v4512, %v4513
        %v4515 = vrot.slane %v4411, 3
        %v4516 = vrot.slane %v4414, 3
        %v4517 = vsel %vm1223, %v4515, %v4516
        %v4518 = vrot.slane %v4412, 3
        %v4519 = vrot.slane %v4415, 3
        %v4520 = vsel %vm1223, %v4518, %v4519
        %v4542 = vadd.f32 %v4293, %v4460
        %v4543 = vadd.f32 %v4294, %v4463
        %v4544 = vadd.f32 %v4295, %v4466
        %v4545 = vadd.f32 %v4296, %v4469
        %v4546 = vadd.f32 %v4297, %v4472
        %v4547 = vadd.f32 %v4298, %v4475
        %v4548 = vadd.f32 %v4299, %v4478
        %v4549 = vadd.f32 %v4300, %v4481
        %v4550 = vadd.f32 %v4301, %v4484
        %v4551 = vadd.f32 %v4302, %v4487
        %v4552 = vadd.f32 %v4303, %v4490
        %v4553 = vadd.f32 %v4304, %v4493
        %v4554 = vadd.f32 %v4305, %v4496
        %v4555 = vadd.f32 %v4306, %v4499
        %v4556 = vadd.f32 %v4307, %v4502
        %v4557 = vadd.f32 %v4308, %v4505
        %v4558 = vadd.f32 %v4309, %v4508
        %v4559 = vadd.f32 %v4310, %v4511
        %v4560 = vadd.f32 %v4311, %v4514
        %v4561 = vadd.f32 %v4312, %v4517
        %v4562 = vadd.f32 %v4313, %v4520
        %v4563 = vld [vmem:[%s3734] sm:$0xf0]
        %v4564 = vld [vmem:[%s3734 + $0x8] sm:$0xf0]
        %v4565 = vld [vmem:[%s3734 + $0x10] sm:$0xf0]
        %v4566 = vld [vmem:[%s3734 + $0x18] sm:$0xf]
        %v4567 = vld [vmem:[%s3734 + $0x20] sm:$0xf]
        %v4568 = vld [vmem:[%s3734 + $0x28] sm:$0xf]
        %v4569 = vld [vmem:[%s3734 + $0x30] sm:$0xf0]
        %v4570 = vld [vmem:[%s3734 + $0x38] sm:$0xf0]
        %v4571 = vld [vmem:[%s3734 + $0x40] sm:$0xf0]
        %v4572 = vld [vmem:[%s3734 + $0x48] sm:$0xf]
        %v4573 = vld [vmem:[%s3734 + $0x50] sm:$0xf]
        %v4574 = vld [vmem:[%s3734 + $0x58] sm:$0xf]
        %v4575 = vld [vmem:[%s3734 + $0x60] sm:$0xf0]
        %v4576 = vld [vmem:[%s3734 + $0x68] sm:$0xf0]
        %v4577 = vld [vmem:[%s3734 + $0x70] sm:$0xf0]
        %v4578 = vld [vmem:[%s3734 + $0x78] sm:$0xf]
        %v4579 = vld [vmem:[%s3734 + $0x80] sm:$0xf]
        %v4580 = vld [vmem:[%s3734 + $0x88] sm:$0xf]
        %v4581 = vld [vmem:[%s3734 + $0x90] sm:$0xf0]
        %v4582 = vld [vmem:[%s3734 + $0x98] sm:$0xf0]
        %v4583 = vld [vmem:[%s3734 + $0xa0] sm:$0xf0]
        %v4584 = vld [vmem:[%s3734 + $0xa8] sm:$0xf]
        %v4585 = vld [vmem:[%s3734 + $0xb0] sm:$0xf]
        %v4586 = vld [vmem:[%s3734 + $0xb8] sm:$0xf]
        %v4587 = vld [vmem:[%s3734 + $0xc0] sm:$0xf0]
        %v4588 = vld [vmem:[%s3734 + $0xc8] sm:$0xf0]
        %v4589 = vld [vmem:[%s3734 + $0xd0] sm:$0xf0]
        %v4590 = vld [vmem:[%s3734 + $0xd8] sm:$0xf]
        %v4591 = vld [vmem:[%s3734 + $0xe0] sm:$0xf]
        %v4592 = vld [vmem:[%s3734 + $0xe8] sm:$0xf]
        %v4593 = vld [vmem:[%s3734 + $0xf0] sm:$0xf0]
        %v4594 = vld [vmem:[%s3734 + $0xf8] sm:$0xf0]
        %v4595 = vld [vmem:[%s3734 + $0x100] sm:$0xf0]
        %v4596 = vld [vmem:[%s3734 + $0x108] sm:$0xf]
        %v4597 = vld [vmem:[%s3734 + $0x110] sm:$0xf]
        %v4598 = vld [vmem:[%s3734 + $0x118] sm:$0xf]
        %v4599 = vld [vmem:[%s3734 + $0x120] sm:$0xf0]
        %v4600 = vld [vmem:[%s3734 + $0x128] sm:$0xf0]
        %v4601 = vld [vmem:[%s3734 + $0x130] sm:$0xf0]
        %v4602 = vld [vmem:[%s3734 + $0x138] sm:$0xf]
        %v4603 = vld [vmem:[%s3734 + $0x140] sm:$0xf]
        %v4604 = vld [vmem:[%s3734 + $0x148] sm:$0xf]
        %s4605 = scalar_lea.vmem %s259, 51 [#allocation4]
        %v4606 = vld [vmem:[%s4605] ss:$8 sm:$0x7]
        %v4608 = vlaneseq
        %v4609 = vshrl.u32 %v4608, 7
        %v4610 = vsub.s32 0, %v4609
        %v4611 = vrot.slane %v4606, %v4610
        %v4612 = vlaneseq
        %v4613 = vshrl.u32 %v4612, 7
        %v4614 = vsub.s32 1, %v4613
        %v4615 = vrot.slane %v4606, %v4614
        %v4616 = vlaneseq
        %v4617 = vshrl.u32 %v4616, 7
        %v4618 = vsub.s32 2, %v4617
        %v4619 = vrot.slane %v4606, %v4618
        %v4623 = vmul.f32 %v4563, %v4611
        %v4624 = vmul.f32 %v4564, %v4615
        %v4625 = vmul.f32 %v4565, %v4619
        %v4626 = vmul.f32 %v4566, %v4611
        %v4627 = vmul.f32 %v4567, %v4615
        %v4628 = vmul.f32 %v4568, %v4619
        %v4629 = vmul.f32 %v4569, %v4611
        %v4630 = vmul.f32 %v4570, %v4615
        %v4631 = vmul.f32 %v4571, %v4619
        %v4632 = vmul.f32 %v4572, %v4611
        %v4633 = vmul.f32 %v4573, %v4615
        %v4634 = vmul.f32 %v4574, %v4619
        %v4635 = vmul.f32 %v4575, %v4611
        %v4636 = vmul.f32 %v4576, %v4615
        %v4637 = vmul.f32 %v4577, %v4619
        %v4638 = vmul.f32 %v4578, %v4611
        %v4639 = vmul.f32 %v4579, %v4615
        %v4640 = vmul.f32 %v4580, %v4619
        %v4641 = vmul.f32 %v4581, %v4611
        %v4642 = vmul.f32 %v4582, %v4615
        %v4643 = vmul.f32 %v4583, %v4619
        %v4644 = vmul.f32 %v4584, %v4611
        %v4645 = vmul.f32 %v4585, %v4615
        %v4646 = vmul.f32 %v4586, %v4619
        %v4647 = vmul.f32 %v4587, %v4611
        %v4648 = vmul.f32 %v4588, %v4615
        %v4649 = vmul.f32 %v4589, %v4619
        %v4650 = vmul.f32 %v4590, %v4611
        %v4651 = vmul.f32 %v4591, %v4615
        %v4652 = vmul.f32 %v4592, %v4619
        %v4653 = vmul.f32 %v4593, %v4611
        %v4654 = vmul.f32 %v4594, %v4615
        %v4655 = vmul.f32 %v4595, %v4619
        %v4656 = vmul.f32 %v4596, %v4611
        %v4657 = vmul.f32 %v4597, %v4615
        %v4658 = vmul.f32 %v4598, %v4619
        %v4659 = vmul.f32 %v4599, %v4611
        %v4660 = vmul.f32 %v4600, %v4615
        %v4661 = vmul.f32 %v4601, %v4619
        %v4662 = vmul.f32 %v4602, %v4611
        %v4663 = vmul.f32 %v4603, %v4615
        %v4664 = vmul.f32 %v4604, %v4619
        %v4707 = vrot.slane %v4623, 4
        %v4708 = vrot.slane %v4626, 4
        %v4709 = vsel %vm1473, %v4707, %v4708
        %v4710 = vrot.slane %v4624, 4
        %v4711 = vrot.slane %v4627, 4
        %v4712 = vsel %vm1473, %v4710, %v4711
        %v4713 = vrot.slane %v4625, 4
        %v4714 = vrot.slane %v4628, 4
        %v4715 = vsel %vm1473, %v4713, %v4714
        %v4716 = vrot.slane %v4629, 4
        %v4717 = vrot.slane %v4632, 4
        %v4718 = vsel %vm1473, %v4716, %v4717
        %v4719 = vrot.slane %v4630, 4
        %v4720 = vrot.slane %v4633, 4
        %v4721 = vsel %vm1473, %v4719, %v4720
        %v4722 = vrot.slane %v4631, 4
        %v4723 = vrot.slane %v4634, 4
        %v4724 = vsel %vm1473, %v4722, %v4723
        %v4725 = vrot.slane %v4635, 4
        %v4726 = vrot.slane %v4638, 4
        %v4727 = vsel %vm1473, %v4725, %v4726
        %v4728 = vrot.slane %v4636, 4
        %v4729 = vrot.slane %v4639, 4
        %v4730 = vsel %vm1473, %v4728, %v4729
        %v4731 = vrot.slane %v4637, 4
        %v4732 = vrot.slane %v4640, 4
        %v4733 = vsel %vm1473, %v4731, %v4732
        %v4734 = vrot.slane %v4641, 4
        %v4735 = vrot.slane %v4644, 4
        %v4736 = vsel %vm1473, %v4734, %v4735
        %v4737 = vrot.slane %v4642, 4
        %v4738 = vrot.slane %v4645, 4
        %v4739 = vsel %vm1473, %v4737, %v4738
        %v4740 = vrot.slane %v4643, 4
        %v4741 = vrot.slane %v4646, 4
        %v4742 = vsel %vm1473, %v4740, %v4741
        %v4743 = vrot.slane %v4647, 4
        %v4744 = vrot.slane %v4650, 4
        %v4745 = vsel %vm1473, %v4743, %v4744
        %v4746 = vrot.slane %v4648, 4
        %v4747 = vrot.slane %v4651, 4
        %v4748 = vsel %vm1473, %v4746, %v4747
        %v4749 = vrot.slane %v4649, 4
        %v4750 = vrot.slane %v4652, 4
        %v4751 = vsel %vm1473, %v4749, %v4750
        %v4752 = vrot.slane %v4653, 4
        %v4753 = vrot.slane %v4656, 4
        %v4754 = vsel %vm1473, %v4752, %v4753
        %v4755 = vrot.slane %v4654, 4
        %v4756 = vrot.slane %v4657, 4
        %v4757 = vsel %vm1473, %v4755, %v4756
        %v4758 = vrot.slane %v4655, 4
        %v4759 = vrot.slane %v4658, 4
        %v4760 = vsel %vm1473, %v4758, %v4759
        %v4761 = vrot.slane %v4659, 4
        %v4762 = vrot.slane %v4662, 4
        %v4763 = vsel %vm1473, %v4761, %v4762
        %v4764 = vrot.slane %v4660, 4
        %v4765 = vrot.slane %v4663, 4
        %v4766 = vsel %vm1473, %v4764, %v4765
        %v4767 = vrot.slane %v4661, 4
        %v4768 = vrot.slane %v4664, 4
        %v4769 = vsel %vm1473, %v4767, %v4768
        %v4791 = vadd.f32 %v4542, %v4709
        %v4792 = vadd.f32 %v4543, %v4712
        %v4793 = vadd.f32 %v4544, %v4715
        %v4794 = vadd.f32 %v4545, %v4718
        %v4795 = vadd.f32 %v4546, %v4721
        %v4796 = vadd.f32 %v4547, %v4724
        %v4797 = vadd.f32 %v4548, %v4727
        %v4798 = vadd.f32 %v4549, %v4730
        %v4799 = vadd.f32 %v4550, %v4733
        %v4800 = vadd.f32 %v4551, %v4736
        %v4801 = vadd.f32 %v4552, %v4739
        %v4802 = vadd.f32 %v4553, %v4742
        %v4803 = vadd.f32 %v4554, %v4745
        %v4804 = vadd.f32 %v4555, %v4748
        %v4805 = vadd.f32 %v4556, %v4751
        %v4806 = vadd.f32 %v4557, %v4754
        %v4807 = vadd.f32 %v4558, %v4757
        %v4808 = vadd.f32 %v4559, %v4760
        %v4809 = vadd.f32 %v4560, %v4763
        %v4810 = vadd.f32 %v4561, %v4766
        %v4811 = vadd.f32 %v4562, %v4769
        %s4812 = scalar_lea.vmem [#allocation2], 192
        %v4813 = vld [vmem:[%s4812] sm:$0xff]
        %v4814 = vld [vmem:[%s4812 + $0x8] sm:$0xff]
        %v4815 = vld [vmem:[%s4812 + $0x10] sm:$0xff]
        %v4816 = vld [vmem:[%s4812 + $0x30] sm:$0xff]
        %v4817 = vld [vmem:[%s4812 + $0x38] sm:$0xff]
        %v4818 = vld [vmem:[%s4812 + $0x40] sm:$0xff]
        %v4819 = vld [vmem:[%s4812 + $0x60] sm:$0xff]
        %v4820 = vld [vmem:[%s4812 + $0x68] sm:$0xff]
        %v4821 = vld [vmem:[%s4812 + $0x70] sm:$0xff]
        %v4822 = vld [vmem:[%s4812 + $0x90] sm:$0xff]
        %v4823 = vld [vmem:[%s4812 + $0x98] sm:$0xff]
        %v4824 = vld [vmem:[%s4812 + $0xa0] sm:$0xff]
        %v4825 = vld [vmem:[%s4812 + $0xc0] sm:$0xff]
        %v4826 = vld [vmem:[%s4812 + $0xc8] sm:$0xff]
        %v4827 = vld [vmem:[%s4812 + $0xd0] sm:$0xff]
        %v4828 = vld [vmem:[%s4812 + $0xf0] sm:$0xff]
        %v4829 = vld [vmem:[%s4812 + $0xf8] sm:$0xff]
        %v4830 = vld [vmem:[%s4812 + $0x100] sm:$0xff]
        %v4831 = vld [vmem:[%s4812 + $0x120] sm:$0xff]
        %v4832 = vld [vmem:[%s4812 + $0x128] sm:$0xff]
        %v4833 = vld [vmem:[%s4812 + $0x130] sm:$0xff]
        %s4834 = scalar_lea.vmem %s259, 52 [#allocation4]
        %v4835 = vld [vmem:[%s4834] ss:$8 sm:$0x7]
        %v4837 = vlaneseq
        %v4838 = vshrl.u32 %v4837, 7
        %v4839 = vsub.s32 0, %v4838
        %v4840 = vrot.slane %v4835, %v4839
        %v4841 = vlaneseq
        %v4842 = vshrl.u32 %v4841, 7
        %v4843 = vsub.s32 1, %v4842
        %v4844 = vrot.slane %v4835, %v4843
        %v4845 = vlaneseq
        %v4846 = vshrl.u32 %v4845, 7
        %v4847 = vsub.s32 2, %v4846
        %v4848 = vrot.slane %v4835, %v4847
        %v4852 = vmul.f32 %v4813, %v4840
        %v4853 = vmul.f32 %v4814, %v4844
        %v4854 = vmul.f32 %v4815, %v4848
        %v4855 = vmul.f32 %v4816, %v4840
        %v4856 = vmul.f32 %v4817, %v4844
        %v4857 = vmul.f32 %v4818, %v4848
        %v4858 = vmul.f32 %v4819, %v4840
        %v4859 = vmul.f32 %v4820, %v4844
        %v4860 = vmul.f32 %v4821, %v4848
        %v4861 = vmul.f32 %v4822, %v4840
        %v4862 = vmul.f32 %v4823, %v4844
        %v4863 = vmul.f32 %v4824, %v4848
        %v4864 = vmul.f32 %v4825, %v4840
        %v4865 = vmul.f32 %v4826, %v4844
        %v4866 = vmul.f32 %v4827, %v4848
        %v4867 = vmul.f32 %v4828, %v4840
        %v4868 = vmul.f32 %v4829, %v4844
        %v4869 = vmul.f32 %v4830, %v4848
        %v4870 = vmul.f32 %v4831, %v4840
        %v4871 = vmul.f32 %v4832, %v4844
        %v4872 = vmul.f32 %v4833, %v4848
        %v4873 = vadd.f32 %v4791, %v4852
        %v4874 = vadd.f32 %v4792, %v4853
        %v4875 = vadd.f32 %v4793, %v4854
        %v4876 = vadd.f32 %v4794, %v4855
        %v4877 = vadd.f32 %v4795, %v4856
        %v4878 = vadd.f32 %v4796, %v4857
        %v4879 = vadd.f32 %v4797, %v4858
        %v4880 = vadd.f32 %v4798, %v4859
        %v4881 = vadd.f32 %v4799, %v4860
        %v4882 = vadd.f32 %v4800, %v4861
        %v4883 = vadd.f32 %v4801, %v4862
        %v4884 = vadd.f32 %v4802, %v4863
        %v4885 = vadd.f32 %v4803, %v4864
        %v4886 = vadd.f32 %v4804, %v4865
        %v4887 = vadd.f32 %v4805, %v4866
        %v4888 = vadd.f32 %v4806, %v4867
        %v4889 = vadd.f32 %v4807, %v4868
        %v4890 = vadd.f32 %v4808, %v4869
        %v4891 = vadd.f32 %v4809, %v4870
        %v4892 = vadd.f32 %v4810, %v4871
        %v4893 = vadd.f32 %v4811, %v4872
        %v4894 = vld [vmem:[%s4812] sm:$0xfe]
        %v4895 = vld [vmem:[%s4812 + $0x8] sm:$0xfe]
        %v4896 = vld [vmem:[%s4812 + $0x10] sm:$0xfe]
        %v4897 = vld [vmem:[%s4812 + $0x18] sm:$0x1]
        %v4898 = vld [vmem:[%s4812 + $0x20] sm:$0x1]
        %v4899 = vld [vmem:[%s4812 + $0x28] sm:$0x1]
        %v4900 = vld [vmem:[%s4812 + $0x30] sm:$0xfe]
        %v4901 = vld [vmem:[%s4812 + $0x38] sm:$0xfe]
        %v4902 = vld [vmem:[%s4812 + $0x40] sm:$0xfe]
        %v4903 = vld [vmem:[%s4812 + $0x48] sm:$0x1]
        %v4904 = vld [vmem:[%s4812 + $0x50] sm:$0x1]
        %v4905 = vld [vmem:[%s4812 + $0x58] sm:$0x1]
        %v4906 = vld [vmem:[%s4812 + $0x60] sm:$0xfe]
        %v4907 = vld [vmem:[%s4812 + $0x68] sm:$0xfe]
        %v4908 = vld [vmem:[%s4812 + $0x70] sm:$0xfe]
        %v4909 = vld [vmem:[%s4812 + $0x78] sm:$0x1]
        %v4910 = vld [vmem:[%s4812 + $0x80] sm:$0x1]
        %v4911 = vld [vmem:[%s4812 + $0x88] sm:$0x1]
        %v4912 = vld [vmem:[%s4812 + $0x90] sm:$0xfe]
        %v4913 = vld [vmem:[%s4812 + $0x98] sm:$0xfe]
        %v4914 = vld [vmem:[%s4812 + $0xa0] sm:$0xfe]
        %v4915 = vld [vmem:[%s4812 + $0xa8] sm:$0x1]
        %v4916 = vld [vmem:[%s4812 + $0xb0] sm:$0x1]
        %v4917 = vld [vmem:[%s4812 + $0xb8] sm:$0x1]
        %v4918 = vld [vmem:[%s4812 + $0xc0] sm:$0xfe]
        %v4919 = vld [vmem:[%s4812 + $0xc8] sm:$0xfe]
        %v4920 = vld [vmem:[%s4812 + $0xd0] sm:$0xfe]
        %v4921 = vld [vmem:[%s4812 + $0xd8] sm:$0x1]
        %v4922 = vld [vmem:[%s4812 + $0xe0] sm:$0x1]
        %v4923 = vld [vmem:[%s4812 + $0xe8] sm:$0x1]
        %v4924 = vld [vmem:[%s4812 + $0xf0] sm:$0xfe]
        %v4925 = vld [vmem:[%s4812 + $0xf8] sm:$0xfe]
        %v4926 = vld [vmem:[%s4812 + $0x100] sm:$0xfe]
        %v4927 = vld [vmem:[%s4812 + $0x108] sm:$0x1]
        %v4928 = vld [vmem:[%s4812 + $0x110] sm:$0x1]
        %v4929 = vld [vmem:[%s4812 + $0x118] sm:$0x1]
        %v4930 = vld [vmem:[%s4812 + $0x120] sm:$0xfe]
        %v4931 = vld [vmem:[%s4812 + $0x128] sm:$0xfe]
        %v4932 = vld [vmem:[%s4812 + $0x130] sm:$0xfe]
        %v4933 = vld [vmem:[%s4812 + $0x138] sm:$0x1]
        %v4934 = vld [vmem:[%s4812 + $0x140] sm:$0x1]
        %v4935 = vld [vmem:[%s4812 + $0x148] sm:$0x1]
        %s4936 = scalar_lea.vmem %s259, 53 [#allocation4]
        %v4937 = vld [vmem:[%s4936] ss:$8 sm:$0x7]
        %v4939 = vlaneseq
        %v4940 = vshrl.u32 %v4939, 7
        %v4941 = vsub.s32 0, %v4940
        %v4942 = vrot.slane %v4937, %v4941
        %v4943 = vlaneseq
        %v4944 = vshrl.u32 %v4943, 7
        %v4945 = vsub.s32 1, %v4944
        %v4946 = vrot.slane %v4937, %v4945
        %v4947 = vlaneseq
        %v4948 = vshrl.u32 %v4947, 7
        %v4949 = vsub.s32 2, %v4948
        %v4950 = vrot.slane %v4937, %v4949
        %v4954 = vmul.f32 %v4894, %v4942
        %v4955 = vmul.f32 %v4895, %v4946
        %v4956 = vmul.f32 %v4896, %v4950
        %v4957 = vmul.f32 %v4897, %v4942
        %v4958 = vmul.f32 %v4898, %v4946
        %v4959 = vmul.f32 %v4899, %v4950
        %v4960 = vmul.f32 %v4900, %v4942
        %v4961 = vmul.f32 %v4901, %v4946
        %v4962 = vmul.f32 %v4902, %v4950
        %v4963 = vmul.f32 %v4903, %v4942
        %v4964 = vmul.f32 %v4904, %v4946
        %v4965 = vmul.f32 %v4905, %v4950
        %v4966 = vmul.f32 %v4906, %v4942
        %v4967 = vmul.f32 %v4907, %v4946
        %v4968 = vmul.f32 %v4908, %v4950
        %v4969 = vmul.f32 %v4909, %v4942
        %v4970 = vmul.f32 %v4910, %v4946
        %v4971 = vmul.f32 %v4911, %v4950
        %v4972 = vmul.f32 %v4912, %v4942
        %v4973 = vmul.f32 %v4913, %v4946
        %v4974 = vmul.f32 %v4914, %v4950
        %v4975 = vmul.f32 %v4915, %v4942
        %v4976 = vmul.f32 %v4916, %v4946
        %v4977 = vmul.f32 %v4917, %v4950
        %v4978 = vmul.f32 %v4918, %v4942
        %v4979 = vmul.f32 %v4919, %v4946
        %v4980 = vmul.f32 %v4920, %v4950
        %v4981 = vmul.f32 %v4921, %v4942
        %v4982 = vmul.f32 %v4922, %v4946
        %v4983 = vmul.f32 %v4923, %v4950
        %v4984 = vmul.f32 %v4924, %v4942
        %v4985 = vmul.f32 %v4925, %v4946
        %v4986 = vmul.f32 %v4926, %v4950
        %v4987 = vmul.f32 %v4927, %v4942
        %v4988 = vmul.f32 %v4928, %v4946
        %v4989 = vmul.f32 %v4929, %v4950
        %v4990 = vmul.f32 %v4930, %v4942
        %v4991 = vmul.f32 %v4931, %v4946
        %v4992 = vmul.f32 %v4932, %v4950
        %v4993 = vmul.f32 %v4933, %v4942
        %v4994 = vmul.f32 %v4934, %v4946
        %v4995 = vmul.f32 %v4935, %v4950
        %v5038 = vrot.slane %v4954, 1
        %v5039 = vrot.slane %v4957, 1
        %v5040 = vsel %vm723, %v5038, %v5039
        %v5041 = vrot.slane %v4955, 1
        %v5042 = vrot.slane %v4958, 1
        %v5043 = vsel %vm723, %v5041, %v5042
        %v5044 = vrot.slane %v4956, 1
        %v5045 = vrot.slane %v4959, 1
        %v5046 = vsel %vm723, %v5044, %v5045
        %v5047 = vrot.slane %v4960, 1
        %v5048 = vrot.slane %v4963, 1
        %v5049 = vsel %vm723, %v5047, %v5048
        %v5050 = vrot.slane %v4961, 1
        %v5051 = vrot.slane %v4964, 1
        %v5052 = vsel %vm723, %v5050, %v5051
        %v5053 = vrot.slane %v4962, 1
        %v5054 = vrot.slane %v4965, 1
        %v5055 = vsel %vm723, %v5053, %v5054
        %v5056 = vrot.slane %v4966, 1
        %v5057 = vrot.slane %v4969, 1
        %v5058 = vsel %vm723, %v5056, %v5057
        %v5059 = vrot.slane %v4967, 1
        %v5060 = vrot.slane %v4970, 1
        %v5061 = vsel %vm723, %v5059, %v5060
        %v5062 = vrot.slane %v4968, 1
        %v5063 = vrot.slane %v4971, 1
        %v5064 = vsel %vm723, %v5062, %v5063
        %v5065 = vrot.slane %v4972, 1
        %v5066 = vrot.slane %v4975, 1
        %v5067 = vsel %vm723, %v5065, %v5066
        %v5068 = vrot.slane %v4973, 1
        %v5069 = vrot.slane %v4976, 1
        %v5070 = vsel %vm723, %v5068, %v5069
        %v5071 = vrot.slane %v4974, 1
        %v5072 = vrot.slane %v4977, 1
        %v5073 = vsel %vm723, %v5071, %v5072
        %v5074 = vrot.slane %v4978, 1
        %v5075 = vrot.slane %v4981, 1
        %v5076 = vsel %vm723, %v5074, %v5075
        %v5077 = vrot.slane %v4979, 1
        %v5078 = vrot.slane %v4982, 1
        %v5079 = vsel %vm723, %v5077, %v5078
        %v5080 = vrot.slane %v4980, 1
        %v5081 = vrot.slane %v4983, 1
        %v5082 = vsel %vm723, %v5080, %v5081
        %v5083 = vrot.slane %v4984, 1
        %v5084 = vrot.slane %v4987, 1
        %v5085 = vsel %vm723, %v5083, %v5084
        %v5086 = vrot.slane %v4985, 1
        %v5087 = vrot.slane %v4988, 1
        %v5088 = vsel %vm723, %v5086, %v5087
        %v5089 = vrot.slane %v4986, 1
        %v5090 = vrot.slane %v4989, 1
        %v5091 = vsel %vm723, %v5089, %v5090
        %v5092 = vrot.slane %v4990, 1
        %v5093 = vrot.slane %v4993, 1
        %v5094 = vsel %vm723, %v5092, %v5093
        %v5095 = vrot.slane %v4991, 1
        %v5096 = vrot.slane %v4994, 1
        %v5097 = vsel %vm723, %v5095, %v5096
        %v5098 = vrot.slane %v4992, 1
        %v5099 = vrot.slane %v4995, 1
        %v5100 = vsel %vm723, %v5098, %v5099
        %v5122 = vadd.f32 %v4873, %v5040
        %v5123 = vadd.f32 %v4874, %v5043
        %v5124 = vadd.f32 %v4875, %v5046
        %v5125 = vadd.f32 %v4876, %v5049
        %v5126 = vadd.f32 %v4877, %v5052
        %v5127 = vadd.f32 %v4878, %v5055
        %v5128 = vadd.f32 %v4879, %v5058
        %v5129 = vadd.f32 %v4880, %v5061
        %v5130 = vadd.f32 %v4881, %v5064
        %v5131 = vadd.f32 %v4882, %v5067
        %v5132 = vadd.f32 %v4883, %v5070
        %v5133 = vadd.f32 %v4884, %v5073
        %v5134 = vadd.f32 %v4885, %v5076
        %v5135 = vadd.f32 %v4886, %v5079
        %v5136 = vadd.f32 %v4887, %v5082
        %v5137 = vadd.f32 %v4888, %v5085
        %v5138 = vadd.f32 %v4889, %v5088
        %v5139 = vadd.f32 %v4890, %v5091
        %v5140 = vadd.f32 %v4891, %v5094
        %v5141 = vadd.f32 %v4892, %v5097
        %v5142 = vadd.f32 %v4893, %v5100
        %v5143 = vld [vmem:[%s4812] sm:$0xfc]
        %v5144 = vld [vmem:[%s4812 + $0x8] sm:$0xfc]
        %v5145 = vld [vmem:[%s4812 + $0x10] sm:$0xfc]
        %v5146 = vld [vmem:[%s4812 + $0x18] sm:$0x3]
        %v5147 = vld [vmem:[%s4812 + $0x20] sm:$0x3]
        %v5148 = vld [vmem:[%s4812 + $0x28] sm:$0x3]
        %v5149 = vld [vmem:[%s4812 + $0x30] sm:$0xfc]
        %v5150 = vld [vmem:[%s4812 + $0x38] sm:$0xfc]
        %v5151 = vld [vmem:[%s4812 + $0x40] sm:$0xfc]
        %v5152 = vld [vmem:[%s4812 + $0x48] sm:$0x3]
        %v5153 = vld [vmem:[%s4812 + $0x50] sm:$0x3]
        %v5154 = vld [vmem:[%s4812 + $0x58] sm:$0x3]
        %v5155 = vld [vmem:[%s4812 + $0x60] sm:$0xfc]
        %v5156 = vld [vmem:[%s4812 + $0x68] sm:$0xfc]
        %v5157 = vld [vmem:[%s4812 + $0x70] sm:$0xfc]
        %v5158 = vld [vmem:[%s4812 + $0x78] sm:$0x3]
        %v5159 = vld [vmem:[%s4812 + $0x80] sm:$0x3]
        %v5160 = vld [vmem:[%s4812 + $0x88] sm:$0x3]
        %v5161 = vld [vmem:[%s4812 + $0x90] sm:$0xfc]
        %v5162 = vld [vmem:[%s4812 + $0x98] sm:$0xfc]
        %v5163 = vld [vmem:[%s4812 + $0xa0] sm:$0xfc]
        %v5164 = vld [vmem:[%s4812 + $0xa8] sm:$0x3]
        %v5165 = vld [vmem:[%s4812 + $0xb0] sm:$0x3]
        %v5166 = vld [vmem:[%s4812 + $0xb8] sm:$0x3]
        %v5167 = vld [vmem:[%s4812 + $0xc0] sm:$0xfc]
        %v5168 = vld [vmem:[%s4812 + $0xc8] sm:$0xfc]
        %v5169 = vld [vmem:[%s4812 + $0xd0] sm:$0xfc]
        %v5170 = vld [vmem:[%s4812 + $0xd8] sm:$0x3]
        %v5171 = vld [vmem:[%s4812 + $0xe0] sm:$0x3]
        %v5172 = vld [vmem:[%s4812 + $0xe8] sm:$0x3]
        %v5173 = vld [vmem:[%s4812 + $0xf0] sm:$0xfc]
        %v5174 = vld [vmem:[%s4812 + $0xf8] sm:$0xfc]
        %v5175 = vld [vmem:[%s4812 + $0x100] sm:$0xfc]
        %v5176 = vld [vmem:[%s4812 + $0x108] sm:$0x3]
        %v5177 = vld [vmem:[%s4812 + $0x110] sm:$0x3]
        %v5178 = vld [vmem:[%s4812 + $0x118] sm:$0x3]
        %v5179 = vld [vmem:[%s4812 + $0x120] sm:$0xfc]
        %v5180 = vld [vmem:[%s4812 + $0x128] sm:$0xfc]
        %v5181 = vld [vmem:[%s4812 + $0x130] sm:$0xfc]
        %v5182 = vld [vmem:[%s4812 + $0x138] sm:$0x3]
        %v5183 = vld [vmem:[%s4812 + $0x140] sm:$0x3]
        %v5184 = vld [vmem:[%s4812 + $0x148] sm:$0x3]
        %s5185 = scalar_lea.vmem %s259, 54 [#allocation4]
        %v5186 = vld [vmem:[%s5185] ss:$8 sm:$0x7]
        %v5188 = vlaneseq
        %v5189 = vshrl.u32 %v5188, 7
        %v5190 = vsub.s32 0, %v5189
        %v5191 = vrot.slane %v5186, %v5190
        %v5192 = vlaneseq
        %v5193 = vshrl.u32 %v5192, 7
        %v5194 = vsub.s32 1, %v5193
        %v5195 = vrot.slane %v5186, %v5194
        %v5196 = vlaneseq
        %v5197 = vshrl.u32 %v5196, 7
        %v5198 = vsub.s32 2, %v5197
        %v5199 = vrot.slane %v5186, %v5198
        %v5203 = vmul.f32 %v5143, %v5191
        %v5204 = vmul.f32 %v5144, %v5195
        %v5205 = vmul.f32 %v5145, %v5199
        %v5206 = vmul.f32 %v5146, %v5191
        %v5207 = vmul.f32 %v5147, %v5195
        %v5208 = vmul.f32 %v5148, %v5199
        %v5209 = vmul.f32 %v5149, %v5191
        %v5210 = vmul.f32 %v5150, %v5195
        %v5211 = vmul.f32 %v5151, %v5199
        %v5212 = vmul.f32 %v5152, %v5191
        %v5213 = vmul.f32 %v5153, %v5195
        %v5214 = vmul.f32 %v5154, %v5199
        %v5215 = vmul.f32 %v5155, %v5191
        %v5216 = vmul.f32 %v5156, %v5195
        %v5217 = vmul.f32 %v5157, %v5199
        %v5218 = vmul.f32 %v5158, %v5191
        %v5219 = vmul.f32 %v5159, %v5195
        %v5220 = vmul.f32 %v5160, %v5199
        %v5221 = vmul.f32 %v5161, %v5191
        %v5222 = vmul.f32 %v5162, %v5195
        %v5223 = vmul.f32 %v5163, %v5199
        %v5224 = vmul.f32 %v5164, %v5191
        %v5225 = vmul.f32 %v5165, %v5195
        %v5226 = vmul.f32 %v5166, %v5199
        %v5227 = vmul.f32 %v5167, %v5191
        %v5228 = vmul.f32 %v5168, %v5195
        %v5229 = vmul.f32 %v5169, %v5199
        %v5230 = vmul.f32 %v5170, %v5191
        %v5231 = vmul.f32 %v5171, %v5195
        %v5232 = vmul.f32 %v5172, %v5199
        %v5233 = vmul.f32 %v5173, %v5191
        %v5234 = vmul.f32 %v5174, %v5195
        %v5235 = vmul.f32 %v5175, %v5199
        %v5236 = vmul.f32 %v5176, %v5191
        %v5237 = vmul.f32 %v5177, %v5195
        %v5238 = vmul.f32 %v5178, %v5199
        %v5239 = vmul.f32 %v5179, %v5191
        %v5240 = vmul.f32 %v5180, %v5195
        %v5241 = vmul.f32 %v5181, %v5199
        %v5242 = vmul.f32 %v5182, %v5191
        %v5243 = vmul.f32 %v5183, %v5195
        %v5244 = vmul.f32 %v5184, %v5199
        %v5287 = vrot.slane %v5203, 2
        %v5288 = vrot.slane %v5206, 2
        %v5289 = vsel %vm973, %v5287, %v5288
        %v5290 = vrot.slane %v5204, 2
        %v5291 = vrot.slane %v5207, 2
        %v5292 = vsel %vm973, %v5290, %v5291
        %v5293 = vrot.slane %v5205, 2
        %v5294 = vrot.slane %v5208, 2
        %v5295 = vsel %vm973, %v5293, %v5294
        %v5296 = vrot.slane %v5209, 2
        %v5297 = vrot.slane %v5212, 2
        %v5298 = vsel %vm973, %v5296, %v5297
        %v5299 = vrot.slane %v5210, 2
        %v5300 = vrot.slane %v5213, 2
        %v5301 = vsel %vm973, %v5299, %v5300
        %v5302 = vrot.slane %v5211, 2
        %v5303 = vrot.slane %v5214, 2
        %v5304 = vsel %vm973, %v5302, %v5303
        %v5305 = vrot.slane %v5215, 2
        %v5306 = vrot.slane %v5218, 2
        %v5307 = vsel %vm973, %v5305, %v5306
        %v5308 = vrot.slane %v5216, 2
        %v5309 = vrot.slane %v5219, 2
        %v5310 = vsel %vm973, %v5308, %v5309
        %v5311 = vrot.slane %v5217, 2
        %v5312 = vrot.slane %v5220, 2
        %v5313 = vsel %vm973, %v5311, %v5312
        %v5314 = vrot.slane %v5221, 2
        %v5315 = vrot.slane %v5224, 2
        %v5316 = vsel %vm973, %v5314, %v5315
        %v5317 = vrot.slane %v5222, 2
        %v5318 = vrot.slane %v5225, 2
        %v5319 = vsel %vm973, %v5317, %v5318
        %v5320 = vrot.slane %v5223, 2
        %v5321 = vrot.slane %v5226, 2
        %v5322 = vsel %vm973, %v5320, %v5321
        %v5323 = vrot.slane %v5227, 2
        %v5324 = vrot.slane %v5230, 2
        %v5325 = vsel %vm973, %v5323, %v5324
        %v5326 = vrot.slane %v5228, 2
        %v5327 = vrot.slane %v5231, 2
        %v5328 = vsel %vm973, %v5326, %v5327
        %v5329 = vrot.slane %v5229, 2
        %v5330 = vrot.slane %v5232, 2
        %v5331 = vsel %vm973, %v5329, %v5330
        %v5332 = vrot.slane %v5233, 2
        %v5333 = vrot.slane %v5236, 2
        %v5334 = vsel %vm973, %v5332, %v5333
        %v5335 = vrot.slane %v5234, 2
        %v5336 = vrot.slane %v5237, 2
        %v5337 = vsel %vm973, %v5335, %v5336
        %v5338 = vrot.slane %v5235, 2
        %v5339 = vrot.slane %v5238, 2
        %v5340 = vsel %vm973, %v5338, %v5339
        %v5341 = vrot.slane %v5239, 2
        %v5342 = vrot.slane %v5242, 2
        %v5343 = vsel %vm973, %v5341, %v5342
        %v5344 = vrot.slane %v5240, 2
        %v5345 = vrot.slane %v5243, 2
        %v5346 = vsel %vm973, %v5344, %v5345
        %v5347 = vrot.slane %v5241, 2
        %v5348 = vrot.slane %v5244, 2
        %v5349 = vsel %vm973, %v5347, %v5348
        %v5371 = vadd.f32 %v5122, %v5289
        %v5372 = vadd.f32 %v5123, %v5292
        %v5373 = vadd.f32 %v5124, %v5295
        %v5374 = vadd.f32 %v5125, %v5298
        %v5375 = vadd.f32 %v5126, %v5301
        %v5376 = vadd.f32 %v5127, %v5304
        %v5377 = vadd.f32 %v5128, %v5307
        %v5378 = vadd.f32 %v5129, %v5310
        %v5379 = vadd.f32 %v5130, %v5313
        %v5380 = vadd.f32 %v5131, %v5316
        %v5381 = vadd.f32 %v5132, %v5319
        %v5382 = vadd.f32 %v5133, %v5322
        %v5383 = vadd.f32 %v5134, %v5325
        %v5384 = vadd.f32 %v5135, %v5328
        %v5385 = vadd.f32 %v5136, %v5331
        %v5386 = vadd.f32 %v5137, %v5334
        %v5387 = vadd.f32 %v5138, %v5337
        %v5388 = vadd.f32 %v5139, %v5340
        %v5389 = vadd.f32 %v5140, %v5343
        %v5390 = vadd.f32 %v5141, %v5346
        %v5391 = vadd.f32 %v5142, %v5349
        %v5392 = vld [vmem:[%s4812] sm:$0xf8]
        %v5393 = vld [vmem:[%s4812 + $0x8] sm:$0xf8]
        %v5394 = vld [vmem:[%s4812 + $0x10] sm:$0xf8]
        %v5395 = vld [vmem:[%s4812 + $0x18] sm:$0x7]
        %v5396 = vld [vmem:[%s4812 + $0x20] sm:$0x7]
        %v5397 = vld [vmem:[%s4812 + $0x28] sm:$0x7]
        %v5398 = vld [vmem:[%s4812 + $0x30] sm:$0xf8]
        %v5399 = vld [vmem:[%s4812 + $0x38] sm:$0xf8]
        %v5400 = vld [vmem:[%s4812 + $0x40] sm:$0xf8]
        %v5401 = vld [vmem:[%s4812 + $0x48] sm:$0x7]
        %v5402 = vld [vmem:[%s4812 + $0x50] sm:$0x7]
        %v5403 = vld [vmem:[%s4812 + $0x58] sm:$0x7]
        %v5404 = vld [vmem:[%s4812 + $0x60] sm:$0xf8]
        %v5405 = vld [vmem:[%s4812 + $0x68] sm:$0xf8]
        %v5406 = vld [vmem:[%s4812 + $0x70] sm:$0xf8]
        %v5407 = vld [vmem:[%s4812 + $0x78] sm:$0x7]
        %v5408 = vld [vmem:[%s4812 + $0x80] sm:$0x7]
        %v5409 = vld [vmem:[%s4812 + $0x88] sm:$0x7]
        %v5410 = vld [vmem:[%s4812 + $0x90] sm:$0xf8]
        %v5411 = vld [vmem:[%s4812 + $0x98] sm:$0xf8]
        %v5412 = vld [vmem:[%s4812 + $0xa0] sm:$0xf8]
        %v5413 = vld [vmem:[%s4812 + $0xa8] sm:$0x7]
        %v5414 = vld [vmem:[%s4812 + $0xb0] sm:$0x7]
        %v5415 = vld [vmem:[%s4812 + $0xb8] sm:$0x7]
        %v5416 = vld [vmem:[%s4812 + $0xc0] sm:$0xf8]
        %v5417 = vld [vmem:[%s4812 + $0xc8] sm:$0xf8]
        %v5418 = vld [vmem:[%s4812 + $0xd0] sm:$0xf8]
        %v5419 = vld [vmem:[%s4812 + $0xd8] sm:$0x7]
        %v5420 = vld [vmem:[%s4812 + $0xe0] sm:$0x7]
        %v5421 = vld [vmem:[%s4812 + $0xe8] sm:$0x7]
        %v5422 = vld [vmem:[%s4812 + $0xf0] sm:$0xf8]
        %v5423 = vld [vmem:[%s4812 + $0xf8] sm:$0xf8]
        %v5424 = vld [vmem:[%s4812 + $0x100] sm:$0xf8]
        %v5425 = vld [vmem:[%s4812 + $0x108] sm:$0x7]
        %v5426 = vld [vmem:[%s4812 + $0x110] sm:$0x7]
        %v5427 = vld [vmem:[%s4812 + $0x118] sm:$0x7]
        %v5428 = vld [vmem:[%s4812 + $0x120] sm:$0xf8]
        %v5429 = vld [vmem:[%s4812 + $0x128] sm:$0xf8]
        %v5430 = vld [vmem:[%s4812 + $0x130] sm:$0xf8]
        %v5431 = vld [vmem:[%s4812 + $0x138] sm:$0x7]
        %v5432 = vld [vmem:[%s4812 + $0x140] sm:$0x7]
        %v5433 = vld [vmem:[%s4812 + $0x148] sm:$0x7]
        %s5434 = scalar_lea.vmem %s259, 55 [#allocation4]
        %v5435 = vld [vmem:[%s5434] ss:$8 sm:$0x7]
        %v5437 = vlaneseq
        %v5438 = vshrl.u32 %v5437, 7
        %v5439 = vsub.s32 0, %v5438
        %v5440 = vrot.slane %v5435, %v5439
        %v5441 = vlaneseq
        %v5442 = vshrl.u32 %v5441, 7
        %v5443 = vsub.s32 1, %v5442
        %v5444 = vrot.slane %v5435, %v5443
        %v5445 = vlaneseq
        %v5446 = vshrl.u32 %v5445, 7
        %v5447 = vsub.s32 2, %v5446
        %v5448 = vrot.slane %v5435, %v5447
        %v5452 = vmul.f32 %v5392, %v5440
        %v5453 = vmul.f32 %v5393, %v5444
        %v5454 = vmul.f32 %v5394, %v5448
        %v5455 = vmul.f32 %v5395, %v5440
        %v5456 = vmul.f32 %v5396, %v5444
        %v5457 = vmul.f32 %v5397, %v5448
        %v5458 = vmul.f32 %v5398, %v5440
        %v5459 = vmul.f32 %v5399, %v5444
        %v5460 = vmul.f32 %v5400, %v5448
        %v5461 = vmul.f32 %v5401, %v5440
        %v5462 = vmul.f32 %v5402, %v5444
        %v5463 = vmul.f32 %v5403, %v5448
        %v5464 = vmul.f32 %v5404, %v5440
        %v5465 = vmul.f32 %v5405, %v5444
        %v5466 = vmul.f32 %v5406, %v5448
        %v5467 = vmul.f32 %v5407, %v5440
        %v5468 = vmul.f32 %v5408, %v5444
        %v5469 = vmul.f32 %v5409, %v5448
        %v5470 = vmul.f32 %v5410, %v5440
        %v5471 = vmul.f32 %v5411, %v5444
        %v5472 = vmul.f32 %v5412, %v5448
        %v5473 = vmul.f32 %v5413, %v5440
        %v5474 = vmul.f32 %v5414, %v5444
        %v5475 = vmul.f32 %v5415, %v5448
        %v5476 = vmul.f32 %v5416, %v5440
        %v5477 = vmul.f32 %v5417, %v5444
        %v5478 = vmul.f32 %v5418, %v5448
        %v5479 = vmul.f32 %v5419, %v5440
        %v5480 = vmul.f32 %v5420, %v5444
        %v5481 = vmul.f32 %v5421, %v5448
        %v5482 = vmul.f32 %v5422, %v5440
        %v5483 = vmul.f32 %v5423, %v5444
        %v5484 = vmul.f32 %v5424, %v5448
        %v5485 = vmul.f32 %v5425, %v5440
        %v5486 = vmul.f32 %v5426, %v5444
        %v5487 = vmul.f32 %v5427, %v5448
        %v5488 = vmul.f32 %v5428, %v5440
        %v5489 = vmul.f32 %v5429, %v5444
        %v5490 = vmul.f32 %v5430, %v5448
        %v5491 = vmul.f32 %v5431, %v5440
        %v5492 = vmul.f32 %v5432, %v5444
        %v5493 = vmul.f32 %v5433, %v5448
        %v5536 = vrot.slane %v5452, 3
        %v5537 = vrot.slane %v5455, 3
        %v5538 = vsel %vm1223, %v5536, %v5537
        %v5539 = vrot.slane %v5453, 3
        %v5540 = vrot.slane %v5456, 3
        %v5541 = vsel %vm1223, %v5539, %v5540
        %v5542 = vrot.slane %v5454, 3
        %v5543 = vrot.slane %v5457, 3
        %v5544 = vsel %vm1223, %v5542, %v5543
        %v5545 = vrot.slane %v5458, 3
        %v5546 = vrot.slane %v5461, 3
        %v5547 = vsel %vm1223, %v5545, %v5546
        %v5548 = vrot.slane %v5459, 3
        %v5549 = vrot.slane %v5462, 3
        %v5550 = vsel %vm1223, %v5548, %v5549
        %v5551 = vrot.slane %v5460, 3
        %v5552 = vrot.slane %v5463, 3
        %v5553 = vsel %vm1223, %v5551, %v5552
        %v5554 = vrot.slane %v5464, 3
        %v5555 = vrot.slane %v5467, 3
        %v5556 = vsel %vm1223, %v5554, %v5555
        %v5557 = vrot.slane %v5465, 3
        %v5558 = vrot.slane %v5468, 3
        %v5559 = vsel %vm1223, %v5557, %v5558
        %v5560 = vrot.slane %v5466, 3
        %v5561 = vrot.slane %v5469, 3
        %v5562 = vsel %vm1223, %v5560, %v5561
        %v5563 = vrot.slane %v5470, 3
        %v5564 = vrot.slane %v5473, 3
        %v5565 = vsel %vm1223, %v5563, %v5564
        %v5566 = vrot.slane %v5471, 3
        %v5567 = vrot.slane %v5474, 3
        %v5568 = vsel %vm1223, %v5566, %v5567
        %v5569 = vrot.slane %v5472, 3
        %v5570 = vrot.slane %v5475, 3
        %v5571 = vsel %vm1223, %v5569, %v5570
        %v5572 = vrot.slane %v5476, 3
        %v5573 = vrot.slane %v5479, 3
        %v5574 = vsel %vm1223, %v5572, %v5573
        %v5575 = vrot.slane %v5477, 3
        %v5576 = vrot.slane %v5480, 3
        %v5577 = vsel %vm1223, %v5575, %v5576
        %v5578 = vrot.slane %v5478, 3
        %v5579 = vrot.slane %v5481, 3
        %v5580 = vsel %vm1223, %v5578, %v5579
        %v5581 = vrot.slane %v5482, 3
        %v5582 = vrot.slane %v5485, 3
        %v5583 = vsel %vm1223, %v5581, %v5582
        %v5584 = vrot.slane %v5483, 3
        %v5585 = vrot.slane %v5486, 3
        %v5586 = vsel %vm1223, %v5584, %v5585
        %v5587 = vrot.slane %v5484, 3
        %v5588 = vrot.slane %v5487, 3
        %v5589 = vsel %vm1223, %v5587, %v5588
        %v5590 = vrot.slane %v5488, 3
        %v5591 = vrot.slane %v5491, 3
        %v5592 = vsel %vm1223, %v5590, %v5591
        %v5593 = vrot.slane %v5489, 3
        %v5594 = vrot.slane %v5492, 3
        %v5595 = vsel %vm1223, %v5593, %v5594
        %v5596 = vrot.slane %v5490, 3
        %v5597 = vrot.slane %v5493, 3
        %v5598 = vsel %vm1223, %v5596, %v5597
        %v5620 = vadd.f32 %v5371, %v5538
        %v5621 = vadd.f32 %v5372, %v5541
        %v5622 = vadd.f32 %v5373, %v5544
        %v5623 = vadd.f32 %v5374, %v5547
        %v5624 = vadd.f32 %v5375, %v5550
        %v5625 = vadd.f32 %v5376, %v5553
        %v5626 = vadd.f32 %v5377, %v5556
        %v5627 = vadd.f32 %v5378, %v5559
        %v5628 = vadd.f32 %v5379, %v5562
        %v5629 = vadd.f32 %v5380, %v5565
        %v5630 = vadd.f32 %v5381, %v5568
        %v5631 = vadd.f32 %v5382, %v5571
        %v5632 = vadd.f32 %v5383, %v5574
        %v5633 = vadd.f32 %v5384, %v5577
        %v5634 = vadd.f32 %v5385, %v5580
        %v5635 = vadd.f32 %v5386, %v5583
        %v5636 = vadd.f32 %v5387, %v5586
        %v5637 = vadd.f32 %v5388, %v5589
        %v5638 = vadd.f32 %v5389, %v5592
        %v5639 = vadd.f32 %v5390, %v5595
        %v5640 = vadd.f32 %v5391, %v5598
        %v5641 = vld [vmem:[%s4812] sm:$0xf0]
        %v5642 = vld [vmem:[%s4812 + $0x8] sm:$0xf0]
        %v5643 = vld [vmem:[%s4812 + $0x10] sm:$0xf0]
        %v5644 = vld [vmem:[%s4812 + $0x18] sm:$0xf]
        %v5645 = vld [vmem:[%s4812 + $0x20] sm:$0xf]
        %v5646 = vld [vmem:[%s4812 + $0x28] sm:$0xf]
        %v5647 = vld [vmem:[%s4812 + $0x30] sm:$0xf0]
        %v5648 = vld [vmem:[%s4812 + $0x38] sm:$0xf0]
        %v5649 = vld [vmem:[%s4812 + $0x40] sm:$0xf0]
        %v5650 = vld [vmem:[%s4812 + $0x48] sm:$0xf]
        %v5651 = vld [vmem:[%s4812 + $0x50] sm:$0xf]
        %v5652 = vld [vmem:[%s4812 + $0x58] sm:$0xf]
        %v5653 = vld [vmem:[%s4812 + $0x60] sm:$0xf0]
        %v5654 = vld [vmem:[%s4812 + $0x68] sm:$0xf0]
        %v5655 = vld [vmem:[%s4812 + $0x70] sm:$0xf0]
        %v5656 = vld [vmem:[%s4812 + $0x78] sm:$0xf]
        %v5657 = vld [vmem:[%s4812 + $0x80] sm:$0xf]
        %v5658 = vld [vmem:[%s4812 + $0x88] sm:$0xf]
        %v5659 = vld [vmem:[%s4812 + $0x90] sm:$0xf0]
        %v5660 = vld [vmem:[%s4812 + $0x98] sm:$0xf0]
        %v5661 = vld [vmem:[%s4812 + $0xa0] sm:$0xf0]
        %v5662 = vld [vmem:[%s4812 + $0xa8] sm:$0xf]
        %v5663 = vld [vmem:[%s4812 + $0xb0] sm:$0xf]
        %v5664 = vld [vmem:[%s4812 + $0xb8] sm:$0xf]
        %v5665 = vld [vmem:[%s4812 + $0xc0] sm:$0xf0]
        %v5666 = vld [vmem:[%s4812 + $0xc8] sm:$0xf0]
        %v5667 = vld [vmem:[%s4812 + $0xd0] sm:$0xf0]
        %v5668 = vld [vmem:[%s4812 + $0xd8] sm:$0xf]
        %v5669 = vld [vmem:[%s4812 + $0xe0] sm:$0xf]
        %v5670 = vld [vmem:[%s4812 + $0xe8] sm:$0xf]
        %v5671 = vld [vmem:[%s4812 + $0xf0] sm:$0xf0]
        %v5672 = vld [vmem:[%s4812 + $0xf8] sm:$0xf0]
        %v5673 = vld [vmem:[%s4812 + $0x100] sm:$0xf0]
        %v5674 = vld [vmem:[%s4812 + $0x108] sm:$0xf]
        %v5675 = vld [vmem:[%s4812 + $0x110] sm:$0xf]
        %v5676 = vld [vmem:[%s4812 + $0x118] sm:$0xf]
        %v5677 = vld [vmem:[%s4812 + $0x120] sm:$0xf0]
        %v5678 = vld [vmem:[%s4812 + $0x128] sm:$0xf0]
        %v5679 = vld [vmem:[%s4812 + $0x130] sm:$0xf0]
        %v5680 = vld [vmem:[%s4812 + $0x138] sm:$0xf]
        %v5681 = vld [vmem:[%s4812 + $0x140] sm:$0xf]
        %v5682 = vld [vmem:[%s4812 + $0x148] sm:$0xf]
        %s5683 = scalar_lea.vmem %s259, 72 [#allocation4]
        %v5684 = vld [vmem:[%s5683] ss:$8 sm:$0x7]
        %v5686 = vlaneseq
        %v5687 = vshrl.u32 %v5686, 7
        %v5688 = vsub.s32 0, %v5687
        %v5689 = vrot.slane %v5684, %v5688
        %v5690 = vlaneseq
        %v5691 = vshrl.u32 %v5690, 7
        %v5692 = vsub.s32 1, %v5691
        %v5693 = vrot.slane %v5684, %v5692
        %v5694 = vlaneseq
        %v5695 = vshrl.u32 %v5694, 7
        %v5696 = vsub.s32 2, %v5695
        %v5697 = vrot.slane %v5684, %v5696
        %v5701 = vmul.f32 %v5641, %v5689
        %v5702 = vmul.f32 %v5642, %v5693
        %v5703 = vmul.f32 %v5643, %v5697
        %v5704 = vmul.f32 %v5644, %v5689
        %v5705 = vmul.f32 %v5645, %v5693
        %v5706 = vmul.f32 %v5646, %v5697
        %v5707 = vmul.f32 %v5647, %v5689
        %v5708 = vmul.f32 %v5648, %v5693
        %v5709 = vmul.f32 %v5649, %v5697
        %v5710 = vmul.f32 %v5650, %v5689
        %v5711 = vmul.f32 %v5651, %v5693
        %v5712 = vmul.f32 %v5652, %v5697
        %v5713 = vmul.f32 %v5653, %v5689
        %v5714 = vmul.f32 %v5654, %v5693
        %v5715 = vmul.f32 %v5655, %v5697
        %v5716 = vmul.f32 %v5656, %v5689
        %v5717 = vmul.f32 %v5657, %v5693
        %v5718 = vmul.f32 %v5658, %v5697
        %v5719 = vmul.f32 %v5659, %v5689
        %v5720 = vmul.f32 %v5660, %v5693
        %v5721 = vmul.f32 %v5661, %v5697
        %v5722 = vmul.f32 %v5662, %v5689
        %v5723 = vmul.f32 %v5663, %v5693
        %v5724 = vmul.f32 %v5664, %v5697
        %v5725 = vmul.f32 %v5665, %v5689
        %v5726 = vmul.f32 %v5666, %v5693
        %v5727 = vmul.f32 %v5667, %v5697
        %v5728 = vmul.f32 %v5668, %v5689
        %v5729 = vmul.f32 %v5669, %v5693
        %v5730 = vmul.f32 %v5670, %v5697
        %v5731 = vmul.f32 %v5671, %v5689
        %v5732 = vmul.f32 %v5672, %v5693
        %v5733 = vmul.f32 %v5673, %v5697
        %v5734 = vmul.f32 %v5674, %v5689
        %v5735 = vmul.f32 %v5675, %v5693
        %v5736 = vmul.f32 %v5676, %v5697
        %v5737 = vmul.f32 %v5677, %v5689
        %v5738 = vmul.f32 %v5678, %v5693
        %v5739 = vmul.f32 %v5679, %v5697
        %v5740 = vmul.f32 %v5680, %v5689
        %v5741 = vmul.f32 %v5681, %v5693
        %v5742 = vmul.f32 %v5682, %v5697
        %v5785 = vrot.slane %v5701, 4
        %v5786 = vrot.slane %v5704, 4
        %v5787 = vsel %vm1473, %v5785, %v5786
        %v5788 = vrot.slane %v5702, 4
        %v5789 = vrot.slane %v5705, 4
        %v5790 = vsel %vm1473, %v5788, %v5789
        %v5791 = vrot.slane %v5703, 4
        %v5792 = vrot.slane %v5706, 4
        %v5793 = vsel %vm1473, %v5791, %v5792
        %v5794 = vrot.slane %v5707, 4
        %v5795 = vrot.slane %v5710, 4
        %v5796 = vsel %vm1473, %v5794, %v5795
        %v5797 = vrot.slane %v5708, 4
        %v5798 = vrot.slane %v5711, 4
        %v5799 = vsel %vm1473, %v5797, %v5798
        %v5800 = vrot.slane %v5709, 4
        %v5801 = vrot.slane %v5712, 4
        %v5802 = vsel %vm1473, %v5800, %v5801
        %v5803 = vrot.slane %v5713, 4
        %v5804 = vrot.slane %v5716, 4
        %v5805 = vsel %vm1473, %v5803, %v5804
        %v5806 = vrot.slane %v5714, 4
        %v5807 = vrot.slane %v5717, 4
        %v5808 = vsel %vm1473, %v5806, %v5807
        %v5809 = vrot.slane %v5715, 4
        %v5810 = vrot.slane %v5718, 4
        %v5811 = vsel %vm1473, %v5809, %v5810
        %v5812 = vrot.slane %v5719, 4
        %v5813 = vrot.slane %v5722, 4
        %v5814 = vsel %vm1473, %v5812, %v5813
        %v5815 = vrot.slane %v5720, 4
        %v5816 = vrot.slane %v5723, 4
        %v5817 = vsel %vm1473, %v5815, %v5816
        %v5818 = vrot.slane %v5721, 4
        %v5819 = vrot.slane %v5724, 4
        %v5820 = vsel %vm1473, %v5818, %v5819
        %v5821 = vrot.slane %v5725, 4
        %v5822 = vrot.slane %v5728, 4
        %v5823 = vsel %vm1473, %v5821, %v5822
        %v5824 = vrot.slane %v5726, 4
        %v5825 = vrot.slane %v5729, 4
        %v5826 = vsel %vm1473, %v5824, %v5825
        %v5827 = vrot.slane %v5727, 4
        %v5828 = vrot.slane %v5730, 4
        %v5829 = vsel %vm1473, %v5827, %v5828
        %v5830 = vrot.slane %v5731, 4
        %v5831 = vrot.slane %v5734, 4
        %v5832 = vsel %vm1473, %v5830, %v5831
        %v5833 = vrot.slane %v5732, 4
        %v5834 = vrot.slane %v5735, 4
        %v5835 = vsel %vm1473, %v5833, %v5834
        %v5836 = vrot.slane %v5733, 4
        %v5837 = vrot.slane %v5736, 4
        %v5838 = vsel %vm1473, %v5836, %v5837
        %v5839 = vrot.slane %v5737, 4
        %v5840 = vrot.slane %v5740, 4
        %v5841 = vsel %vm1473, %v5839, %v5840
        %v5842 = vrot.slane %v5738, 4
        %v5843 = vrot.slane %v5741, 4
        %v5844 = vsel %vm1473, %v5842, %v5843
        %v5845 = vrot.slane %v5739, 4
        %v5846 = vrot.slane %v5742, 4
        %v5847 = vsel %vm1473, %v5845, %v5846
        %v5869 = vadd.f32 %v5620, %v5787
        %v5870 = vadd.f32 %v5621, %v5790
        %v5871 = vadd.f32 %v5622, %v5793
        %v5872 = vadd.f32 %v5623, %v5796
        %v5873 = vadd.f32 %v5624, %v5799
        %v5874 = vadd.f32 %v5625, %v5802
        %v5875 = vadd.f32 %v5626, %v5805
        %v5876 = vadd.f32 %v5627, %v5808
        %v5877 = vadd.f32 %v5628, %v5811
        %v5878 = vadd.f32 %v5629, %v5814
        %v5879 = vadd.f32 %v5630, %v5817
        %v5880 = vadd.f32 %v5631, %v5820
        %v5881 = vadd.f32 %v5632, %v5823
        %v5882 = vadd.f32 %v5633, %v5826
        %v5883 = vadd.f32 %v5634, %v5829
        %v5884 = vadd.f32 %v5635, %v5832
        %v5885 = vadd.f32 %v5636, %v5835
        %v5886 = vadd.f32 %v5637, %v5838
        %v5887 = vadd.f32 %v5638, %v5841
        %v5888 = vadd.f32 %v5639, %v5844
        %v5889 = vadd.f32 %v5640, %v5847
        %5890 = vst [vmem:[%s281] sm:$0xff] %v5869
        %5891 = vst [vmem:[%s281 + $0x8] sm:$0xff] %v5870
        %5892 = vst [vmem:[%s281 + $0x10] sm:$0xff] %v5871
        %5893 = vst [vmem:[%s281 + $0x18] sm:$0xff] %v5872
        %5894 = vst [vmem:[%s281 + $0x20] sm:$0xff] %v5873
        %5895 = vst [vmem:[%s281 + $0x28] sm:$0xff] %v5874
        %5896 = vst [vmem:[%s281 + $0x30] sm:$0xff] %v5875
        %5897 = vst [vmem:[%s281 + $0x38] sm:$0xff] %v5876
        %5898 = vst [vmem:[%s281 + $0x40] sm:$0xff] %v5877
        %5899 = vst [vmem:[%s281 + $0x48] sm:$0xff] %v5878
        %5900 = vst [vmem:[%s281 + $0x50] sm:$0xff] %v5879
        %5901 = vst [vmem:[%s281 + $0x58] sm:$0xff] %v5880
        %5902 = vst [vmem:[%s281 + $0x60] sm:$0xff] %v5881
        %5903 = vst [vmem:[%s281 + $0x68] sm:$0xff] %v5882
        %5904 = vst [vmem:[%s281 + $0x70] sm:$0xff] %v5883
        %5905 = vst [vmem:[%s281 + $0x78] sm:$0xff] %v5884
        %5906 = vst [vmem:[%s281 + $0x80] sm:$0xff] %v5885
        %5907 = vst [vmem:[%s281 + $0x88] sm:$0xff] %v5886
        %5908 = vst [vmem:[%s281 + $0x90] sm:$0xff] %v5887
        %5909 = vst [vmem:[%s281 + $0x98] sm:$0xff] %v5888
        %5910 = vst [vmem:[%s281 + $0xa0] sm:$0xff] %v5889
        %s5911 = sand.u32 %s92, 1
        %s5912 = scalar_lea.sflag [#allocation6], %s5911
        %s5913 = sand.u32 %s92, 1
        %s5914 = smul.addr %s5913, 168
        %s5915 = scalar_lea.vmem [#allocation5], %s5914
        // Predicated region
        $region75: #{tpu_custom_call.1} parent=65 // pred_check
          %p5916 = pneg %p102
        $region76: #{tpu_custom_call.1} parent=65 // pred_check_branch
          %5918 = sbr.rel (%p5916) target = $region78
        $region77: #{tpu_custom_call.1} parent=65 // pred_region
          %s5919 = smul.u32 3, %s21
          %s5921 = ssub.s32 2688, 2688
          %5922 = vsyncadd %s5912, %s5921
          %s5923 = smul.addr %s20, 63
          %s5924 = sadd.s32 %s5919, %s5923
          %s5925 = smul.addr %s5924, 128
          %s5926 = scalar_lea.hbm %s2, %s5925
          %s5927 = sshll.u32 %s5915, 4
          %s5928 = int_to_ptr.vmem [resolvable:$true] %s5927
          %5933 = dma.vmem_to_hbm [thread:$0]  %s5928, 2688, %s5926, %s5912, 384, 1152, 24
        $region78: #{tpu_custom_call.1} parent=65 // pred_fallthru
          _
      $region66: #{tpu_custom_call.1} parent=5 // pred_fallthru
        _
      %p5934 = scmp.le.s32.totalorder 2, %s11
      // Predicated region
      $region79: #{tpu_custom_call.1} parent=5 // pred_check
        %p5935 = pneg %p5934
      $region80: #{tpu_custom_call.1} parent=5 // pred_check_branch
        %5937 = sbr.rel (%p5935) target = $region82
      $region81: #{tpu_custom_call.1} parent=5 // pred_region
        %s5938 = ssub.s32 %s11, 2
        // Predicated region
        $region83: #{tpu_custom_call.1} parent=81 // pred_check
          %p5939 = pneg %p108
        $region84: #{tpu_custom_call.1} parent=81 // pred_check_branch
          %5941 = sbr.rel (%p5939) target = $region86
        $region85: #{tpu_custom_call.1} parent=81 // pred_region
          %s5942 = sand.u32 %s93, 1
          %s5943 = scalar_lea.sflag [#allocation6], %s5942
          %s5944 = sand.u32 %s93, 1
          %s5945 = smul.addr %s5944, 168
          %s5946 = scalar_lea.vmem [#allocation5], %s5945
          %5947 = dma.done %s5943, 2688
        $region86: #{tpu_custom_call.1} parent=81 // pred_fallthru
          _
      $region82: #{tpu_custom_call.1} parent=5 // pred_fallthru
        _
    $region6: #{tpu_custom_call.1} parent=1 // loop_footer
      %s15 = sadd.s32 1, %s11
    $region7: #{tpu_custom_call.1} parent=1 // loop_footer_branch
      %10 = sbr.rel target = $region3
    $region8: #{tpu_custom_call.1} parent=1 // loop_exit
      _
    %5948 = vsyncpa [#allocation6], 1
    %s5949 = scalar_lea.sflag [#allocation6], 1
    %5950 = vsyncpa %s5949, 1

</llo_original>
